<compile_context>
chip_gen: v6e
topology: v6e:2x2x1
jax: 0.10.0
libtpu: 0.0.40
codegen_flags: <defaults>
</compile_context>

<pallas_src>
import jax
import jax.numpy as jnp
from jax import lax
from jax.experimental import pallas as pl
from jax.experimental.pallas import tpu as pltpu


# ----------------------------- Pallas kernel -------------------------------

def make_tcn_kernel(meta, kernel_size, compute_dtype):
    """meta: per-layer dicts with static 'dilation' and 'has_downsample'."""
    K = kernel_size
    cdt = compute_dtype
    n_layers = len(meta)

    def kernel(x_ref, *refs):
        o_ref = refs[-1]
        refs = refs[:-1]
        bt, T, C = x_ref.shape          # (batch_tile, time, 128-lane packed chans)
        M = bt * T

        # Hoisted once: time index for the causal masks (cheap VPU select).
        t_idx = lax.broadcasted_iota(jnp.int32, (bt, T, C), 1)

        def causal_conv(h32, w_ref, b_ref, dilation):
            # y[t] = b + sum_k h[t - s_k] @ W_k,  s_k = (K-1-k)*dilation.
            # One MXU matmul (depth C, width K*C) computes z_k = h @ W_k for
            # every tap; each tap's causal shift is a pltpu.roll on the
            # sublane axis + an iota mask.  No shifted input copies.
            z = jnp.dot(h32.reshape(M, C).astype(cdt), w_ref[...],
                        preferred_element_type=jnp.float32)
            z = z.reshape(bt, T, K * C)
            acc = None
            for k in range(K):
                s = (K - 1 - k) * dilation
                if s >= T:              # tap contributes only zeros: drop it
                    continue
                chunk = z[:, :, k * C:(k + 1) * C]      # lane-aligned slice
                if s == 0:
                    contrib = chunk
                else:
                    rolled = pltpu.roll(chunk, shift=s, axis=1)
                    contrib = jnp.where(t_idx >= s, rolled, 0.0)
                acc = contrib if acc is None else acc + contrib
            if acc is None:
                acc = jnp.zeros((bt, T, C), jnp.float32)
            return acc + b_ref[...].reshape(1, 1, C)

        def conv_last_row(h32, w_ref, b_ref, dilation):
            # Conv output at the single row t = T-1 (all the head reads):
            # K tiny matmuls of bt rows each instead of a full-T pass.
            acc = jnp.zeros((bt, C), jnp.float32) + b_ref[...]
            for k in range(K):
                s = (K - 1 - k) * dilation
                if s >= T:
                    continue
                row = h32[:, T - 1 - s:T - s, :].reshape(bt, C).astype(cdt)
                acc = acc + jnp.dot(row, w_ref[:, k * C:(k + 1) * C],
                                    preferred_element_type=jnp.float32)
            return acc

        h = x_ref[...].astype(jnp.float32)              # (bt, T, C) f32
        h_last = None
        i = 0
        for li, m in enumerate(meta):
            w1, b1, w2, b2 = refs[i:i + 4]
            i += 4
            if m["has_downsample"]:
                wd, bd = refs[i:i + 2]
                i += 2
            d = m["dilation"]
            is_last = li == n_layers - 1

            # conv1 -> chomp -> relu -> dropout(identity)
            a1 = jnp.maximum(causal_conv(h, w1, b1, d), 0.0)
            if not is_last:
                a2 = jnp.maximum(causal_conv(a1, w2, b2, d), 0.0)
                if m["has_downsample"]:
                    res = (jnp.dot(h.reshape(M, C).astype(cdt), wd[...],
                                   preferred_element_type=jnp.float32)
                           + bd[...]).reshape(bt, T, C)
                else:
                    res = h                              # identity residual
                h = jnp.maximum(a2 + res, 0.0)
            else:
                # Head reads only t = T-1: restrict conv2, the residual and
                # the final add/relu of the last block to that row.
                a2_last = jnp.maximum(conv_last_row(a1, w2, b2, d), 0.0)
                hl = h[:, T - 1:T, :].reshape(bt, C)
                if m["has_downsample"]:
                    res_last = (jnp.dot(hl.astype(cdt), wd[...],
                                        preferred_element_type=jnp.float32)
                                + bd[...])
                else:
                    res_last = hl
                h_last = jnp.maximum(a2_last + res_last, 0.0)   # (bt, C)

        # class_layer on the last time step only.
        wc_ref, bc_ref = refs[i], refs[i + 1]
        out = (jnp.dot(h_last.astype(cdt), wc_ref[...],
                       preferred_element_type=jnp.float32) + bc_ref[...])
        o_ref[...] = out.reshape(bt, 1, -1).astype(o_ref.dtype)

    return kernel


# ------------------------------ JAX glue -----------------------------------

def _round_up(n, m):
    return ((n + m - 1) // m) * m


def _next_pow2(n):
    p = 1
    while p < n:
        p *= 2
    return p


def _choose_packing(c_max):
    """Per-batch lane-slot width, packing factor p, and padded channel width."""
    if c_max <= 64:
        cslot = _next_pow2(c_max)       # power of two -> divides 128
        p = 128 // cslot
    else:
        cslot = _round_up(c_max, 128)   # too wide to pack: fall back to p = 1
        p = 1
    return p, cslot, p * cslot          # cpad == p*cslot (>= 128 or p == 1)


def _auto_batch_tile(bp, t, target_rows=512):
    """Largest divisor of bp with bt*T <~ target_rows and >= 2 grid steps."""
    cap = max(1, target_rows // max(t, 1))
    if bp >= 2:
        cap = min(cap, max(1, bp // 2))     # keep both v7x TCs busy
    bt = 1
    for d in range(1, bp + 1):
        if bp % d == 0 and d <= cap:
            bt = d
    return bt


def pack_params(params, wc, bc, kernel_size, p, cslot, cpad, opad,
                compute_dtype):
    """Block-diagonal (p slots) packing of all weights; taps concatenated along
    output lanes so each conv weight is a (cpad, K*cpad) slab.  Matmul operands
    cast to compute_dtype; biases stay f32."""
    K = kernel_size
    os_ = wc.shape[1]

    def conv_w(w):                      # (K, cin, cout) -> (cpad, K*cpad)
        _, cin, cout = w.shape
        wp = jnp.zeros((K, cpad, cpad), jnp.float32)
        for s in range(p):
            wp = wp.at[:, s * cslot:s * cslot + cin,
                       s * cslot:s * cslot + cout].set(w)
        return (jnp.transpose(wp, (1, 0, 2)).reshape(cpad, K * cpad)
                .astype(compute_dtype))

    def vec_b(b, width, stride):        # (1, cout) -> (1, width), replicated
        cout = b.shape[1]
        bp_ = jnp.zeros((1, width), jnp.float32)
        for s in range(p):
            bp_ = bp_.at[:, s * stride:s * stride + cout].set(b)
        return bp_

    def mat_w(w, width_out, stride_out):  # (cin, cout) -> (cpad, width_out)
        cin, cout = w.shape
        wp = jnp.zeros((cpad, width_out), jnp.float32)
        for s in range(p):
            wp = wp.at[s * cslot:s * cslot + cin,
                       s * stride_out:s * stride_out + cout].set(w)
        return wp.astype(compute_dtype)

    flat, meta = [], []
    for pr in params:
        flat += [conv_w(pr["w1"]), vec_b(pr["b1"], cpad, cslot),
                 conv_w(pr["w2"]), vec_b(pr["b2"], cpad, cslot)]
        has_ds = pr["wd"] is not None
        if has_ds:
            flat += [mat_w(pr["wd"], cpad, cslot), vec_b(pr["bd"], cpad, cslot)]
        meta.append(dict(dilation=pr["dilation"], has_downsample=has_ds))
    flat += [mat_w(wc, opad, os_), vec_b(bc, opad, os_)]
    return flat, meta


def tcn_forward(x, params, wc, bc, kernel_size, *, batch_tile=None,
                compute_dtype=jnp.bfloat16):
    # x: (B, T, input_size) channels-last (PyTorch transposes are no-ops here).
    B, T, cin0 = x.shape
    output_size = wc.shape[1]
    K = kernel_size

    c_max = max([cin0] + [pr["w1"].shape[2] for pr in params])
    p, cslot, cpad = _choose_packing(c_max)
    opad = _round_up(p * output_size, 128)

    # Lane-pack p batch elements per 128-lane slab: batch b -> packed row b//p,
    # lane slot b % p.  Weights are block-diagonal, so slots never mix.
    bpad = _round_up(B, p)
    bp = bpad // p
    xpad = jnp.zeros((bpad, T, cslot), jnp.float32).at[:B, :, :cin0].set(x)
    xp = (xpad.reshape(bp, p, T, cslot).transpose(0, 2, 1, 3)
          .reshape(bp, T, cpad).astype(compute_dtype))

    flat, meta = pack_params(params, wc, bc, K, p, cslot, cpad, opad,
                             compute_dtype)
    kernel = make_tcn_kernel(meta, K, compute_dtype)

    if batch_tile is None:
        batch_tile = _auto_batch_tile(bp, T)
    assert bp % batch_tile == 0

    in_specs = [pl.BlockSpec((batch_tile, T, cpad), lambda g: (g, 0, 0))]
    in_specs += [pl.BlockSpec(a.shape, lambda g: (0, 0)) for a in flat]

    # Advisory cost estimate so XLA schedules the surrounding pad/cast/unpack.
    mrows = bp * T
    n_ds = sum(1 for m in meta if m["has_downsample"])
    flops = (len(meta) * 2 * (2 * mrows * cpad * K * cpad)
             + n_ds * 2 * mrows * cpad * cpad
             + 2 * bp * cpad * opad)
    bytes_accessed = (xp.size * xp.dtype.itemsize
                      + sum(a.size * a.dtype.itemsize for a in flat)
                      + bp * opad * 4)

    out = pl.pallas_call(
        kernel,
        out_shape=jax.ShapeDtypeStruct((bp, 1, opad), jnp.float32),
        grid=(bp // batch_tile,),
        in_specs=in_specs,
        out_specs=pl.BlockSpec((batch_tile, 1, opad), lambda g: (g, 0, 0)),
        compiler_params=pltpu.CompilerParams(
            dimension_semantics=("parallel",)),
        cost_estimate=pl.CostEstimate(flops=int(flops), transcendentals=0,
                                      bytes_accessed=int(bytes_accessed)),
    )(xp, *flat)

    out = out.reshape(bp, opad)[:, :p * output_size]
    out = out.reshape(bp * p, output_size)[:B]
    return out


def init_tcn_params(key, input_size, output_size, num_channels, kernel_size):
    # Deterministic synthetic effective weights (Conv1d ~ N(0, 0.01) as in
    # init_weights; weight_norm folded in).  Channels-last shapes:
    # w: (K, cin, cout), b: (1, cout).
    assert num_channels[-1] == input_size, \
        "class_layer is Linear(input_size, ...); TCN output channels must match."
    params = []
    cin = input_size
    for i, cout in enumerate(num_channels):
        key, k1, k2, k3, k4, k5, k6 = jax.random.split(key, 7)
        w1 = 0.01 * jax.random.normal(k1, (kernel_size, cin, cout), jnp.float32)
        b1 = 0.01 * jax.random.normal(k2, (1, cout), jnp.float32)
        w2 = 0.01 * jax.random.normal(k3, (kernel_size, cout, cout), jnp.float32)
        b2 = 0.01 * jax.random.normal(k4, (1, cout), jnp.float32)
        if cin != cout:
            wd = 0.01 * jax.random.normal(k5, (cin, cout), jnp.float32)
            bd = 0.01 * jax.random.normal(k6, (1, cout), jnp.float32)
        else:
            wd, bd = None, None     # downsample is None -> identity residual
        params.append(dict(w1=w1, b1=b1, w2=w2, b2=b2, wd=wd, bd=bd,
                           dilation=2 ** i))
        cin = cout
    key, kc1, kc2 = jax.random.split(key, 3)
    wc = 0.01 * jax.random.normal(kc1, (cin, output_size), jnp.float32)
    bc = 0.01 * jax.random.normal(kc2, (1, output_size), jnp.float32)
    return params, wc, bc


# -------------------------- pure-JAX reference -----------------------------

def ref_forward(x, params, wc, bc, kernel_size):
    B, T, _ = x.shape
    h = x
    for pr in params:
        d = pr["dilation"]

        def cc(inp, w, b):
            acc = jnp.zeros(inp.shape[:2] + (w.shape[2],), jnp.float32) + b
            for k in range(kernel_size):
                s = (kernel_size - 1 - k) * d
                xs = jnp.pad(inp, ((0, 0), (s, 0), (0, 0)))[:, :T, :]
                acc = acc + jnp.einsum('btc,co->bto', xs, w[k])
            return acc

        h1 = jax.nn.relu(cc(h, pr["w1"], pr["b1"]))
        h2 = jax.nn.relu(cc(h1, pr["w2"], pr["b2"]))
        if pr["wd"] is not None:
            res = jnp.einsum('btc,co->bto', h, pr["wd"]) + pr["bd"]
        else:
            res = h
        h = jax.nn.relu(h2 + res)
    return h[:, -1, :] @ wc + bc


# --------------------------------- main -------------------------------------

if __name__ == "__main__":
    B, T = 16, 16
    input_size, output_size = 8, 4
    num_channels = (8, 16, 8)   # last entry must equal input_size (class_layer)
    kernel_size = 3

    key = jax.random.PRNGKey(0)
    kx, kp = jax.random.split(key)
    x = jax.random.normal(kx, (B, T, input_size), jnp.float32)

    params, wc, bc = init_tcn_params(kp, input_size, output_size,
                                     num_channels, kernel_size)

    out = jax.block_until_ready(
        tcn_forward(x, params, wc, bc, kernel_size,
                    compute_dtype=jnp.bfloat16))
    ref = ref_forward(x, params, wc, bc, kernel_size)

    assert out.shape == (B, output_size)
    err = jnp.max(jnp.abs(out - ref))
    # bf16 matmul operands with f32 accumulation -> loosened tolerance.
    assert jnp.allclose(out, ref, atol=2e-3, rtol=2e-2), \
        f"mismatch: max abs err {err}"
    print("KERNEL_OK")
</pallas_src>

<mosaic_0001>
module attributes {stable_mosaic.version = 11 : i64} {
  func.func @kernel(%arg0: i32, %arg1: memref<1x16x128xbf16, #tpu.memory_space<vmem>>, %arg2: memref<128x384xbf16, #tpu.memory_space<vmem>>, %arg3: memref<1x128xf32, #tpu.memory_space<vmem>>, %arg4: memref<128x384xbf16, #tpu.memory_space<vmem>>, %arg5: memref<1x128xf32, #tpu.memory_space<vmem>>, %arg6: memref<128x384xbf16, #tpu.memory_space<vmem>>, %arg7: memref<1x128xf32, #tpu.memory_space<vmem>>, %arg8: memref<128x384xbf16, #tpu.memory_space<vmem>>, %arg9: memref<1x128xf32, #tpu.memory_space<vmem>>, %arg10: memref<128x128xbf16, #tpu.memory_space<vmem>>, %arg11: memref<1x128xf32, #tpu.memory_space<vmem>>, %arg12: memref<128x384xbf16, #tpu.memory_space<vmem>>, %arg13: memref<1x128xf32, #tpu.memory_space<vmem>>, %arg14: memref<128x384xbf16, #tpu.memory_space<vmem>>, %arg15: memref<1x128xf32, #tpu.memory_space<vmem>>, %arg16: memref<128x128xbf16, #tpu.memory_space<vmem>>, %arg17: memref<1x128xf32, #tpu.memory_space<vmem>>, %arg18: memref<128x128xbf16, #tpu.memory_space<vmem>>, %arg19: memref<1x128xf32, #tpu.memory_space<vmem>>, %arg20: memref<1x1x128xf32, #tpu.memory_space<vmem>>) attributes {dimension_semantics = [#tpu.dimension_semantics<parallel>], iteration_bounds = array<i64: 2>, scalar_prefetch = 0 : i64, scratch_operands = 0 : i64, tpu.core_type = #tpu.core_type<tc>, window_params = [{transform_indices = @transform_0, window_bounds = array<i64: 1, 16, 128>}, {pipeline_mode = #tpu.pipeline_mode<synchronous>, transform_indices = @transform_1, window_bounds = array<i64: 128, 384>}, {pipeline_mode = #tpu.pipeline_mode<synchronous>, transform_indices = @transform_2, window_bounds = array<i64: 1, 128>}, {pipeline_mode = #tpu.pipeline_mode<synchronous>, transform_indices = @transform_3, window_bounds = array<i64: 128, 384>}, {pipeline_mode = #tpu.pipeline_mode<synchronous>, transform_indices = @transform_4, window_bounds = array<i64: 1, 128>}, {pipeline_mode = #tpu.pipeline_mode<synchronous>, transform_indices = @transform_5, window_bounds = array<i64: 128, 384>}, {pipeline_mode = #tpu.pipeline_mode<synchronous>, transform_indices = @transform_6, window_bounds = array<i64: 1, 128>}, {pipeline_mode = #tpu.pipeline_mode<synchronous>, transform_indices = @transform_7, window_bounds = array<i64: 128, 384>}, {pipeline_mode = #tpu.pipeline_mode<synchronous>, transform_indices = @transform_8, window_bounds = array<i64: 1, 128>}, {pipeline_mode = #tpu.pipeline_mode<synchronous>, transform_indices = @transform_9, window_bounds = array<i64: 128, 128>}, {pipeline_mode = #tpu.pipeline_mode<synchronous>, transform_indices = @transform_10, window_bounds = array<i64: 1, 128>}, {pipeline_mode = #tpu.pipeline_mode<synchronous>, transform_indices = @transform_11, window_bounds = array<i64: 128, 384>}, {pipeline_mode = #tpu.pipeline_mode<synchronous>, transform_indices = @transform_12, window_bounds = array<i64: 1, 128>}, {pipeline_mode = #tpu.pipeline_mode<synchronous>, transform_indices = @transform_13, window_bounds = array<i64: 128, 384>}, {pipeline_mode = #tpu.pipeline_mode<synchronous>, transform_indices = @transform_14, window_bounds = array<i64: 1, 128>}, {pipeline_mode = #tpu.pipeline_mode<synchronous>, transform_indices = @transform_15, window_bounds = array<i64: 128, 128>}, {pipeline_mode = #tpu.pipeline_mode<synchronous>, transform_indices = @transform_16, window_bounds = array<i64: 1, 128>}, {pipeline_mode = #tpu.pipeline_mode<synchronous>, transform_indices = @transform_17, window_bounds = array<i64: 128, 128>}, {pipeline_mode = #tpu.pipeline_mode<synchronous>, transform_indices = @transform_18, window_bounds = array<i64: 1, 128>}, {transform_indices = @transform_19, window_bounds = array<i64: 1, 1, 128>}]} {
    %0 = tpu.iota {dimensions = array<i32: 1>} : vector<1x16x128xi32>
    %c0 = arith.constant 0 : index
    %c0_0 = arith.constant 0 : index
    %c0_1 = arith.constant 0 : index
    %1 = vector.load %arg1[%c0, %c0_0, %c0_1] : memref<1x16x128xbf16, #tpu.memory_space<vmem>>, vector<1x16x128xbf16>
    %2 = arith.extf %1 : vector<1x16x128xbf16> to vector<1x16x128xf32>
    %3 = vector.shape_cast %2 : vector<1x16x128xf32> to vector<16x128xf32>
    %4 = arith.truncf %3 : vector<16x128xf32> to vector<16x128xbf16>
    %c0_2 = arith.constant 0 : index
    %c0_3 = arith.constant 0 : index
    %5 = vector.load %arg2[%c0_2, %c0_3] : memref<128x384xbf16, #tpu.memory_space<vmem>>, vector<128x384xbf16>
    %cst = arith.constant dense<0.000000e+00> : vector<16x384xf32>
    %6 = tpu.matmul %4, %5, %cst {dimension_numbers = #tpu.dot_dimension_numbers<[1], [0], [0], [1], [0, 0, 1, 1], [], []>} : vector<16x128xbf16>, vector<128x384xbf16>, vector<16x384xf32> -> vector<16x384xf32>
    %7 = vector.shape_cast %6 : vector<16x384xf32> to vector<1x16x384xf32>
    %8 = vector.extract_strided_slice %7 {offsets = [0, 0, 0], sizes = [1, 16, 128], strides = [1, 1, 1]} : vector<1x16x384xf32> to vector<1x16x128xf32>
    %c2_i32 = arith.constant 2 : i32
    %9 = tpu.dynamic_rotate %8 by %c2_i32 dim 1 : vector<1x16x128xf32>, i32 -> vector<1x16x128xf32>
    %c2_i32_4 = arith.constant 2 : i32
    %10 = vector.broadcast %c2_i32_4 : i32 to vector<1x16x128xi32>
    %11 = arith.cmpi sge, %0, %10 : vector<1x16x128xi32>
    %cst_5 = arith.constant 0.000000e+00 : f32
    %12 = vector.broadcast %cst_5 : f32 to vector<1x16x128xf32>
    %13 = arith.select %11, %9, %12 : vector<1x16x128xi1>, vector<1x16x128xf32>
    %14 = vector.extract_strided_slice %7 {offsets = [0, 0, 128], sizes = [1, 16, 128], strides = [1, 1, 1]} : vector<1x16x384xf32> to vector<1x16x128xf32>
    %c1_i32 = arith.constant 1 : i32
    %15 = tpu.dynamic_rotate %14 by %c1_i32 dim 1 : vector<1x16x128xf32>, i32 -> vector<1x16x128xf32>
    %c1_i32_6 = arith.constant 1 : i32
    %16 = vector.broadcast %c1_i32_6 : i32 to vector<1x16x128xi32>
    %17 = arith.cmpi sge, %0, %16 : vector<1x16x128xi32>
    %cst_7 = arith.constant 0.000000e+00 : f32
    %18 = vector.broadcast %cst_7 : f32 to vector<1x16x128xf32>
    %19 = arith.select %17, %15, %18 : vector<1x16x128xi1>, vector<1x16x128xf32>
    %20 = arith.addf %13, %19 : vector<1x16x128xf32>
    %21 = vector.extract_strided_slice %7 {offsets = [0, 0, 256], sizes = [1, 16, 128], strides = [1, 1, 1]} : vector<1x16x384xf32> to vector<1x16x128xf32>
    %22 = arith.addf %20, %21 : vector<1x16x128xf32>
    %c0_8 = arith.constant 0 : index
    %c0_9 = arith.constant 0 : index
    %23 = vector.load %arg3[%c0_8, %c0_9] : memref<1x128xf32, #tpu.memory_space<vmem>>, vector<1x128xf32>
    %24 = vector.shape_cast %23 : vector<1x128xf32> to vector<1x1x128xf32>
    %25 = vector.broadcast %24 : vector<1x1x128xf32> to vector<1x16x128xf32>
    %26 = arith.addf %22, %25 : vector<1x16x128xf32>
    %cst_10 = arith.constant 0.000000e+00 : f32
    %27 = vector.broadcast %cst_10 : f32 to vector<1x16x128xf32>
    %28 = arith.maximumf %26, %27 : vector<1x16x128xf32>
    %29 = vector.shape_cast %28 : vector<1x16x128xf32> to vector<16x128xf32>
    %30 = arith.truncf %29 : vector<16x128xf32> to vector<16x128xbf16>
    %c0_11 = arith.constant 0 : index
    %c0_12 = arith.constant 0 : index
    %31 = vector.load %arg4[%c0_11, %c0_12] : memref<128x384xbf16, #tpu.memory_space<vmem>>, vector<128x384xbf16>
    %cst_13 = arith.constant dense<0.000000e+00> : vector<16x384xf32>
    %32 = tpu.matmul %30, %31, %cst_13 {dimension_numbers = #tpu.dot_dimension_numbers<[1], [0], [0], [1], [0, 0, 1, 1], [], []>} : vector<16x128xbf16>, vector<128x384xbf16>, vector<16x384xf32> -> vector<16x384xf32>
    %33 = vector.shape_cast %32 : vector<16x384xf32> to vector<1x16x384xf32>
    %34 = vector.extract_strided_slice %33 {offsets = [0, 0, 0], sizes = [1, 16, 128], strides = [1, 1, 1]} : vector<1x16x384xf32> to vector<1x16x128xf32>
    %c2_i32_14 = arith.constant 2 : i32
    %35 = tpu.dynamic_rotate %34 by %c2_i32_14 dim 1 : vector<1x16x128xf32>, i32 -> vector<1x16x128xf32>
    %c2_i32_15 = arith.constant 2 : i32
    %36 = vector.broadcast %c2_i32_15 : i32 to vector<1x16x128xi32>
    %37 = arith.cmpi sge, %0, %36 : vector<1x16x128xi32>
    %cst_16 = arith.constant 0.000000e+00 : f32
    %38 = vector.broadcast %cst_16 : f32 to vector<1x16x128xf32>
    %39 = arith.select %37, %35, %38 : vector<1x16x128xi1>, vector<1x16x128xf32>
    %40 = vector.extract_strided_slice %33 {offsets = [0, 0, 128], sizes = [1, 16, 128], strides = [1, 1, 1]} : vector<1x16x384xf32> to vector<1x16x128xf32>
    %c1_i32_17 = arith.constant 1 : i32
    %41 = tpu.dynamic_rotate %40 by %c1_i32_17 dim 1 : vector<1x16x128xf32>, i32 -> vector<1x16x128xf32>
    %c1_i32_18 = arith.constant 1 : i32
    %42 = vector.broadcast %c1_i32_18 : i32 to vector<1x16x128xi32>
    %43 = arith.cmpi sge, %0, %42 : vector<1x16x128xi32>
    %cst_19 = arith.constant 0.000000e+00 : f32
    %44 = vector.broadcast %cst_19 : f32 to vector<1x16x128xf32>
    %45 = arith.select %43, %41, %44 : vector<1x16x128xi1>, vector<1x16x128xf32>
    %46 = arith.addf %39, %45 : vector<1x16x128xf32>
    %47 = vector.extract_strided_slice %33 {offsets = [0, 0, 256], sizes = [1, 16, 128], strides = [1, 1, 1]} : vector<1x16x384xf32> to vector<1x16x128xf32>
    %48 = arith.addf %46, %47 : vector<1x16x128xf32>
    %c0_20 = arith.constant 0 : index
    %c0_21 = arith.constant 0 : index
    %49 = vector.load %arg5[%c0_20, %c0_21] : memref<1x128xf32, #tpu.memory_space<vmem>>, vector<1x128xf32>
    %50 = vector.shape_cast %49 : vector<1x128xf32> to vector<1x1x128xf32>
    %51 = vector.broadcast %50 : vector<1x1x128xf32> to vector<1x16x128xf32>
    %52 = arith.addf %48, %51 : vector<1x16x128xf32>
    %cst_22 = arith.constant 0.000000e+00 : f32
    %53 = vector.broadcast %cst_22 : f32 to vector<1x16x128xf32>
    %54 = arith.maximumf %52, %53 : vector<1x16x128xf32>
    %55 = arith.addf %54, %2 : vector<1x16x128xf32>
    %cst_23 = arith.constant 0.000000e+00 : f32
    %56 = vector.broadcast %cst_23 : f32 to vector<1x16x128xf32>
    %57 = arith.maximumf %55, %56 : vector<1x16x128xf32>
    %58 = vector.shape_cast %57 : vector<1x16x128xf32> to vector<16x128xf32>
    %59 = arith.truncf %58 : vector<16x128xf32> to vector<16x128xbf16>
    %c0_24 = arith.constant 0 : index
    %c0_25 = arith.constant 0 : index
    %60 = vector.load %arg6[%c0_24, %c0_25] : memref<128x384xbf16, #tpu.memory_space<vmem>>, vector<128x384xbf16>
    %cst_26 = arith.constant dense<0.000000e+00> : vector<16x384xf32>
    %61 = tpu.matmul %59, %60, %cst_26 {dimension_numbers = #tpu.dot_dimension_numbers<[1], [0], [0], [1], [0, 0, 1, 1], [], []>} : vector<16x128xbf16>, vector<128x384xbf16>, vector<16x384xf32> -> vector<16x384xf32>
    %62 = vector.shape_cast %61 : vector<16x384xf32> to vector<1x16x384xf32>
    %63 = vector.extract_strided_slice %62 {offsets = [0, 0, 0], sizes = [1, 16, 128], strides = [1, 1, 1]} : vector<1x16x384xf32> to vector<1x16x128xf32>
    %c4_i32 = arith.constant 4 : i32
    %64 = tpu.dynamic_rotate %63 by %c4_i32 dim 1 : vector<1x16x128xf32>, i32 -> vector<1x16x128xf32>
    %c4_i32_27 = arith.constant 4 : i32
    %65 = vector.broadcast %c4_i32_27 : i32 to vector<1x16x128xi32>
    %66 = arith.cmpi sge, %0, %65 : vector<1x16x128xi32>
    %cst_28 = arith.constant 0.000000e+00 : f32
    %67 = vector.broadcast %cst_28 : f32 to vector<1x16x128xf32>
    %68 = arith.select %66, %64, %67 : vector<1x16x128xi1>, vector<1x16x128xf32>
    %69 = vector.extract_strided_slice %62 {offsets = [0, 0, 128], sizes = [1, 16, 128], strides = [1, 1, 1]} : vector<1x16x384xf32> to vector<1x16x128xf32>
    %c2_i32_29 = arith.constant 2 : i32
    %70 = tpu.dynamic_rotate %69 by %c2_i32_29 dim 1 : vector<1x16x128xf32>, i32 -> vector<1x16x128xf32>
    %c2_i32_30 = arith.constant 2 : i32
    %71 = vector.broadcast %c2_i32_30 : i32 to vector<1x16x128xi32>
    %72 = arith.cmpi sge, %0, %71 : vector<1x16x128xi32>
    %cst_31 = arith.constant 0.000000e+00 : f32
    %73 = vector.broadcast %cst_31 : f32 to vector<1x16x128xf32>
    %74 = arith.select %72, %70, %73 : vector<1x16x128xi1>, vector<1x16x128xf32>
    %75 = arith.addf %68, %74 : vector<1x16x128xf32>
    %76 = vector.extract_strided_slice %62 {offsets = [0, 0, 256], sizes = [1, 16, 128], strides = [1, 1, 1]} : vector<1x16x384xf32> to vector<1x16x128xf32>
    %77 = arith.addf %75, %76 : vector<1x16x128xf32>
    %c0_32 = arith.constant 0 : index
    %c0_33 = arith.constant 0 : index
    %78 = vector.load %arg7[%c0_32, %c0_33] : memref<1x128xf32, #tpu.memory_space<vmem>>, vector<1x128xf32>
    %79 = vector.shape_cast %78 : vector<1x128xf32> to vector<1x1x128xf32>
    %80 = vector.broadcast %79 : vector<1x1x128xf32> to vector<1x16x128xf32>
    %81 = arith.addf %77, %80 : vector<1x16x128xf32>
    %cst_34 = arith.constant 0.000000e+00 : f32
    %82 = vector.broadcast %cst_34 : f32 to vector<1x16x128xf32>
    %83 = arith.maximumf %81, %82 : vector<1x16x128xf32>
    %84 = vector.shape_cast %83 : vector<1x16x128xf32> to vector<16x128xf32>
    %85 = arith.truncf %84 : vector<16x128xf32> to vector<16x128xbf16>
    %c0_35 = arith.constant 0 : index
    %c0_36 = arith.constant 0 : index
    %86 = vector.load %arg8[%c0_35, %c0_36] : memref<128x384xbf16, #tpu.memory_space<vmem>>, vector<128x384xbf16>
    %cst_37 = arith.constant dense<0.000000e+00> : vector<16x384xf32>
    %87 = tpu.matmul %85, %86, %cst_37 {dimension_numbers = #tpu.dot_dimension_numbers<[1], [0], [0], [1], [0, 0, 1, 1], [], []>} : vector<16x128xbf16>, vector<128x384xbf16>, vector<16x384xf32> -> vector<16x384xf32>
    %88 = vector.shape_cast %87 : vector<16x384xf32> to vector<1x16x384xf32>
    %89 = vector.extract_strided_slice %88 {offsets = [0, 0, 0], sizes = [1, 16, 128], strides = [1, 1, 1]} : vector<1x16x384xf32> to vector<1x16x128xf32>
    %c4_i32_38 = arith.constant 4 : i32
    %90 = tpu.dynamic_rotate %89 by %c4_i32_38 dim 1 : vector<1x16x128xf32>, i32 -> vector<1x16x128xf32>
    %c4_i32_39 = arith.constant 4 : i32
    %91 = vector.broadcast %c4_i32_39 : i32 to vector<1x16x128xi32>
    %92 = arith.cmpi sge, %0, %91 : vector<1x16x128xi32>
    %cst_40 = arith.constant 0.000000e+00 : f32
    %93 = vector.broadcast %cst_40 : f32 to vector<1x16x128xf32>
    %94 = arith.select %92, %90, %93 : vector<1x16x128xi1>, vector<1x16x128xf32>
    %95 = vector.extract_strided_slice %88 {offsets = [0, 0, 128], sizes = [1, 16, 128], strides = [1, 1, 1]} : vector<1x16x384xf32> to vector<1x16x128xf32>
    %c2_i32_41 = arith.constant 2 : i32
    %96 = tpu.dynamic_rotate %95 by %c2_i32_41 dim 1 : vector<1x16x128xf32>, i32 -> vector<1x16x128xf32>
    %c2_i32_42 = arith.constant 2 : i32
    %97 = vector.broadcast %c2_i32_42 : i32 to vector<1x16x128xi32>
    %98 = arith.cmpi sge, %0, %97 : vector<1x16x128xi32>
    %cst_43 = arith.constant 0.000000e+00 : f32
    %99 = vector.broadcast %cst_43 : f32 to vector<1x16x128xf32>
    %100 = arith.select %98, %96, %99 : vector<1x16x128xi1>, vector<1x16x128xf32>
    %101 = arith.addf %94, %100 : vector<1x16x128xf32>
    %102 = vector.extract_strided_slice %88 {offsets = [0, 0, 256], sizes = [1, 16, 128], strides = [1, 1, 1]} : vector<1x16x384xf32> to vector<1x16x128xf32>
    %103 = arith.addf %101, %102 : vector<1x16x128xf32>
    %c0_44 = arith.constant 0 : index
    %c0_45 = arith.constant 0 : index
    %104 = vector.load %arg9[%c0_44, %c0_45] : memref<1x128xf32, #tpu.memory_space<vmem>>, vector<1x128xf32>
    %105 = vector.shape_cast %104 : vector<1x128xf32> to vector<1x1x128xf32>
    %106 = vector.broadcast %105 : vector<1x1x128xf32> to vector<1x16x128xf32>
    %107 = arith.addf %103, %106 : vector<1x16x128xf32>
    %cst_46 = arith.constant 0.000000e+00 : f32
    %108 = vector.broadcast %cst_46 : f32 to vector<1x16x128xf32>
    %109 = arith.maximumf %107, %108 : vector<1x16x128xf32>
    %110 = vector.shape_cast %57 : vector<1x16x128xf32> to vector<16x128xf32>
    %111 = arith.truncf %110 : vector<16x128xf32> to vector<16x128xbf16>
    %c0_47 = arith.constant 0 : index
    %c0_48 = arith.constant 0 : index
    %112 = vector.load %arg10[%c0_47, %c0_48] : memref<128x128xbf16, #tpu.memory_space<vmem>>, vector<128x128xbf16>
    %cst_49 = arith.constant dense<0.000000e+00> : vector<16x128xf32>
    %113 = tpu.matmul %111, %112, %cst_49 {dimension_numbers = #tpu.dot_dimension_numbers<[1], [0], [0], [1], [0, 0, 1, 1], [], []>} : vector<16x128xbf16>, vector<128x128xbf16>, vector<16x128xf32> -> vector<16x128xf32>
    %c0_50 = arith.constant 0 : index
    %c0_51 = arith.constant 0 : index
    %114 = vector.load %arg11[%c0_50, %c0_51] : memref<1x128xf32, #tpu.memory_space<vmem>>, vector<1x128xf32>
    %115 = vector.broadcast %114 : vector<1x128xf32> to vector<16x128xf32>
    %116 = arith.addf %113, %115 : vector<16x128xf32>
    %117 = vector.shape_cast %116 : vector<16x128xf32> to vector<1x16x128xf32>
    %118 = arith.addf %109, %117 : vector<1x16x128xf32>
    %cst_52 = arith.constant 0.000000e+00 : f32
    %119 = vector.broadcast %cst_52 : f32 to vector<1x16x128xf32>
    %120 = arith.maximumf %118, %119 : vector<1x16x128xf32>
    %121 = vector.shape_cast %120 : vector<1x16x128xf32> to vector<16x128xf32>
    %122 = arith.truncf %121 : vector<16x128xf32> to vector<16x128xbf16>
    %c0_53 = arith.constant 0 : index
    %c0_54 = arith.constant 0 : index
    %123 = vector.load %arg12[%c0_53, %c0_54] : memref<128x384xbf16, #tpu.memory_space<vmem>>, vector<128x384xbf16>
    %cst_55 = arith.constant dense<0.000000e+00> : vector<16x384xf32>
    %124 = tpu.matmul %122, %123, %cst_55 {dimension_numbers = #tpu.dot_dimension_numbers<[1], [0], [0], [1], [0, 0, 1, 1], [], []>} : vector<16x128xbf16>, vector<128x384xbf16>, vector<16x384xf32> -> vector<16x384xf32>
    %125 = vector.shape_cast %124 : vector<16x384xf32> to vector<1x16x384xf32>
    %126 = vector.extract_strided_slice %125 {offsets = [0, 0, 0], sizes = [1, 16, 128], strides = [1, 1, 1]} : vector<1x16x384xf32> to vector<1x16x128xf32>
    %c8_i32 = arith.constant 8 : i32
    %127 = tpu.dynamic_rotate %126 by %c8_i32 dim 1 : vector<1x16x128xf32>, i32 -> vector<1x16x128xf32>
    %c8_i32_56 = arith.constant 8 : i32
    %128 = vector.broadcast %c8_i32_56 : i32 to vector<1x16x128xi32>
    %129 = arith.cmpi sge, %0, %128 : vector<1x16x128xi32>
    %cst_57 = arith.constant 0.000000e+00 : f32
    %130 = vector.broadcast %cst_57 : f32 to vector<1x16x128xf32>
    %131 = arith.select %129, %127, %130 : vector<1x16x128xi1>, vector<1x16x128xf32>
    %132 = vector.extract_strided_slice %125 {offsets = [0, 0, 128], sizes = [1, 16, 128], strides = [1, 1, 1]} : vector<1x16x384xf32> to vector<1x16x128xf32>
    %c4_i32_58 = arith.constant 4 : i32
    %133 = tpu.dynamic_rotate %132 by %c4_i32_58 dim 1 : vector<1x16x128xf32>, i32 -> vector<1x16x128xf32>
    %c4_i32_59 = arith.constant 4 : i32
    %134 = vector.broadcast %c4_i32_59 : i32 to vector<1x16x128xi32>
    %135 = arith.cmpi sge, %0, %134 : vector<1x16x128xi32>
    %cst_60 = arith.constant 0.000000e+00 : f32
    %136 = vector.broadcast %cst_60 : f32 to vector<1x16x128xf32>
    %137 = arith.select %135, %133, %136 : vector<1x16x128xi1>, vector<1x16x128xf32>
    %138 = arith.addf %131, %137 : vector<1x16x128xf32>
    %139 = vector.extract_strided_slice %125 {offsets = [0, 0, 256], sizes = [1, 16, 128], strides = [1, 1, 1]} : vector<1x16x384xf32> to vector<1x16x128xf32>
    %140 = arith.addf %138, %139 : vector<1x16x128xf32>
    %c0_61 = arith.constant 0 : index
    %c0_62 = arith.constant 0 : index
    %141 = vector.load %arg13[%c0_61, %c0_62] : memref<1x128xf32, #tpu.memory_space<vmem>>, vector<1x128xf32>
    %142 = vector.shape_cast %141 : vector<1x128xf32> to vector<1x1x128xf32>
    %143 = vector.broadcast %142 : vector<1x1x128xf32> to vector<1x16x128xf32>
    %144 = arith.addf %140, %143 : vector<1x16x128xf32>
    %cst_63 = arith.constant 0.000000e+00 : f32
    %145 = vector.broadcast %cst_63 : f32 to vector<1x16x128xf32>
    %146 = arith.maximumf %144, %145 : vector<1x16x128xf32>
    %cst_64 = arith.constant 0.000000e+00 : f32
    %147 = vector.broadcast %cst_64 : f32 to vector<1x128xf32>
    %c0_65 = arith.constant 0 : index
    %c0_66 = arith.constant 0 : index
    %148 = vector.load %arg15[%c0_65, %c0_66] : memref<1x128xf32, #tpu.memory_space<vmem>>, vector<1x128xf32>
    %149 = arith.addf %147, %148 : vector<1x128xf32>
    %150 = vector.extract_strided_slice %146 {offsets = [0, 7, 0], sizes = [1, 1, 128], strides = [1, 1, 1]} : vector<1x16x128xf32> to vector<1x1x128xf32>
    %151 = vector.shape_cast %150 : vector<1x1x128xf32> to vector<1x128xf32>
    %152 = arith.truncf %151 : vector<1x128xf32> to vector<1x128xbf16>
    %c0_67 = arith.constant 0 : index
    %c0_68 = arith.constant 0 : index
    %153 = vector.load %arg14[%c0_67, %c0_68] : memref<128x384xbf16, #tpu.memory_space<vmem>>, vector<128x128xbf16>
    %cst_69 = arith.constant dense<0.000000e+00> : vector<1x128xf32>
    %154 = tpu.matmul %152, %153, %cst_69 {dimension_numbers = #tpu.dot_dimension_numbers<[1], [0], [0], [1], [0, 0, 1, 1], [], []>} : vector<1x128xbf16>, vector<128x128xbf16>, vector<1x128xf32> -> vector<1x128xf32>
    %155 = arith.addf %149, %154 : vector<1x128xf32>
    %156 = vector.extract_strided_slice %146 {offsets = [0, 11, 0], sizes = [1, 1, 128], strides = [1, 1, 1]} : vector<1x16x128xf32> to vector<1x1x128xf32>
    %157 = vector.shape_cast %156 : vector<1x1x128xf32> to vector<1x128xf32>
    %158 = arith.truncf %157 : vector<1x128xf32> to vector<1x128xbf16>
    %c0_70 = arith.constant 0 : index
    %c128 = arith.constant 128 : index
    %159 = vector.load %arg14[%c0_70, %c128] : memref<128x384xbf16, #tpu.memory_space<vmem>>, vector<128x128xbf16>
    %cst_71 = arith.constant dense<0.000000e+00> : vector<1x128xf32>
    %160 = tpu.matmul %158, %159, %cst_71 {dimension_numbers = #tpu.dot_dimension_numbers<[1], [0], [0], [1], [0, 0, 1, 1], [], []>} : vector<1x128xbf16>, vector<128x128xbf16>, vector<1x128xf32> -> vector<1x128xf32>
    %161 = arith.addf %155, %160 : vector<1x128xf32>
    %162 = vector.extract_strided_slice %146 {offsets = [0, 15, 0], sizes = [1, 1, 128], strides = [1, 1, 1]} : vector<1x16x128xf32> to vector<1x1x128xf32>
    %163 = vector.shape_cast %162 : vector<1x1x128xf32> to vector<1x128xf32>
    %164 = arith.truncf %163 : vector<1x128xf32> to vector<1x128xbf16>
    %c0_72 = arith.constant 0 : index
    %c256 = arith.constant 256 : index
    %165 = vector.load %arg14[%c0_72, %c256] : memref<128x384xbf16, #tpu.memory_space<vmem>>, vector<128x128xbf16>
    %cst_73 = arith.constant dense<0.000000e+00> : vector<1x128xf32>
    %166 = tpu.matmul %164, %165, %cst_73 {dimension_numbers = #tpu.dot_dimension_numbers<[1], [0], [0], [1], [0, 0, 1, 1], [], []>} : vector<1x128xbf16>, vector<128x128xbf16>, vector<1x128xf32> -> vector<1x128xf32>
    %167 = arith.addf %161, %166 : vector<1x128xf32>
    %cst_74 = arith.constant 0.000000e+00 : f32
    %168 = vector.broadcast %cst_74 : f32 to vector<1x128xf32>
    %169 = arith.maximumf %167, %168 : vector<1x128xf32>
    %170 = vector.extract_strided_slice %120 {offsets = [0, 15, 0], sizes = [1, 1, 128], strides = [1, 1, 1]} : vector<1x16x128xf32> to vector<1x1x128xf32>
    %171 = vector.shape_cast %170 : vector<1x1x128xf32> to vector<1x128xf32>
    %172 = arith.truncf %171 : vector<1x128xf32> to vector<1x128xbf16>
    %c0_75 = arith.constant 0 : index
    %c0_76 = arith.constant 0 : index
    %173 = vector.load %arg16[%c0_75, %c0_76] : memref<128x128xbf16, #tpu.memory_space<vmem>>, vector<128x128xbf16>
    %cst_77 = arith.constant dense<0.000000e+00> : vector<1x128xf32>
    %174 = tpu.matmul %172, %173, %cst_77 {dimension_numbers = #tpu.dot_dimension_numbers<[1], [0], [0], [1], [0, 0, 1, 1], [], []>} : vector<1x128xbf16>, vector<128x128xbf16>, vector<1x128xf32> -> vector<1x128xf32>
    %c0_78 = arith.constant 0 : index
    %c0_79 = arith.constant 0 : index
    %175 = vector.load %arg17[%c0_78, %c0_79] : memref<1x128xf32, #tpu.memory_space<vmem>>, vector<1x128xf32>
    %176 = arith.addf %174, %175 : vector<1x128xf32>
    %177 = arith.addf %169, %176 : vector<1x128xf32>
    %cst_80 = arith.constant 0.000000e+00 : f32
    %178 = vector.broadcast %cst_80 : f32 to vector<1x128xf32>
    %179 = arith.maximumf %177, %178 : vector<1x128xf32>
    %180 = arith.truncf %179 : vector<1x128xf32> to vector<1x128xbf16>
    %c0_81 = arith.constant 0 : index
    %c0_82 = arith.constant 0 : index
    %181 = vector.load %arg18[%c0_81, %c0_82] : memref<128x128xbf16, #tpu.memory_space<vmem>>, vector<128x128xbf16>
    %cst_83 = arith.constant dense<0.000000e+00> : vector<1x128xf32>
    %182 = tpu.matmul %180, %181, %cst_83 {dimension_numbers = #tpu.dot_dimension_numbers<[1], [0], [0], [1], [0, 0, 1, 1], [], []>} : vector<1x128xbf16>, vector<128x128xbf16>, vector<1x128xf32> -> vector<1x128xf32>
    %c0_84 = arith.constant 0 : index
    %c0_85 = arith.constant 0 : index
    %183 = vector.load %arg19[%c0_84, %c0_85] : memref<1x128xf32, #tpu.memory_space<vmem>>, vector<1x128xf32>
    %184 = arith.addf %182, %183 : vector<1x128xf32>
    %185 = vector.shape_cast %184 : vector<1x128xf32> to vector<1x1x128xf32>
    %c0_86 = arith.constant 0 : index
    %c0_87 = arith.constant 0 : index
    %c0_88 = arith.constant 0 : index
    %186 = vector.load %arg20[%c0_86, %c0_87, %c0_88] : memref<1x1x128xf32, #tpu.memory_space<vmem>>, vector<1x1x128xf32>
    tpu.vector_store %arg20[%c0_86, %c0_87, %c0_88], %185 {strides = array<i32>} : memref<1x1x128xf32, #tpu.memory_space<vmem>>, vector<1x1x128xf32>,
    return
  }
  func.func @transform_0(%arg0: i32) -> (i32, i32, i32) {
    %c0_i32 = arith.constant 0 : i32
    %c0_i32_0 = arith.constant 0 : i32
    %c0_i32_1 = arith.constant 0 : i32
    return %arg0, %c0_i32, %c0_i32_0 : i32, i32, i32
  }
  func.func @transform_1(%arg0: i32) -> (i32, i32) {
    %c0_i32 = arith.constant 0 : i32
    %c0_i32_0 = arith.constant 0 : i32
    %c0_i32_1 = arith.constant 0 : i32
    return %c0_i32, %c0_i32_0 : i32, i32
  }
  func.func @transform_2(%arg0: i32) -> (i32, i32) {
    %c0_i32 = arith.constant 0 : i32
    %c0_i32_0 = arith.constant 0 : i32
    %c0_i32_1 = arith.constant 0 : i32
    return %c0_i32, %c0_i32_0 : i32, i32
  }
  func.func @transform_3(%arg0: i32) -> (i32, i32) {
    %c0_i32 = arith.constant 0 : i32
    %c0_i32_0 = arith.constant 0 : i32
    %c0_i32_1 = arith.constant 0 : i32
    return %c0_i32, %c0_i32_0 : i32, i32
  }
  func.func @transform_4(%arg0: i32) -> (i32, i32) {
    %c0_i32 = arith.constant 0 : i32
    %c0_i32_0 = arith.constant 0 : i32
    %c0_i32_1 = arith.constant 0 : i32
    return %c0_i32, %c0_i32_0 : i32, i32
  }
  func.func @transform_5(%arg0: i32) -> (i32, i32) {
    %c0_i32 = arith.constant 0 : i32
    %c0_i32_0 = arith.constant 0 : i32
    %c0_i32_1 = arith.constant 0 : i32
    return %c0_i32, %c0_i32_0 : i32, i32
  }
  func.func @transform_6(%arg0: i32) -> (i32, i32) {
    %c0_i32 = arith.constant 0 : i32
    %c0_i32_0 = arith.constant 0 : i32
    %c0_i32_1 = arith.constant 0 : i32
    return %c0_i32, %c0_i32_0 : i32, i32
  }
  func.func @transform_7(%arg0: i32) -> (i32, i32) {
    %c0_i32 = arith.constant 0 : i32
    %c0_i32_0 = arith.constant 0 : i32
    %c0_i32_1 = arith.constant 0 : i32
    return %c0_i32, %c0_i32_0 : i32, i32
  }
  func.func @transform_8(%arg0: i32) -> (i32, i32) {
    %c0_i32 = arith.constant 0 : i32
    %c0_i32_0 = arith.constant 0 : i32
    %c0_i32_1 = arith.constant 0 : i32
    return %c0_i32, %c0_i32_0 : i32, i32
  }
  func.func @transform_9(%arg0: i32) -> (i32, i32) {
    %c0_i32 = arith.constant 0 : i32
    %c0_i32_0 = arith.constant 0 : i32
    %c0_i32_1 = arith.constant 0 : i32
    return %c0_i32, %c0_i32_0 : i32, i32
  }
  func.func @transform_10(%arg0: i32) -> (i32, i32) {
    %c0_i32 = arith.constant 0 : i32
    %c0_i32_0 = arith.constant 0 : i32
    %c0_i32_1 = arith.constant 0 : i32
    return %c0_i32, %c0_i32_0 : i32, i32
  }
  func.func @transform_11(%arg0: i32) -> (i32, i32) {
    %c0_i32 = arith.constant 0 : i32
    %c0_i32_0 = arith.constant 0 : i32
    %c0_i32_1 = arith.constant 0 : i32
    return %c0_i32, %c0_i32_0 : i32, i32
  }
  func.func @transform_12(%arg0: i32) -> (i32, i32) {
    %c0_i32 = arith.constant 0 : i32
    %c0_i32_0 = arith.constant 0 : i32
    %c0_i32_1 = arith.constant 0 : i32
    return %c0_i32, %c0_i32_0 : i32, i32
  }
  func.func @transform_13(%arg0: i32) -> (i32, i32) {
    %c0_i32 = arith.constant 0 : i32
    %c0_i32_0 = arith.constant 0 : i32
    %c0_i32_1 = arith.constant 0 : i32
    return %c0_i32, %c0_i32_0 : i32, i32
  }
  func.func @transform_14(%arg0: i32) -> (i32, i32) {
    %c0_i32 = arith.constant 0 : i32
    %c0_i32_0 = arith.constant 0 : i32
    %c0_i32_1 = arith.constant 0 : i32
    return %c0_i32, %c0_i32_0 : i32, i32
  }
  func.func @transform_15(%arg0: i32) -> (i32, i32) {
    %c0_i32 = arith.constant 0 : i32
    %c0_i32_0 = arith.constant 0 : i32
    %c0_i32_1 = arith.constant 0 : i32
    return %c0_i32, %c0_i32_0 : i32, i32
  }
  func.func @transform_16(%arg0: i32) -> (i32, i32) {
    %c0_i32 = arith.constant 0 : i32
    %c0_i32_0 = arith.constant 0 : i32
    %c0_i32_1 = arith.constant 0 : i32
    return %c0_i32, %c0_i32_0 : i32, i32
  }
  func.func @transform_17(%arg0: i32) -> (i32, i32) {
    %c0_i32 = arith.constant 0 : i32
    %c0_i32_0 = arith.constant 0 : i32
    %c0_i32_1 = arith.constant 0 : i32
    return %c0_i32, %c0_i32_0 : i32, i32
  }
  func.func @transform_18(%arg0: i32) -> (i32, i32) {
    %c0_i32 = arith.constant 0 : i32
    %c0_i32_0 = arith.constant 0 : i32
    %c0_i32_1 = arith.constant 0 : i32
    return %c0_i32, %c0_i32_0 : i32, i32
  }
  func.func @transform_19(%arg0: i32) -> (i32, i32, i32) {
    %c0_i32 = arith.constant 0 : i32
    %c0_i32_0 = arith.constant 0 : i32
    %c0_i32_1 = arith.constant 0 : i32
    return %arg0, %c0_i32, %c0_i32_0 : i32, i32, i32
  }
}

</mosaic_0001>

<llo_original>
// kernel: tpu_custom_call.1
$region0: #{tpu_custom_call.1}
  #allocation0 [shape = 'u32[]', space=smem, size = 0x4, offset = 0x4, fixed_abs, tag = 'smem constant byte address 0x4 - core index']
  #allocation1 [shape = 'u32[144,128]{1,0:T(1,128)}', space=vmem, size = 0x12000, scoped, tag = 'internal scratch']
  %s0 = inlined_call_operand.hbm [shape: bf16[2,16,128], index: 0, kind: input, shape index: {}]
  %s1 = inlined_call_operand.hbm [shape: bf16[128,384], index: 1, kind: input, shape index: {}]
  %s2 = inlined_call_operand.vmem [shape: f32[1,128], index: 2, kind: input, shape index: {}]
  %s3 = inlined_call_operand.hbm [shape: bf16[128,384], index: 3, kind: input, shape index: {}]
  %s4 = inlined_call_operand.vmem [shape: f32[1,128], index: 4, kind: input, shape index: {}]
  %s5 = inlined_call_operand.hbm [shape: bf16[128,384], index: 5, kind: input, shape index: {}]
  %s6 = inlined_call_operand.vmem [shape: f32[1,128], index: 6, kind: input, shape index: {}]
  %s7 = inlined_call_operand.hbm [shape: bf16[128,384], index: 7, kind: input, shape index: {}]
  %s8 = inlined_call_operand.vmem [shape: f32[1,128], index: 8, kind: input, shape index: {}]
  %s9 = inlined_call_operand.hbm [shape: bf16[128,128], index: 9, kind: input, shape index: {}]
  %s10 = inlined_call_operand.vmem [shape: f32[1,128], index: 10, kind: input, shape index: {}]
  %s11 = inlined_call_operand.hbm [shape: bf16[128,384], index: 11, kind: input, shape index: {}]
  %s12 = inlined_call_operand.vmem [shape: f32[1,128], index: 12, kind: input, shape index: {}]
  %s13 = inlined_call_operand.hbm [shape: bf16[128,384], index: 13, kind: input, shape index: {}]
  %s14 = inlined_call_operand.vmem [shape: f32[1,128], index: 14, kind: input, shape index: {}]
  %s15 = inlined_call_operand.hbm [shape: bf16[128,128], index: 15, kind: input, shape index: {}]
  %s16 = inlined_call_operand.vmem [shape: f32[1,128], index: 16, kind: input, shape index: {}]
  %s17 = inlined_call_operand.hbm [shape: bf16[128,128], index: 17, kind: input, shape index: {}]
  %s18 = inlined_call_operand.vmem [shape: f32[1,128], index: 18, kind: input, shape index: {}]
  %s19 = inlined_call_operand.hbm [shape: f32[2,1,128], index: 19, kind: output, shape index: {}]
  %s20 = sld [smem:[#allocation0]]
  $region149: #{tpu_custom_call.1} parent=0
    _
  %s22 = ssub.s32 1, %s20
  %s23 = scalar_select 0, %s22, %s20
  $region1: #{tpu_custom_call.1} parent=0
    #allocation2 [shape = 'u8[8192]{0}', space=vmem, size = 0x2000, scoped, tag = 'input window, operand 0']
    #allocation3 [shape = 's32[2]{0}', space=sflag, size = 0x8, scoped, tag = 'scoped memory for tpu_custom_call.1']
    #allocation4 [shape = 's32[2]{0}', space=sflag, size = 0x8, scoped, tag = 'scoped memory for tpu_custom_call.1']
    #allocation5 [shape = 'u8[98304]{0}', space=vmem, size = 0x18000, scoped, tag = 'input window, operand 1, single buffered']
    #allocation6 [shape = 's32[1]{0}', space=sflag, size = 0x4, scoped, tag = 'scoped memory for tpu_custom_call.1']
    #allocation7 [shape = 'u8[98304]{0}', space=vmem, size = 0x18000, scoped, tag = 'input window, operand 3, single buffered']
    #allocation8 [shape = 'u8[98304]{0}', space=vmem, size = 0x18000, scoped, tag = 'input window, operand 5, single buffered']
    #allocation9 [shape = 's32[1]{0}', space=sflag, size = 0x4, scoped, tag = 'scoped memory for tpu_custom_call.1']
    #allocation10 [shape = 'u8[98304]{0}', space=vmem, size = 0x18000, scoped, tag = 'input window, operand 7, single buffered']
    #allocation11 [shape = 'u8[32768]{0}', space=vmem, size = 0x8000, scoped, tag = 'input window, operand 9, single buffered']
    #allocation12 [shape = 's32[1]{0}', space=sflag, size = 0x4, scoped, tag = 'scoped memory for tpu_custom_call.1']
    #allocation13 [shape = 'u8[98304]{0}', space=vmem, size = 0x18000, scoped, tag = 'input window, operand 11, single buffered']
    #allocation14 [shape = 'u8[98304]{0}', space=vmem, size = 0x18000, scoped, tag = 'input window, operand 13, single buffered']
    #allocation15 [shape = 's32[1]{0}', space=sflag, size = 0x4, scoped, tag = 'scoped memory for tpu_custom_call.1']
    #allocation16 [shape = 'u8[32768]{0}', space=vmem, size = 0x8000, scoped, tag = 'input window, operand 15, single buffered']
    #allocation17 [shape = 'u8[32768]{0}', space=vmem, size = 0x8000, scoped, tag = 'input window, operand 17, single buffered']
    #allocation18 [shape = 's32[1]{0}', space=sflag, size = 0x4, scoped, tag = 'scoped memory for tpu_custom_call.1']
    #allocation19 [shape = 'u8[1024]{0}', space=vmem, size = 0x400, scoped, tag = 'output window, operand 0']
    %24 = vsyncpa [#allocation3], 0
    %s25 = scalar_lea.sflag [#allocation3], 1
    %26 = vsyncpa %s25, 0
    %27 = vsyncpa [#allocation6], 0
    %28 = vsyncpa [#allocation9], 0
    %29 = vsyncpa [#allocation12], 0
    %30 = vsyncpa [#allocation15], 0
    %31 = vsyncpa [#allocation18], 0
    %32 = vsyncpa [#allocation4], 0
    %s33 = scalar_lea.sflag [#allocation4], 1
    %34 = vsyncpa %s33, 0
    loop: start=0, step=1, limit=4
    $region2: #{tpu_custom_call.1} parent=1 // loop_pre_header
      _
    $region3: #{tpu_custom_call.1} parent=1 // loop_header
      %s36 = sphi 0, %s40
      %p37 = scmp.ge.s32.totalorder %s36, 4
      %s46 = sphi 0, %s48
      %s49 = sphi 0, %s46
      %s50 = sphi 0, %s49
      %s66 = sphi 0, %s50
      %s70 = sphi 0, %s70
      %s72 = sphi 0, %s70
      %s73 = sphi 0, %s72
      %s87 = sphi 0, %s73
      %s91 = sphi 0, %s91
      %s93 = sphi 0, %s91
      %s94 = sphi 0, %s93
      %s108 = sphi 0, %s94
      %s112 = sphi 0, %s112
      %s114 = sphi 0, %s112
      %s115 = sphi 0, %s114
      %s129 = sphi 0, %s115
      %s133 = sphi 0, %s133
      %s135 = sphi 0, %s133
      %s136 = sphi 0, %s135
      %s150 = sphi 0, %s136
      %s154 = sphi 0, %s154
      %s156 = sphi 0, %s154
      %s157 = sphi 0, %s156
      %s171 = sphi 0, %s157
      %s175 = sphi 0, %s175
      %s177 = sphi 0, %s175
      %s178 = sphi 0, %s177
      %s192 = sphi 0, %s178
      %s196 = sphi 0, %s196
      %s198 = sphi 0, %s196
      %s199 = sphi 0, %s198
      %s213 = sphi 0, %s199
      %s217 = sphi 0, %s217
      %s219 = sphi 0, %s217
      %s220 = sphi 0, %s219
      %s234 = sphi 0, %s220
      %s238 = sphi 0, %s238
      %s240 = sphi 0, %s238
      %s241 = sphi 0, %s240
      %s255 = sphi 0, %s241
      %s259 = sphi 0, %s259
      %s261 = sphi 0, %s259
      %s262 = sphi 0, %s261
      %s276 = sphi 0, %s262
      %s280 = sphi 0, %s280
      %s282 = sphi 0, %s280
      %s283 = sphi 0, %s282
      %s297 = sphi 0, %s283
      %s301 = sphi 0, %s301
      %s303 = sphi 0, %s301
      %s304 = sphi 0, %s303
      %s318 = sphi 0, %s304
      %s322 = sphi 0, %s322
      %s324 = sphi 0, %s322
      %s325 = sphi 0, %s324
      %s339 = sphi 0, %s325
      %s343 = sphi 0, %s343
      %s345 = sphi 0, %s343
      %s346 = sphi 0, %s345
      %s360 = sphi 0, %s346
      %s364 = sphi 0, %s364
      %s366 = sphi 0, %s364
      %s367 = sphi 0, %s366
      %s381 = sphi 0, %s367
      %s385 = sphi 0, %s385
      %s387 = sphi 0, %s385
      %s388 = sphi 0, %s387
      %s402 = sphi 0, %s388
      %s406 = sphi 0, %s406
      %s408 = sphi 0, %s406
      %s409 = sphi 0, %s408
      %s423 = sphi 0, %s409
      %s427 = sphi 0, %s427
      %s429 = sphi 0, %s427
      %s430 = sphi 0, %s429
      %s444 = sphi 0, %s430
      %s450 = sphi 0, %s452
      %s453 = sphi 0, %s450
      %s454 = sphi 0, %s453
      %s470 = sphi 0, %s454
    $region4: #{tpu_custom_call.1} parent=1 // loop_header_branch
      %39 = sbr.rel (%p37) target = $region8
    $region5: #{tpu_custom_call.1} parent=1 // loop_body
      %s41 = ssub.s32 %s36, 1
      %s42 = ssub.s32 %s36, 2
      %s43 = sadd.s32 %s36, 1
      %s44 = ssub.s32 %s36, %s43
      %p45 = scmp.eq.s32.totalorder %s44, 0
      %s47 = sadd.s32 %s46, 1
      %s48 = scalar_select %p45, %s46, %s47
      %p51 = pneg %p45
      %p52 = scmp.eq.s32.totalorder %s36, 1
      %p53 = por %p51, %p52
      %p54 = scmp.ne.s32.totalorder %s46, %s49
      %p55 = scmp.eq.s32.totalorder %s36, 0
      %p56 = por %p54, %p55
      %p57 = scmp.ne.s32.totalorder %s46, %s49
      %p58 = scmp.eq.s32.totalorder %s41, 1
      %p59 = por %p57, %p58
      %p60 = scmp.ne.s32.totalorder %s49, %s50
      %p61 = scmp.eq.s32.totalorder %s41, 0
      %p62 = por %p60, %p61
      %p63 = scmp.ne.s32.totalorder %s49, %s50
      %p64 = scmp.eq.s32.totalorder %s42, 1
      %p65 = por %p63, %p64
      %p67 = scmp.ne.s32.totalorder %s50, %s66
      %p68 = scmp.eq.s32.totalorder %s42, 0
      %p69 = por %p67, %p68
      %s71 = sadd.s32 %s70, 1
      %p74 = scmp.eq.s32.totalorder %s36, 1
      %p75 = scmp.ne.s32.totalorder %s70, %s72
      %p76 = scmp.eq.s32.totalorder %s36, 0
      %p77 = por %p75, %p76
      %p78 = scmp.ne.s32.totalorder %s70, %s72
      %p79 = scmp.eq.s32.totalorder %s41, 1
      %p80 = por %p78, %p79
      %p81 = scmp.ne.s32.totalorder %s72, %s73
      %p82 = scmp.eq.s32.totalorder %s41, 0
      %p83 = por %p81, %p82
      %p84 = scmp.ne.s32.totalorder %s72, %s73
      %p85 = scmp.eq.s32.totalorder %s42, 1
      %p86 = por %p84, %p85
      %p88 = scmp.ne.s32.totalorder %s73, %s87
      %p89 = scmp.eq.s32.totalorder %s42, 0
      %p90 = por %p88, %p89
      %s92 = sadd.s32 %s91, 1
      %p95 = scmp.eq.s32.totalorder %s36, 1
      %p96 = scmp.ne.s32.totalorder %s91, %s93
      %p97 = scmp.eq.s32.totalorder %s36, 0
      %p98 = por %p96, %p97
      %p99 = scmp.ne.s32.totalorder %s91, %s93
      %p100 = scmp.eq.s32.totalorder %s41, 1
      %p101 = por %p99, %p100
      %p102 = scmp.ne.s32.totalorder %s93, %s94
      %p103 = scmp.eq.s32.totalorder %s41, 0
      %p104 = por %p102, %p103
      %p105 = scmp.ne.s32.totalorder %s93, %s94
      %p106 = scmp.eq.s32.totalorder %s42, 1
      %p107 = por %p105, %p106
      %p109 = scmp.ne.s32.totalorder %s94, %s108
      %p110 = scmp.eq.s32.totalorder %s42, 0
      %p111 = por %p109, %p110
      %s113 = sadd.s32 %s112, 1
      %p116 = scmp.eq.s32.totalorder %s36, 1
      %p117 = scmp.ne.s32.totalorder %s112, %s114
      %p118 = scmp.eq.s32.totalorder %s36, 0
      %p119 = por %p117, %p118
      %p120 = scmp.ne.s32.totalorder %s112, %s114
      %p121 = scmp.eq.s32.totalorder %s41, 1
      %p122 = por %p120, %p121
      %p123 = scmp.ne.s32.totalorder %s114, %s115
      %p124 = scmp.eq.s32.totalorder %s41, 0
      %p125 = por %p123, %p124
      %p126 = scmp.ne.s32.totalorder %s114, %s115
      %p127 = scmp.eq.s32.totalorder %s42, 1
      %p128 = por %p126, %p127
      %p130 = scmp.ne.s32.totalorder %s115, %s129
      %p131 = scmp.eq.s32.totalorder %s42, 0
      %p132 = por %p130, %p131
      %s134 = sadd.s32 %s133, 1
      %p137 = scmp.eq.s32.totalorder %s36, 1
      %p138 = scmp.ne.s32.totalorder %s133, %s135
      %p139 = scmp.eq.s32.totalorder %s36, 0
      %p140 = por %p138, %p139
      %p141 = scmp.ne.s32.totalorder %s133, %s135
      %p142 = scmp.eq.s32.totalorder %s41, 1
      %p143 = por %p141, %p142
      %p144 = scmp.ne.s32.totalorder %s135, %s136
      %p145 = scmp.eq.s32.totalorder %s41, 0
      %p146 = por %p144, %p145
      %p147 = scmp.ne.s32.totalorder %s135, %s136
      %p148 = scmp.eq.s32.totalorder %s42, 1
      %p149 = por %p147, %p148
      %p151 = scmp.ne.s32.totalorder %s136, %s150
      %p152 = scmp.eq.s32.totalorder %s42, 0
      %p153 = por %p151, %p152
      %s155 = sadd.s32 %s154, 1
      %p158 = scmp.eq.s32.totalorder %s36, 1
      %p159 = scmp.ne.s32.totalorder %s154, %s156
      %p160 = scmp.eq.s32.totalorder %s36, 0
      %p161 = por %p159, %p160
      %p162 = scmp.ne.s32.totalorder %s154, %s156
      %p163 = scmp.eq.s32.totalorder %s41, 1
      %p164 = por %p162, %p163
      %p165 = scmp.ne.s32.totalorder %s156, %s157
      %p166 = scmp.eq.s32.totalorder %s41, 0
      %p167 = por %p165, %p166
      %p168 = scmp.ne.s32.totalorder %s156, %s157
      %p169 = scmp.eq.s32.totalorder %s42, 1
      %p170 = por %p168, %p169
      %p172 = scmp.ne.s32.totalorder %s157, %s171
      %p173 = scmp.eq.s32.totalorder %s42, 0
      %p174 = por %p172, %p173
      %s176 = sadd.s32 %s175, 1
      %p179 = scmp.eq.s32.totalorder %s36, 1
      %p180 = scmp.ne.s32.totalorder %s175, %s177
      %p181 = scmp.eq.s32.totalorder %s36, 0
      %p182 = por %p180, %p181
      %p183 = scmp.ne.s32.totalorder %s175, %s177
      %p184 = scmp.eq.s32.totalorder %s41, 1
      %p185 = por %p183, %p184
      %p186 = scmp.ne.s32.totalorder %s177, %s178
      %p187 = scmp.eq.s32.totalorder %s41, 0
      %p188 = por %p186, %p187
      %p189 = scmp.ne.s32.totalorder %s177, %s178
      %p190 = scmp.eq.s32.totalorder %s42, 1
      %p191 = por %p189, %p190
      %p193 = scmp.ne.s32.totalorder %s178, %s192
      %p194 = scmp.eq.s32.totalorder %s42, 0
      %p195 = por %p193, %p194
      %s197 = sadd.s32 %s196, 1
      %p200 = scmp.eq.s32.totalorder %s36, 1
      %p201 = scmp.ne.s32.totalorder %s196, %s198
      %p202 = scmp.eq.s32.totalorder %s36, 0
      %p203 = por %p201, %p202
      %p204 = scmp.ne.s32.totalorder %s196, %s198
      %p205 = scmp.eq.s32.totalorder %s41, 1
      %p206 = por %p204, %p205
      %p207 = scmp.ne.s32.totalorder %s198, %s199
      %p208 = scmp.eq.s32.totalorder %s41, 0
      %p209 = por %p207, %p208
      %p210 = scmp.ne.s32.totalorder %s198, %s199
      %p211 = scmp.eq.s32.totalorder %s42, 1
      %p212 = por %p210, %p211
      %p214 = scmp.ne.s32.totalorder %s199, %s213
      %p215 = scmp.eq.s32.totalorder %s42, 0
      %p216 = por %p214, %p215
      %s218 = sadd.s32 %s217, 1
      %p221 = scmp.eq.s32.totalorder %s36, 1
      %p222 = scmp.ne.s32.totalorder %s217, %s219
      %p223 = scmp.eq.s32.totalorder %s36, 0
      %p224 = por %p222, %p223
      %p225 = scmp.ne.s32.totalorder %s217, %s219
      %p226 = scmp.eq.s32.totalorder %s41, 1
      %p227 = por %p225, %p226
      %p228 = scmp.ne.s32.totalorder %s219, %s220
      %p229 = scmp.eq.s32.totalorder %s41, 0
      %p230 = por %p228, %p229
      %p231 = scmp.ne.s32.totalorder %s219, %s220
      %p232 = scmp.eq.s32.totalorder %s42, 1
      %p233 = por %p231, %p232
      %p235 = scmp.ne.s32.totalorder %s220, %s234
      %p236 = scmp.eq.s32.totalorder %s42, 0
      %p237 = por %p235, %p236
      %s239 = sadd.s32 %s238, 1
      %p242 = scmp.eq.s32.totalorder %s36, 1
      %p243 = scmp.ne.s32.totalorder %s238, %s240
      %p244 = scmp.eq.s32.totalorder %s36, 0
      %p245 = por %p243, %p244
      %p246 = scmp.ne.s32.totalorder %s238, %s240
      %p247 = scmp.eq.s32.totalorder %s41, 1
      %p248 = por %p246, %p247
      %p249 = scmp.ne.s32.totalorder %s240, %s241
      %p250 = scmp.eq.s32.totalorder %s41, 0
      %p251 = por %p249, %p250
      %p252 = scmp.ne.s32.totalorder %s240, %s241
      %p253 = scmp.eq.s32.totalorder %s42, 1
      %p254 = por %p252, %p253
      %p256 = scmp.ne.s32.totalorder %s241, %s255
      %p257 = scmp.eq.s32.totalorder %s42, 0
      %p258 = por %p256, %p257
      %s260 = sadd.s32 %s259, 1
      %p263 = scmp.eq.s32.totalorder %s36, 1
      %p264 = scmp.ne.s32.totalorder %s259, %s261
      %p265 = scmp.eq.s32.totalorder %s36, 0
      %p266 = por %p264, %p265
      %p267 = scmp.ne.s32.totalorder %s259, %s261
      %p268 = scmp.eq.s32.totalorder %s41, 1
      %p269 = por %p267, %p268
      %p270 = scmp.ne.s32.totalorder %s261, %s262
      %p271 = scmp.eq.s32.totalorder %s41, 0
      %p272 = por %p270, %p271
      %p273 = scmp.ne.s32.totalorder %s261, %s262
      %p274 = scmp.eq.s32.totalorder %s42, 1
      %p275 = por %p273, %p274
      %p277 = scmp.ne.s32.totalorder %s262, %s276
      %p278 = scmp.eq.s32.totalorder %s42, 0
      %p279 = por %p277, %p278
      %s281 = sadd.s32 %s280, 1
      %p284 = scmp.eq.s32.totalorder %s36, 1
      %p285 = scmp.ne.s32.totalorder %s280, %s282
      %p286 = scmp.eq.s32.totalorder %s36, 0
      %p287 = por %p285, %p286
      %p288 = scmp.ne.s32.totalorder %s280, %s282
      %p289 = scmp.eq.s32.totalorder %s41, 1
      %p290 = por %p288, %p289
      %p291 = scmp.ne.s32.totalorder %s282, %s283
      %p292 = scmp.eq.s32.totalorder %s41, 0
      %p293 = por %p291, %p292
      %p294 = scmp.ne.s32.totalorder %s282, %s283
      %p295 = scmp.eq.s32.totalorder %s42, 1
      %p296 = por %p294, %p295
      %p298 = scmp.ne.s32.totalorder %s283, %s297
      %p299 = scmp.eq.s32.totalorder %s42, 0
      %p300 = por %p298, %p299
      %s302 = sadd.s32 %s301, 1
      %p305 = scmp.eq.s32.totalorder %s36, 1
      %p306 = scmp.ne.s32.totalorder %s301, %s303
      %p307 = scmp.eq.s32.totalorder %s36, 0
      %p308 = por %p306, %p307
      %p309 = scmp.ne.s32.totalorder %s301, %s303
      %p310 = scmp.eq.s32.totalorder %s41, 1
      %p311 = por %p309, %p310
      %p312 = scmp.ne.s32.totalorder %s303, %s304
      %p313 = scmp.eq.s32.totalorder %s41, 0
      %p314 = por %p312, %p313
      %p315 = scmp.ne.s32.totalorder %s303, %s304
      %p316 = scmp.eq.s32.totalorder %s42, 1
      %p317 = por %p315, %p316
      %p319 = scmp.ne.s32.totalorder %s304, %s318
      %p320 = scmp.eq.s32.totalorder %s42, 0
      %p321 = por %p319, %p320
      %s323 = sadd.s32 %s322, 1
      %p326 = scmp.eq.s32.totalorder %s36, 1
      %p327 = scmp.ne.s32.totalorder %s322, %s324
      %p328 = scmp.eq.s32.totalorder %s36, 0
      %p329 = por %p327, %p328
      %p330 = scmp.ne.s32.totalorder %s322, %s324
      %p331 = scmp.eq.s32.totalorder %s41, 1
      %p332 = por %p330, %p331
      %p333 = scmp.ne.s32.totalorder %s324, %s325
      %p334 = scmp.eq.s32.totalorder %s41, 0
      %p335 = por %p333, %p334
      %p336 = scmp.ne.s32.totalorder %s324, %s325
      %p337 = scmp.eq.s32.totalorder %s42, 1
      %p338 = por %p336, %p337
      %p340 = scmp.ne.s32.totalorder %s325, %s339
      %p341 = scmp.eq.s32.totalorder %s42, 0
      %p342 = por %p340, %p341
      %s344 = sadd.s32 %s343, 1
      %p347 = scmp.eq.s32.totalorder %s36, 1
      %p348 = scmp.ne.s32.totalorder %s343, %s345
      %p349 = scmp.eq.s32.totalorder %s36, 0
      %p350 = por %p348, %p349
      %p351 = scmp.ne.s32.totalorder %s343, %s345
      %p352 = scmp.eq.s32.totalorder %s41, 1
      %p353 = por %p351, %p352
      %p354 = scmp.ne.s32.totalorder %s345, %s346
      %p355 = scmp.eq.s32.totalorder %s41, 0
      %p356 = por %p354, %p355
      %p357 = scmp.ne.s32.totalorder %s345, %s346
      %p358 = scmp.eq.s32.totalorder %s42, 1
      %p359 = por %p357, %p358
      %p361 = scmp.ne.s32.totalorder %s346, %s360
      %p362 = scmp.eq.s32.totalorder %s42, 0
      %p363 = por %p361, %p362
      %s365 = sadd.s32 %s364, 1
      %p368 = scmp.eq.s32.totalorder %s36, 1
      %p369 = scmp.ne.s32.totalorder %s364, %s366
      %p370 = scmp.eq.s32.totalorder %s36, 0
      %p371 = por %p369, %p370
      %p372 = scmp.ne.s32.totalorder %s364, %s366
      %p373 = scmp.eq.s32.totalorder %s41, 1
      %p374 = por %p372, %p373
      %p375 = scmp.ne.s32.totalorder %s366, %s367
      %p376 = scmp.eq.s32.totalorder %s41, 0
      %p377 = por %p375, %p376
      %p378 = scmp.ne.s32.totalorder %s366, %s367
      %p379 = scmp.eq.s32.totalorder %s42, 1
      %p380 = por %p378, %p379
      %p382 = scmp.ne.s32.totalorder %s367, %s381
      %p383 = scmp.eq.s32.totalorder %s42, 0
      %p384 = por %p382, %p383
      %s386 = sadd.s32 %s385, 1
      %p389 = scmp.eq.s32.totalorder %s36, 1
      %p390 = scmp.ne.s32.totalorder %s385, %s387
      %p391 = scmp.eq.s32.totalorder %s36, 0
      %p392 = por %p390, %p391
      %p393 = scmp.ne.s32.totalorder %s385, %s387
      %p394 = scmp.eq.s32.totalorder %s41, 1
      %p395 = por %p393, %p394
      %p396 = scmp.ne.s32.totalorder %s387, %s388
      %p397 = scmp.eq.s32.totalorder %s41, 0
      %p398 = por %p396, %p397
      %p399 = scmp.ne.s32.totalorder %s387, %s388
      %p400 = scmp.eq.s32.totalorder %s42, 1
      %p401 = por %p399, %p400
      %p403 = scmp.ne.s32.totalorder %s388, %s402
      %p404 = scmp.eq.s32.totalorder %s42, 0
      %p405 = por %p403, %p404
      %s407 = sadd.s32 %s406, 1
      %p410 = scmp.eq.s32.totalorder %s36, 1
      %p411 = scmp.ne.s32.totalorder %s406, %s408
      %p412 = scmp.eq.s32.totalorder %s36, 0
      %p413 = por %p411, %p412
      %p414 = scmp.ne.s32.totalorder %s406, %s408
      %p415 = scmp.eq.s32.totalorder %s41, 1
      %p416 = por %p414, %p415
      %p417 = scmp.ne.s32.totalorder %s408, %s409
      %p418 = scmp.eq.s32.totalorder %s41, 0
      %p419 = por %p417, %p418
      %p420 = scmp.ne.s32.totalorder %s408, %s409
      %p421 = scmp.eq.s32.totalorder %s42, 1
      %p422 = por %p420, %p421
      %p424 = scmp.ne.s32.totalorder %s409, %s423
      %p425 = scmp.eq.s32.totalorder %s42, 0
      %p426 = por %p424, %p425
      %s428 = sadd.s32 %s427, 1
      %p431 = scmp.eq.s32.totalorder %s36, 1
      %p432 = scmp.ne.s32.totalorder %s427, %s429
      %p433 = scmp.eq.s32.totalorder %s36, 0
      %p434 = por %p432, %p433
      %p435 = scmp.ne.s32.totalorder %s427, %s429
      %p436 = scmp.eq.s32.totalorder %s41, 1
      %p437 = por %p435, %p436
      %p438 = scmp.ne.s32.totalorder %s429, %s430
      %p439 = scmp.eq.s32.totalorder %s41, 0
      %p440 = por %p438, %p439
      %p441 = scmp.ne.s32.totalorder %s429, %s430
      %p442 = scmp.eq.s32.totalorder %s42, 1
      %p443 = por %p441, %p442
      %p445 = scmp.ne.s32.totalorder %s430, %s444
      %p446 = scmp.eq.s32.totalorder %s42, 0
      %p447 = por %p445, %p446
      %s448 = ssub.s32 %s36, %s43
      %p449 = scmp.eq.s32.totalorder %s448, 0
      %s451 = sadd.s32 %s450, 1
      %s452 = scalar_select %p449, %s450, %s451
      %p455 = pneg %p449
      %p456 = scmp.eq.s32.totalorder %s36, 1
      %p457 = por %p455, %p456
      %p458 = scmp.ne.s32.totalorder %s450, %s453
      %p459 = scmp.eq.s32.totalorder %s36, 0
      %p460 = por %p458, %p459
      %p461 = scmp.ne.s32.totalorder %s450, %s453
      %p462 = scmp.eq.s32.totalorder %s41, 1
      %p463 = por %p461, %p462
      %p464 = scmp.ne.s32.totalorder %s453, %s454
      %p465 = scmp.eq.s32.totalorder %s41, 0
      %p466 = por %p464, %p465
      %p467 = scmp.ne.s32.totalorder %s453, %s454
      %p468 = scmp.eq.s32.totalorder %s42, 1
      %p469 = por %p467, %p468
      %p471 = scmp.ne.s32.totalorder %s454, %s470
      %p472 = scmp.eq.s32.totalorder %s42, 0
      %p473 = por %p471, %p472
      %p474 = scmp.le.s32.totalorder 1, %s36
      %p475 = scmp.lt.s32.totalorder %s36, 3
      %p476 = pnand %p474, %p475
      %p477 = pneg %p476
      // Predicated region
      $region9: #{tpu_custom_call.1} parent=5 // pred_check
        _
      $region10: #{tpu_custom_call.1} parent=5 // pred_check_branch
        %479 = sbr.rel (%p476) target = $region12
      $region11: #{tpu_custom_call.1} parent=5 // pred_region
        %s480 = ssub.s32 %s36, 1
        // Predicated region
        $region13: #{tpu_custom_call.1} parent=11 // pred_check
          %p481 = pneg %p83
        $region14: #{tpu_custom_call.1} parent=11 // pred_check_branch
          %483 = sbr.rel (%p481) target = $region16
        $region15: #{tpu_custom_call.1} parent=11 // pred_region
          %s485 = ssub.s32 3072, 3072
          %486 = vsyncadd [#allocation6], %s485
          %s487 = sshll.u32 [#allocation5], 4
          %s488 = int_to_ptr.vmem [resolvable:$true] %s487
          %493 = dma.hbm_to_vmem [thread:$0]  %s1, 3072, %s488, [#allocation6], 192, 192, 12
        $region16: #{tpu_custom_call.1} parent=11 // pred_fallthru
          _
        // Predicated region
        $region17: #{tpu_custom_call.1} parent=11 // pred_check
          %p494 = pneg %p104
        $region18: #{tpu_custom_call.1} parent=11 // pred_check_branch
          %496 = sbr.rel (%p494) target = $region20
        $region19: #{tpu_custom_call.1} parent=11 // pred_region
          _
        $region20: #{tpu_custom_call.1} parent=11 // pred_fallthru
          _
        // Predicated region
        $region21: #{tpu_custom_call.1} parent=11 // pred_check
          %p497 = pneg %p125
        $region22: #{tpu_custom_call.1} parent=11 // pred_check_branch
          %499 = sbr.rel (%p497) target = $region24
        $region23: #{tpu_custom_call.1} parent=11 // pred_region
          %s501 = ssub.s32 3072, 3072
          %502 = vsyncadd [#allocation6], %s501
          %s503 = sshll.u32 [#allocation7], 4
          %s504 = int_to_ptr.vmem [resolvable:$true] %s503
          %509 = dma.hbm_to_vmem [thread:$0]  %s3, 3072, %s504, [#allocation6], 192, 192, 12
        $region24: #{tpu_custom_call.1} parent=11 // pred_fallthru
          _
        // Predicated region
        $region25: #{tpu_custom_call.1} parent=11 // pred_check
          %p510 = pneg %p146
        $region26: #{tpu_custom_call.1} parent=11 // pred_check_branch
          %512 = sbr.rel (%p510) target = $region28
        $region27: #{tpu_custom_call.1} parent=11 // pred_region
          _
        $region28: #{tpu_custom_call.1} parent=11 // pred_fallthru
          _
        // Predicated region
        $region29: #{tpu_custom_call.1} parent=11 // pred_check
          %p513 = pneg %p167
        $region30: #{tpu_custom_call.1} parent=11 // pred_check_branch
          %515 = sbr.rel (%p513) target = $region32
        $region31: #{tpu_custom_call.1} parent=11 // pred_region
          %s517 = ssub.s32 3072, 3072
          %518 = vsyncadd [#allocation9], %s517
          %s519 = sshll.u32 [#allocation8], 4
          %s520 = int_to_ptr.vmem [resolvable:$true] %s519
          %525 = dma.hbm_to_vmem [thread:$0]  %s5, 3072, %s520, [#allocation9], 192, 192, 12
        $region32: #{tpu_custom_call.1} parent=11 // pred_fallthru
          _
        // Predicated region
        $region33: #{tpu_custom_call.1} parent=11 // pred_check
          %p526 = pneg %p188
        $region34: #{tpu_custom_call.1} parent=11 // pred_check_branch
          %528 = sbr.rel (%p526) target = $region36
        $region35: #{tpu_custom_call.1} parent=11 // pred_region
          _
        $region36: #{tpu_custom_call.1} parent=11 // pred_fallthru
          _
        // Predicated region
        $region37: #{tpu_custom_call.1} parent=11 // pred_check
          %p529 = pneg %p209
        $region38: #{tpu_custom_call.1} parent=11 // pred_check_branch
          %531 = sbr.rel (%p529) target = $region40
        $region39: #{tpu_custom_call.1} parent=11 // pred_region
          %s533 = ssub.s32 3072, 3072
          %534 = vsyncadd [#allocation9], %s533
          %s535 = sshll.u32 [#allocation10], 4
          %s536 = int_to_ptr.vmem [resolvable:$true] %s535
          %541 = dma.hbm_to_vmem [thread:$0]  %s7, 3072, %s536, [#allocation9], 192, 192, 12
        $region40: #{tpu_custom_call.1} parent=11 // pred_fallthru
          _
        // Predicated region
        $region41: #{tpu_custom_call.1} parent=11 // pred_check
          %p542 = pneg %p230
        $region42: #{tpu_custom_call.1} parent=11 // pred_check_branch
          %544 = sbr.rel (%p542) target = $region44
        $region43: #{tpu_custom_call.1} parent=11 // pred_region
          _
        $region44: #{tpu_custom_call.1} parent=11 // pred_fallthru
          _
        // Predicated region
        $region45: #{tpu_custom_call.1} parent=11 // pred_check
          %p545 = pneg %p251
        $region46: #{tpu_custom_call.1} parent=11 // pred_check_branch
          %547 = sbr.rel (%p545) target = $region48
        $region47: #{tpu_custom_call.1} parent=11 // pred_region
          %s549 = ssub.s32 1024, 1024
          %550 = vsyncadd [#allocation12], %s549
          %s551 = sshll.u32 [#allocation11], 4
          %s552 = int_to_ptr.vmem [resolvable:$true] %s551
          %557 = dma.hbm_to_vmem [thread:$0]  %s9, 1024, %s552, [#allocation12], 64, 64, 4
        $region48: #{tpu_custom_call.1} parent=11 // pred_fallthru
          _
        // Predicated region
        $region49: #{tpu_custom_call.1} parent=11 // pred_check
          %p558 = pneg %p272
        $region50: #{tpu_custom_call.1} parent=11 // pred_check_branch
          %560 = sbr.rel (%p558) target = $region52
        $region51: #{tpu_custom_call.1} parent=11 // pred_region
          _
        $region52: #{tpu_custom_call.1} parent=11 // pred_fallthru
          _
        // Predicated region
        $region53: #{tpu_custom_call.1} parent=11 // pred_check
          %p561 = pneg %p293
        $region54: #{tpu_custom_call.1} parent=11 // pred_check_branch
          %563 = sbr.rel (%p561) target = $region56
        $region55: #{tpu_custom_call.1} parent=11 // pred_region
          %s565 = ssub.s32 3072, 3072
          %566 = vsyncadd [#allocation12], %s565
          %s567 = sshll.u32 [#allocation13], 4
          %s568 = int_to_ptr.vmem [resolvable:$true] %s567
          %573 = dma.hbm_to_vmem [thread:$0]  %s11, 3072, %s568, [#allocation12], 192, 192, 12
        $region56: #{tpu_custom_call.1} parent=11 // pred_fallthru
          _
        // Predicated region
        $region57: #{tpu_custom_call.1} parent=11 // pred_check
          %p574 = pneg %p314
        $region58: #{tpu_custom_call.1} parent=11 // pred_check_branch
          %576 = sbr.rel (%p574) target = $region60
        $region59: #{tpu_custom_call.1} parent=11 // pred_region
          _
        $region60: #{tpu_custom_call.1} parent=11 // pred_fallthru
          _
        // Predicated region
        $region61: #{tpu_custom_call.1} parent=11 // pred_check
          %p577 = pneg %p335
        $region62: #{tpu_custom_call.1} parent=11 // pred_check_branch
          %579 = sbr.rel (%p577) target = $region64
        $region63: #{tpu_custom_call.1} parent=11 // pred_region
          %s581 = ssub.s32 3072, 3072
          %582 = vsyncadd [#allocation15], %s581
          %s583 = sshll.u32 [#allocation14], 4
          %s584 = int_to_ptr.vmem [resolvable:$true] %s583
          %589 = dma.hbm_to_vmem [thread:$0]  %s13, 3072, %s584, [#allocation15], 192, 192, 12
        $region64: #{tpu_custom_call.1} parent=11 // pred_fallthru
          _
        // Predicated region
        $region65: #{tpu_custom_call.1} parent=11 // pred_check
          %p590 = pneg %p356
        $region66: #{tpu_custom_call.1} parent=11 // pred_check_branch
          %592 = sbr.rel (%p590) target = $region68
        $region67: #{tpu_custom_call.1} parent=11 // pred_region
          _
        $region68: #{tpu_custom_call.1} parent=11 // pred_fallthru
          _
        // Predicated region
        $region69: #{tpu_custom_call.1} parent=11 // pred_check
          %p593 = pneg %p377
        $region70: #{tpu_custom_call.1} parent=11 // pred_check_branch
          %595 = sbr.rel (%p593) target = $region72
        $region71: #{tpu_custom_call.1} parent=11 // pred_region
          %s597 = ssub.s32 1024, 1024
          %598 = vsyncadd [#allocation15], %s597
          %s599 = sshll.u32 [#allocation16], 4
          %s600 = int_to_ptr.vmem [resolvable:$true] %s599
          %605 = dma.hbm_to_vmem [thread:$0]  %s15, 1024, %s600, [#allocation15], 64, 64, 4
        $region72: #{tpu_custom_call.1} parent=11 // pred_fallthru
          _
        // Predicated region
        $region73: #{tpu_custom_call.1} parent=11 // pred_check
          %p606 = pneg %p398
        $region74: #{tpu_custom_call.1} parent=11 // pred_check_branch
          %608 = sbr.rel (%p606) target = $region76
        $region75: #{tpu_custom_call.1} parent=11 // pred_region
          _
        $region76: #{tpu_custom_call.1} parent=11 // pred_fallthru
          _
        // Predicated region
        $region77: #{tpu_custom_call.1} parent=11 // pred_check
          %p609 = pneg %p419
        $region78: #{tpu_custom_call.1} parent=11 // pred_check_branch
          %611 = sbr.rel (%p609) target = $region80
        $region79: #{tpu_custom_call.1} parent=11 // pred_region
          %s613 = ssub.s32 1024, 1024
          %614 = vsyncadd [#allocation18], %s613
          %s615 = sshll.u32 [#allocation17], 4
          %s616 = int_to_ptr.vmem [resolvable:$true] %s615
          %621 = dma.hbm_to_vmem [thread:$0]  %s17, 1024, %s616, [#allocation18], 64, 64, 4
        $region80: #{tpu_custom_call.1} parent=11 // pred_fallthru
          _
        // Predicated region
        $region81: #{tpu_custom_call.1} parent=11 // pred_check
          %p622 = pneg %p440
        $region82: #{tpu_custom_call.1} parent=11 // pred_check_branch
          %624 = sbr.rel (%p622) target = $region84
        $region83: #{tpu_custom_call.1} parent=11 // pred_region
          _
        $region84: #{tpu_custom_call.1} parent=11 // pred_fallthru
          _
      $region12: #{tpu_custom_call.1} parent=5 // pred_fallthru
        _
      %p625 = scmp.lt.s32.totalorder %s36, 2
      // Predicated region
      $region85: #{tpu_custom_call.1} parent=5 // pred_check
        %p626 = pneg %p625
      $region86: #{tpu_custom_call.1} parent=5 // pred_check_branch
        %628 = sbr.rel (%p626) target = $region88
      $region87: #{tpu_custom_call.1} parent=5 // pred_region
        // Predicated region
        $region89: #{tpu_custom_call.1} parent=87 // pred_check
          %p629 = pneg %p56
        $region90: #{tpu_custom_call.1} parent=87 // pred_check_branch
          %631 = sbr.rel (%p629) target = $region92
        $region91: #{tpu_custom_call.1} parent=87 // pred_region
          %s632 = sand.u32 %s46, 1
          %s633 = scalar_lea.sflag [#allocation3], %s632
          %s634 = sand.u32 %s46, 1
          %s635 = smul.addr %s634, 8
          %s636 = scalar_lea.vmem [#allocation2], %s635
          %s638 = ssub.s32 128, 128
          %639 = vsyncadd %s633, %s638
          %s640 = smul.addr %s36, 2
          %s641 = smul.addr %s640, 64
          %s642 = scalar_lea.hbm %s0, %s641
          %s643 = sshll.u32 %s636, 4
          %s644 = int_to_ptr.vmem [resolvable:$true] %s643
          %649 = dma.hbm_to_vmem [thread:$0]  %s642, 128, %s644, %s633, 64, 64, 4
        $region92: #{tpu_custom_call.1} parent=87 // pred_fallthru
          _
      $region88: #{tpu_custom_call.1} parent=5 // pred_fallthru
        _
      %p650 = scmp.le.s32.totalorder 1, %s36
      %p651 = scmp.lt.s32.totalorder %s36, 3
      %p652 = pnand %p650, %p651
      %p653 = pneg %p652
      // Predicated region
      $region93: #{tpu_custom_call.1} parent=5 // pred_check
        _
      $region94: #{tpu_custom_call.1} parent=5 // pred_check_branch
        %655 = sbr.rel (%p652) target = $region96
      $region95: #{tpu_custom_call.1} parent=5 // pred_region
        %s656 = ssub.s32 %s36, 1
        %s657 = sand.u32 %s49, 1
        %s658 = scalar_lea.sflag [#allocation3], %s657
        %s659 = sand.u32 %s49, 1
        %s660 = smul.addr %s659, 8
        %s661 = scalar_lea.vmem [#allocation2], %s660
        // Predicated region
        $region97: #{tpu_custom_call.1} parent=95 // pred_check
          %p662 = pneg %p62
        $region98: #{tpu_custom_call.1} parent=95 // pred_check_branch
          %664 = sbr.rel (%p662) target = $region100
        $region99: #{tpu_custom_call.1} parent=95 // pred_region
          %665 = dma.done %s658, 128
        $region100: #{tpu_custom_call.1} parent=95 // pred_fallthru
          _
        // Predicated region
        $region101: #{tpu_custom_call.1} parent=95 // pred_check
          %p666 = pneg %p83
        $region102: #{tpu_custom_call.1} parent=95 // pred_check_branch
          %668 = sbr.rel (%p666) target = $region104
        $region103: #{tpu_custom_call.1} parent=95 // pred_region
          %669 = dma.done [#allocation6], 3072
        $region104: #{tpu_custom_call.1} parent=95 // pred_fallthru
          _
        // Predicated region
        $region105: #{tpu_custom_call.1} parent=95 // pred_check
          %p670 = pneg %p125
        $region106: #{tpu_custom_call.1} parent=95 // pred_check_branch
          %672 = sbr.rel (%p670) target = $region108
        $region107: #{tpu_custom_call.1} parent=95 // pred_region
          %673 = dma.done [#allocation6], 3072
        $region108: #{tpu_custom_call.1} parent=95 // pred_fallthru
          _
        // Predicated region
        $region109: #{tpu_custom_call.1} parent=95 // pred_check
          %p674 = pneg %p167
        $region110: #{tpu_custom_call.1} parent=95 // pred_check_branch
          %676 = sbr.rel (%p674) target = $region112
        $region111: #{tpu_custom_call.1} parent=95 // pred_region
          %677 = dma.done [#allocation9], 3072
        $region112: #{tpu_custom_call.1} parent=95 // pred_fallthru
          _
        // Predicated region
        $region113: #{tpu_custom_call.1} parent=95 // pred_check
          %p678 = pneg %p209
        $region114: #{tpu_custom_call.1} parent=95 // pred_check_branch
          %680 = sbr.rel (%p678) target = $region116
        $region115: #{tpu_custom_call.1} parent=95 // pred_region
          %681 = dma.done [#allocation9], 3072
        $region116: #{tpu_custom_call.1} parent=95 // pred_fallthru
          _
        // Predicated region
        $region117: #{tpu_custom_call.1} parent=95 // pred_check
          %p682 = pneg %p251
        $region118: #{tpu_custom_call.1} parent=95 // pred_check_branch
          %684 = sbr.rel (%p682) target = $region120
        $region119: #{tpu_custom_call.1} parent=95 // pred_region
          %685 = dma.done [#allocation12], 1024
        $region120: #{tpu_custom_call.1} parent=95 // pred_fallthru
          _
        // Predicated region
        $region121: #{tpu_custom_call.1} parent=95 // pred_check
          %p686 = pneg %p293
        $region122: #{tpu_custom_call.1} parent=95 // pred_check_branch
          %688 = sbr.rel (%p686) target = $region124
        $region123: #{tpu_custom_call.1} parent=95 // pred_region
          %689 = dma.done [#allocation12], 3072
        $region124: #{tpu_custom_call.1} parent=95 // pred_fallthru
          _
        // Predicated region
        $region125: #{tpu_custom_call.1} parent=95 // pred_check
          %p690 = pneg %p335
        $region126: #{tpu_custom_call.1} parent=95 // pred_check_branch
          %692 = sbr.rel (%p690) target = $region128
        $region127: #{tpu_custom_call.1} parent=95 // pred_region
          %693 = dma.done [#allocation15], 3072
        $region128: #{tpu_custom_call.1} parent=95 // pred_fallthru
          _
        // Predicated region
        $region129: #{tpu_custom_call.1} parent=95 // pred_check
          %p694 = pneg %p377
        $region130: #{tpu_custom_call.1} parent=95 // pred_check_branch
          %696 = sbr.rel (%p694) target = $region132
        $region131: #{tpu_custom_call.1} parent=95 // pred_region
          %697 = dma.done [#allocation15], 1024
        $region132: #{tpu_custom_call.1} parent=95 // pred_fallthru
          _
        // Predicated region
        $region133: #{tpu_custom_call.1} parent=95 // pred_check
          %p698 = pneg %p419
        $region134: #{tpu_custom_call.1} parent=95 // pred_check_branch
          %700 = sbr.rel (%p698) target = $region136
        $region135: #{tpu_custom_call.1} parent=95 // pred_region
          %701 = dma.done [#allocation18], 1024
        $region136: #{tpu_custom_call.1} parent=95 // pred_fallthru
          _
        %s702 = sand.u32 %s49, 1
        %s703 = scalar_lea.sflag [#allocation3], %s702
        %s704 = sand.u32 %s49, 1
        %s705 = smul.addr %s704, 8
        %s706 = scalar_lea.vmem [#allocation2], %s705
        %p707 = pneg %p62
        %p708 = pneg %p59
        %p709 = pneg %p83
        %p710 = pneg %p80
        %p711 = pneg %p104
        %p712 = pneg %p101
        %p713 = pneg %p125
        %p714 = pneg %p122
        %p715 = pneg %p146
        %p716 = pneg %p143
        %p717 = pneg %p167
        %p718 = pneg %p164
        %p719 = pneg %p188
        %p720 = pneg %p185
        %p721 = pneg %p209
        %p722 = pneg %p206
        %p723 = pneg %p230
        %p724 = pneg %p227
        %p725 = pneg %p251
        %p726 = pneg %p248
        %p727 = pneg %p272
        %p728 = pneg %p269
        %p729 = pneg %p293
        %p730 = pneg %p290
        %p731 = pneg %p314
        %p732 = pneg %p311
        %p733 = pneg %p335
        %p734 = pneg %p332
        %p735 = pneg %p356
        %p736 = pneg %p353
        %p737 = pneg %p377
        %p738 = pneg %p374
        %p739 = pneg %p398
        %p740 = pneg %p395
        %p741 = pneg %p419
        %p742 = pneg %p416
        %p743 = pneg %p440
        %p744 = pneg %p437
        %p745 = pneg %p466
        %p746 = pneg %p463
        %s747 = sand.u32 %s453, 1
        %s748 = scalar_lea.sflag [#allocation4], %s747
        %s749 = sand.u32 %s453, 1
        %s750 = scalar_lea.vmem [#allocation19], %s749
        %v752 = vlaneseq
        %v753 = vshrl.u32 %v752, 7
        %v754 = vadd.s32 %v753, 8
        %v755 = vld [vmem:[%s661] sm:$0xf]
        %v756 = vld [vmem:[%s661 + $0x4] sm:$0xf]
        %v757 = vunpack.c.l.bf16 %v755
        %v758 = vunpack.c.l.bf16 %v756
        %v759 = vpack.c.bf16 %v758, %v757
        %v760 = vld [vmem:[#allocation5] sm:$0xff]
        %v761 = vld [vmem:[#allocation5 + $0x8] sm:$0xf]
        %v762 = vld [vmem:[#allocation5 + $0xc] sm:$0xff]
        %v763 = vld [vmem:[#allocation5 + $0x14] sm:$0xf]
        %v764 = vld [vmem:[#allocation5 + $0x18] sm:$0xff]
        %v765 = vld [vmem:[#allocation5 + $0x20] sm:$0xf]
        %v766 = vld [vmem:[#allocation5 + $0x24] sm:$0xff]
        %v767 = vld [vmem:[#allocation5 + $0x2c] sm:$0xf]
        %v768 = vld [vmem:[#allocation5 + $0x30] sm:$0xff]
        %v769 = vld [vmem:[#allocation5 + $0x38] sm:$0xf]
        %v770 = vld [vmem:[#allocation5 + $0x3c] sm:$0xff]
        %v771 = vld [vmem:[#allocation5 + $0x44] sm:$0xf]
        %v772 = vld [vmem:[#allocation5 + $0x48] sm:$0xff]
        %v773 = vld [vmem:[#allocation5 + $0x50] sm:$0xf]
        %v774 = vld [vmem:[#allocation5 + $0x54] sm:$0xff]
        %v775 = vld [vmem:[#allocation5 + $0x5c] sm:$0xf]
        %v776 = vld [vmem:[#allocation5 + $0x60] sm:$0xff]
        %v777 = vld [vmem:[#allocation5 + $0x68] sm:$0xf]
        %v778 = vld [vmem:[#allocation5 + $0x6c] sm:$0xff]
        %v779 = vld [vmem:[#allocation5 + $0x74] sm:$0xf]
        %v780 = vld [vmem:[#allocation5 + $0x78] sm:$0xff]
        %v781 = vld [vmem:[#allocation5 + $0x80] sm:$0xf]
        %v782 = vld [vmem:[#allocation5 + $0x84] sm:$0xff]
        %v783 = vld [vmem:[#allocation5 + $0x8c] sm:$0xf]
        %v784 = vld [vmem:[#allocation5 + $0x90] sm:$0xff]
        %v785 = vld [vmem:[#allocation5 + $0x98] sm:$0xf]
        %v786 = vld [vmem:[#allocation5 + $0x9c] sm:$0xff]
        %v787 = vld [vmem:[#allocation5 + $0xa4] sm:$0xf]
        %v788 = vld [vmem:[#allocation5 + $0xa8] sm:$0xff]
        %v789 = vld [vmem:[#allocation5 + $0xb0] sm:$0xf]
        %v790 = vld [vmem:[#allocation5 + $0xb4] sm:$0xff]
        %v791 = vld [vmem:[#allocation5 + $0xbc] sm:$0xf]
        %v824 = vunpack.c.l.b16 %v760
        %v825 = vunpack.c.h.b16 %v760
        %v826 = vunpack.c.l.b16 %v761
        %v827 = vunpack.c.l.b16 %v762
        %v828 = vunpack.c.h.b16 %v762
        %v829 = vunpack.c.l.b16 %v763
        %v830 = vunpack.c.l.b16 %v764
        %v831 = vunpack.c.h.b16 %v764
        %v832 = vunpack.c.l.b16 %v765
        %v833 = vunpack.c.l.b16 %v766
        %v834 = vunpack.c.h.b16 %v766
        %v835 = vunpack.c.l.b16 %v767
        %v836 = vunpack.c.l.b16 %v768
        %v837 = vunpack.c.h.b16 %v768
        %v838 = vunpack.c.l.b16 %v769
        %v839 = vunpack.c.l.b16 %v770
        %v840 = vunpack.c.h.b16 %v770
        %v841 = vunpack.c.l.b16 %v771
        %v842 = vunpack.c.l.b16 %v772
        %v843 = vunpack.c.h.b16 %v772
        %v844 = vunpack.c.l.b16 %v773
        %v845 = vunpack.c.l.b16 %v774
        %v846 = vunpack.c.h.b16 %v774
        %v847 = vunpack.c.l.b16 %v775
        %v848 = vunpack.c.l.b16 %v776
        %v849 = vunpack.c.h.b16 %v776
        %v850 = vunpack.c.l.b16 %v777
        %v851 = vunpack.c.l.b16 %v778
        %v852 = vunpack.c.h.b16 %v778
        %v853 = vunpack.c.l.b16 %v779
        %v854 = vunpack.c.l.b16 %v780
        %v855 = vunpack.c.h.b16 %v780
        %v856 = vunpack.c.l.b16 %v781
        %v857 = vunpack.c.l.b16 %v782
        %v858 = vunpack.c.h.b16 %v782
        %v859 = vunpack.c.l.b16 %v783
        %v860 = vunpack.c.l.b16 %v784
        %v861 = vunpack.c.h.b16 %v784
        %v862 = vunpack.c.l.b16 %v785
        %v863 = vunpack.c.l.b16 %v786
        %v864 = vunpack.c.h.b16 %v786
        %v865 = vunpack.c.l.b16 %v787
        %v866 = vunpack.c.l.b16 %v788
        %v867 = vunpack.c.h.b16 %v788
        %v868 = vunpack.c.l.b16 %v789
        %v869 = vunpack.c.l.b16 %v790
        %v870 = vunpack.c.h.b16 %v790
        %v871 = vunpack.c.l.b16 %v791
        %v872 = vpack.c.b16 %v827, %v824
        %v873 = vpack.c.b16 %v828, %v825
        %v874 = vpack.c.b16 %v829, %v826
        %v875 = vpack.c.b16 %v833, %v830
        %v876 = vpack.c.b16 %v834, %v831
        %v877 = vpack.c.b16 %v835, %v832
        %v878 = vpack.c.b16 %v839, %v836
        %v879 = vpack.c.b16 %v840, %v837
        %v880 = vpack.c.b16 %v841, %v838
        %v881 = vpack.c.b16 %v845, %v842
        %v882 = vpack.c.b16 %v846, %v843
        %v883 = vpack.c.b16 %v847, %v844
        %v884 = vpack.c.b16 %v851, %v848
        %v885 = vpack.c.b16 %v852, %v849
        %v886 = vpack.c.b16 %v853, %v850
        %v887 = vpack.c.b16 %v857, %v854
        %v888 = vpack.c.b16 %v858, %v855
        %v889 = vpack.c.b16 %v859, %v856
        %v890 = vpack.c.b16 %v863, %v860
        %v891 = vpack.c.b16 %v864, %v861
        %v892 = vpack.c.b16 %v865, %v862
        %v893 = vpack.c.b16 %v869, %v866
        %v894 = vpack.c.b16 %v870, %v867
        %v895 = vpack.c.b16 %v871, %v868
        %920 = vmatprep.subr.bf16.mxu0 %v894
        %921 = vmatpush1.bf16.msra.mxu0 %v893
        %922 = vmatprep.subr.bf16.mxu0 %v891
        %923 = vmatpush1.bf16.msra.mxu0 %v890
        %924 = vmatprep.subr.bf16.mxu0 %v888
        %925 = vmatpush1.bf16.msra.mxu0 %v887
        %926 = vmatprep.subr.bf16.mxu0 %v885
        %927 = vmatpush1.bf16.msra.mxu0 %v884
        %928 = vmatprep.subr.bf16.mxu0 %v882
        %929 = vmatpush1.bf16.msra.mxu0 %v881
        %930 = vmatprep.subr.bf16.mxu0 %v879
        %931 = vmatpush1.bf16.msra.mxu0 %v878
        %932 = vmatprep.subr.bf16.mxu0 %v876
        %933 = vmatpush1.bf16.msra.mxu0 %v875
        %934 = vmatprep.subr.bf16.mxu0 %v873
        %935 = vmatpush1.bf16.msra.mxu0 %v872
        %936 = vmatprep.subr.bf16.mxu0 0
        %937 = vmatpush2.bf16.msra.mxu0 0
        %938 = vmatprep.subr.bf16.mxu0 0
        %939 = vmatpush2.bf16.msra.mxu0 0
        %940 = vmatprep.subr.bf16.mxu0 0
        %941 = vmatpush2.bf16.msra.mxu0 0
        %942 = vmatprep.subr.bf16.mxu0 0
        %943 = vmatpush2.bf16.msra.mxu0 0
        %944 = vmatprep.subr.bf16.mxu0 0
        %945 = vmatpush2.bf16.msra.mxu0 0
        %946 = vmatprep.subr.bf16.mxu0 0
        %947 = vmatpush2.bf16.msra.mxu0 0
        %948 = vmatprep.subr.bf16.mxu0 0
        %949 = vmatpush2.bf16.msra.mxu0 0
        %950 = vmatprep.subr.bf16.mxu0 0
        %951 = vmatpush2.bf16.msra.mxu0 0
        %952 = vmatprep.mubr.bf16.mxu0 0
        %953 = vmatmul.mubr.bf16.gmra.mxu0 %v759
        %v954 = vpop.f32.mrf.mxu0
        %v955 = vadd.f32 0.0, %v954
        %v956 = vpop.f32.mrf.mxu0
        %v957 = vadd.f32 0.0, %v956
        %v958 = vpop.f32.mrf.mxu0
        %v959 = vadd.f32 0.0, %v958
        %v960 = vpop.f32.mrf.mxu0
        %v961 = vadd.f32 0.0, %v960
        %962 = vdwg.mxu0
        %963 = vmatprep.subr.bf16.mxu0 0
        %964 = vmatpush1.bf16.msra.mxu0 %v895
        %965 = vmatprep.subr.bf16.mxu0 0
        %966 = vmatpush1.bf16.msra.mxu0 %v892
        %967 = vmatprep.subr.bf16.mxu0 0
        %968 = vmatpush1.bf16.msra.mxu0 %v889
        %969 = vmatprep.subr.bf16.mxu0 0
        %970 = vmatpush1.bf16.msra.mxu0 %v886
        %971 = vmatprep.subr.bf16.mxu0 0
        %972 = vmatpush1.bf16.msra.mxu0 %v883
        %973 = vmatprep.subr.bf16.mxu0 0
        %974 = vmatpush1.bf16.msra.mxu0 %v880
        %975 = vmatprep.subr.bf16.mxu0 0
        %976 = vmatpush1.bf16.msra.mxu0 %v877
        %977 = vmatprep.subr.bf16.mxu0 0
        %978 = vmatpush1.bf16.msra.mxu0 %v874
        %979 = vmatprep.subr.bf16.mxu0 0
        %980 = vmatpush2.bf16.msra.mxu0 0
        %981 = vmatprep.subr.bf16.mxu0 0
        %982 = vmatpush2.bf16.msra.mxu0 0
        %983 = vmatprep.subr.bf16.mxu0 0
        %984 = vmatpush2.bf16.msra.mxu0 0
        %985 = vmatprep.subr.bf16.mxu0 0
        %986 = vmatpush2.bf16.msra.mxu0 0
        %987 = vmatprep.subr.bf16.mxu0 0
        %988 = vmatpush2.bf16.msra.mxu0 0
        %989 = vmatprep.subr.bf16.mxu0 0
        %990 = vmatpush2.bf16.msra.mxu0 0
        %991 = vmatprep.subr.bf16.mxu0 0
        %992 = vmatpush2.bf16.msra.mxu0 0
        %993 = vmatprep.subr.bf16.mxu0 0
        %994 = vmatpush2.bf16.msra.mxu0 0
        %995 = vmatprep.mubr.bf16.mxu0 0
        %996 = vmatmul.mubr.bf16.gmra.mxu0 %v759
        %v997 = vpop.f32.mrf.mxu0
        %v998 = vadd.f32 0.0, %v997
        %v999 = vpop.f32.mrf.mxu0
        %v1000 = vpop.f32.mrf.mxu0
        %v1001 = vadd.f32 0.0, %v1000
        %v1002 = vpop.f32.mrf.mxu0
        %1003 = vdwg.mxu0
        %v1004 = vrot.slane %v955, 6
        %v1005 = vrot.slane %v959, 6
        %vm1006 = vcmp.lt.s32.totalorder %v753, 2
        %v1007 = vsel %vm1006, %v1004, %v1005
        %v1008 = vsel %vm1006, %v1005, %v1004
        %vm1009 = vcmp.ge.s32.totalorder %v753, 2
        %vm1010 = vcmp.ge.s32.totalorder %v754, 2
        %v1011 = vsel %vm1009, %v1008, 0.0
        %v1012 = vsel %vm1010, %v1007, 0.0
        %v1013 = vrot.slane %v957, 7
        %v1014 = vrot.slane %v961, 7
        %vm1015 = vcmp.lt.s32.totalorder %v753, 1
        %v1016 = vsel %vm1015, %v1013, %v1014
        %v1017 = vsel %vm1015, %v1014, %v1013
        %vm1018 = vcmp.ge.s32.totalorder %v753, 1
        %vm1019 = vcmp.ge.s32.totalorder %v754, 1
        %v1020 = vsel %vm1018, %v1017, 0.0
        %v1021 = vsel %vm1019, %v1016, 0.0
        %v1022 = vadd.f32 %v1011, %v1020
        %v1023 = vadd.f32 %v1012, %v1021
        %v1024 = vadd.f32 %v1022, %v998
        %v1025 = vadd.f32 %v1023, %v1001
        %v1026 = vld [vmem:[%s2] sm:$0x1]
        %v1028 = vlaneseq
        %v1029 = vshrl.u32 %v1028, 7
        %v1030 = vsub.s32 0, %v1029
        %v1031 = vrot.slane %v1026, %v1030
        %v1033 = vadd.f32 %v1024, %v1031
        %v1034 = vadd.f32 %v1025, %v1031
        %v1035 = vmax.f32 %v1033, 0.0
        %v1036 = vmax.f32 %v1034, 0.0
        %v1037 = vpack.c.bf16 %v1036, %v1035
        %v1038 = vld [vmem:[#allocation7] sm:$0xff]
        %v1039 = vld [vmem:[#allocation7 + $0x8] sm:$0xf]
        %v1040 = vld [vmem:[#allocation7 + $0xc] sm:$0xff]
        %v1041 = vld [vmem:[#allocation7 + $0x14] sm:$0xf]
        %v1042 = vld [vmem:[#allocation7 + $0x18] sm:$0xff]
        %v1043 = vld [vmem:[#allocation7 + $0x20] sm:$0xf]
        %v1044 = vld [vmem:[#allocation7 + $0x24] sm:$0xff]
        %v1045 = vld [vmem:[#allocation7 + $0x2c] sm:$0xf]
        %v1046 = vld [vmem:[#allocation7 + $0x30] sm:$0xff]
        %v1047 = vld [vmem:[#allocation7 + $0x38] sm:$0xf]
        %v1048 = vld [vmem:[#allocation7 + $0x3c] sm:$0xff]
        %v1049 = vld [vmem:[#allocation7 + $0x44] sm:$0xf]
        %v1050 = vld [vmem:[#allocation7 + $0x48] sm:$0xff]
        %v1051 = vld [vmem:[#allocation7 + $0x50] sm:$0xf]
        %v1052 = vld [vmem:[#allocation7 + $0x54] sm:$0xff]
        %v1053 = vld [vmem:[#allocation7 + $0x5c] sm:$0xf]
        %v1054 = vld [vmem:[#allocation7 + $0x60] sm:$0xff]
        %v1055 = vld [vmem:[#allocation7 + $0x68] sm:$0xf]
        %v1056 = vld [vmem:[#allocation7 + $0x6c] sm:$0xff]
        %v1057 = vld [vmem:[#allocation7 + $0x74] sm:$0xf]
        %v1058 = vld [vmem:[#allocation7 + $0x78] sm:$0xff]
        %v1059 = vld [vmem:[#allocation7 + $0x80] sm:$0xf]
        %v1060 = vld [vmem:[#allocation7 + $0x84] sm:$0xff]
        %v1061 = vld [vmem:[#allocation7 + $0x8c] sm:$0xf]
        %v1062 = vld [vmem:[#allocation7 + $0x90] sm:$0xff]
        %v1063 = vld [vmem:[#allocation7 + $0x98] sm:$0xf]
        %v1064 = vld [vmem:[#allocation7 + $0x9c] sm:$0xff]
        %v1065 = vld [vmem:[#allocation7 + $0xa4] sm:$0xf]
        %v1066 = vld [vmem:[#allocation7 + $0xa8] sm:$0xff]
        %v1067 = vld [vmem:[#allocation7 + $0xb0] sm:$0xf]
        %v1068 = vld [vmem:[#allocation7 + $0xb4] sm:$0xff]
        %v1069 = vld [vmem:[#allocation7 + $0xbc] sm:$0xf]
        %v1102 = vunpack.c.l.b16 %v1038
        %v1103 = vunpack.c.h.b16 %v1038
        %v1104 = vunpack.c.l.b16 %v1039
        %v1105 = vunpack.c.l.b16 %v1040
        %v1106 = vunpack.c.h.b16 %v1040
        %v1107 = vunpack.c.l.b16 %v1041
        %v1108 = vunpack.c.l.b16 %v1042
        %v1109 = vunpack.c.h.b16 %v1042
        %v1110 = vunpack.c.l.b16 %v1043
        %v1111 = vunpack.c.l.b16 %v1044
        %v1112 = vunpack.c.h.b16 %v1044
        %v1113 = vunpack.c.l.b16 %v1045
        %v1114 = vunpack.c.l.b16 %v1046
        %v1115 = vunpack.c.h.b16 %v1046
        %v1116 = vunpack.c.l.b16 %v1047
        %v1117 = vunpack.c.l.b16 %v1048
        %v1118 = vunpack.c.h.b16 %v1048
        %v1119 = vunpack.c.l.b16 %v1049
        %v1120 = vunpack.c.l.b16 %v1050
        %v1121 = vunpack.c.h.b16 %v1050
        %v1122 = vunpack.c.l.b16 %v1051
        %v1123 = vunpack.c.l.b16 %v1052
        %v1124 = vunpack.c.h.b16 %v1052
        %v1125 = vunpack.c.l.b16 %v1053
        %v1126 = vunpack.c.l.b16 %v1054
        %v1127 = vunpack.c.h.b16 %v1054
        %v1128 = vunpack.c.l.b16 %v1055
        %v1129 = vunpack.c.l.b16 %v1056
        %v1130 = vunpack.c.h.b16 %v1056
        %v1131 = vunpack.c.l.b16 %v1057
        %v1132 = vunpack.c.l.b16 %v1058
        %v1133 = vunpack.c.h.b16 %v1058
        %v1134 = vunpack.c.l.b16 %v1059
        %v1135 = vunpack.c.l.b16 %v1060
        %v1136 = vunpack.c.h.b16 %v1060
        %v1137 = vunpack.c.l.b16 %v1061
        %v1138 = vunpack.c.l.b16 %v1062
        %v1139 = vunpack.c.h.b16 %v1062
        %v1140 = vunpack.c.l.b16 %v1063
        %v1141 = vunpack.c.l.b16 %v1064
        %v1142 = vunpack.c.h.b16 %v1064
        %v1143 = vunpack.c.l.b16 %v1065
        %v1144 = vunpack.c.l.b16 %v1066
        %v1145 = vunpack.c.h.b16 %v1066
        %v1146 = vunpack.c.l.b16 %v1067
        %v1147 = vunpack.c.l.b16 %v1068
        %v1148 = vunpack.c.h.b16 %v1068
        %v1149 = vunpack.c.l.b16 %v1069
        %v1150 = vpack.c.b16 %v1105, %v1102
        %v1151 = vpack.c.b16 %v1106, %v1103
        %v1152 = vpack.c.b16 %v1107, %v1104
        %v1153 = vpack.c.b16 %v1111, %v1108
        %v1154 = vpack.c.b16 %v1112, %v1109
        %v1155 = vpack.c.b16 %v1113, %v1110
        %v1156 = vpack.c.b16 %v1117, %v1114
        %v1157 = vpack.c.b16 %v1118, %v1115
        %v1158 = vpack.c.b16 %v1119, %v1116
        %v1159 = vpack.c.b16 %v1123, %v1120
        %v1160 = vpack.c.b16 %v1124, %v1121
        %v1161 = vpack.c.b16 %v1125, %v1122
        %v1162 = vpack.c.b16 %v1129, %v1126
        %v1163 = vpack.c.b16 %v1130, %v1127
        %v1164 = vpack.c.b16 %v1131, %v1128
        %v1165 = vpack.c.b16 %v1135, %v1132
        %v1166 = vpack.c.b16 %v1136, %v1133
        %v1167 = vpack.c.b16 %v1137, %v1134
        %v1168 = vpack.c.b16 %v1141, %v1138
        %v1169 = vpack.c.b16 %v1142, %v1139
        %v1170 = vpack.c.b16 %v1143, %v1140
        %v1171 = vpack.c.b16 %v1147, %v1144
        %v1172 = vpack.c.b16 %v1148, %v1145
        %v1173 = vpack.c.b16 %v1149, %v1146
        %1198 = vmatprep.subr.bf16.mxu0 %v1172
        %1199 = vmatpush1.bf16.msra.mxu0 %v1171
        %1200 = vmatprep.subr.bf16.mxu0 %v1169
        %1201 = vmatpush1.bf16.msra.mxu0 %v1168
        %1202 = vmatprep.subr.bf16.mxu0 %v1166
        %1203 = vmatpush1.bf16.msra.mxu0 %v1165
        %1204 = vmatprep.subr.bf16.mxu0 %v1163
        %1205 = vmatpush1.bf16.msra.mxu0 %v1162
        %1206 = vmatprep.subr.bf16.mxu0 %v1160
        %1207 = vmatpush1.bf16.msra.mxu0 %v1159
        %1208 = vmatprep.subr.bf16.mxu0 %v1157
        %1209 = vmatpush1.bf16.msra.mxu0 %v1156
        %1210 = vmatprep.subr.bf16.mxu0 %v1154
        %1211 = vmatpush1.bf16.msra.mxu0 %v1153
        %1212 = vmatprep.subr.bf16.mxu0 %v1151
        %1213 = vmatpush1.bf16.msra.mxu0 %v1150
        %1214 = vmatprep.subr.bf16.mxu0 0
        %1215 = vmatpush2.bf16.msra.mxu0 0
        %1216 = vmatprep.subr.bf16.mxu0 0
        %1217 = vmatpush2.bf16.msra.mxu0 0
        %1218 = vmatprep.subr.bf16.mxu0 0
        %1219 = vmatpush2.bf16.msra.mxu0 0
        %1220 = vmatprep.subr.bf16.mxu0 0
        %1221 = vmatpush2.bf16.msra.mxu0 0
        %1222 = vmatprep.subr.bf16.mxu0 0
        %1223 = vmatpush2.bf16.msra.mxu0 0
        %1224 = vmatprep.subr.bf16.mxu0 0
        %1225 = vmatpush2.bf16.msra.mxu0 0
        %1226 = vmatprep.subr.bf16.mxu0 0
        %1227 = vmatpush2.bf16.msra.mxu0 0
        %1228 = vmatprep.subr.bf16.mxu0 0
        %1229 = vmatpush2.bf16.msra.mxu0 0
        %1230 = vmatprep.mubr.bf16.mxu0 0
        %1231 = vmatmul.mubr.bf16.gmra.mxu0 %v1037
        %v1232 = vpop.f32.mrf.mxu0
        %v1233 = vadd.f32 0.0, %v1232
        %v1234 = vpop.f32.mrf.mxu0
        %v1235 = vadd.f32 0.0, %v1234
        %v1236 = vpop.f32.mrf.mxu0
        %v1237 = vadd.f32 0.0, %v1236
        %v1238 = vpop.f32.mrf.mxu0
        %v1239 = vadd.f32 0.0, %v1238
        %1240 = vdwg.mxu0
        %1241 = vmatprep.subr.bf16.mxu0 0
        %1242 = vmatpush1.bf16.msra.mxu0 %v1173
        %1243 = vmatprep.subr.bf16.mxu0 0
        %1244 = vmatpush1.bf16.msra.mxu0 %v1170
        %1245 = vmatprep.subr.bf16.mxu0 0
        %1246 = vmatpush1.bf16.msra.mxu0 %v1167
        %1247 = vmatprep.subr.bf16.mxu0 0
        %1248 = vmatpush1.bf16.msra.mxu0 %v1164
        %1249 = vmatprep.subr.bf16.mxu0 0
        %1250 = vmatpush1.bf16.msra.mxu0 %v1161
        %1251 = vmatprep.subr.bf16.mxu0 0
        %1252 = vmatpush1.bf16.msra.mxu0 %v1158
        %1253 = vmatprep.subr.bf16.mxu0 0
        %1254 = vmatpush1.bf16.msra.mxu0 %v1155
        %1255 = vmatprep.subr.bf16.mxu0 0
        %1256 = vmatpush1.bf16.msra.mxu0 %v1152
        %1257 = vmatprep.subr.bf16.mxu0 0
        %1258 = vmatpush2.bf16.msra.mxu0 0
        %1259 = vmatprep.subr.bf16.mxu0 0
        %1260 = vmatpush2.bf16.msra.mxu0 0
        %1261 = vmatprep.subr.bf16.mxu0 0
        %1262 = vmatpush2.bf16.msra.mxu0 0
        %1263 = vmatprep.subr.bf16.mxu0 0
        %1264 = vmatpush2.bf16.msra.mxu0 0
        %1265 = vmatprep.subr.bf16.mxu0 0
        %1266 = vmatpush2.bf16.msra.mxu0 0
        %1267 = vmatprep.subr.bf16.mxu0 0
        %1268 = vmatpush2.bf16.msra.mxu0 0
        %1269 = vmatprep.subr.bf16.mxu0 0
        %1270 = vmatpush2.bf16.msra.mxu0 0
        %1271 = vmatprep.subr.bf16.mxu0 0
        %1272 = vmatpush2.bf16.msra.mxu0 0
        %1273 = vmatprep.mubr.bf16.mxu0 0
        %1274 = vmatmul.mubr.bf16.gmra.mxu0 %v1037
        %v1275 = vpop.f32.mrf.mxu0
        %v1276 = vadd.f32 0.0, %v1275
        %v1277 = vpop.f32.mrf.mxu0
        %v1278 = vpop.f32.mrf.mxu0
        %v1279 = vadd.f32 0.0, %v1278
        %v1280 = vpop.f32.mrf.mxu0
        %1281 = vdwg.mxu0
        %v1282 = vrot.slane %v1233, 6
        %v1283 = vrot.slane %v1237, 6
        %v1284 = vsel %vm1006, %v1282, %v1283
        %v1285 = vsel %vm1006, %v1283, %v1282
        %v1286 = vsel %vm1009, %v1285, 0.0
        %v1287 = vsel %vm1010, %v1284, 0.0
        %v1288 = vrot.slane %v1235, 7
        %v1289 = vrot.slane %v1239, 7
        %v1290 = vsel %vm1015, %v1288, %v1289
        %v1291 = vsel %vm1015, %v1289, %v1288
        %v1292 = vsel %vm1018, %v1291, 0.0
        %v1293 = vsel %vm1019, %v1290, 0.0
        %v1294 = vadd.f32 %v1286, %v1292
        %v1295 = vadd.f32 %v1287, %v1293
        %v1296 = vadd.f32 %v1294, %v1276
        %v1297 = vadd.f32 %v1295, %v1279
        %v1298 = vld [vmem:[%s4] sm:$0x1]
        %v1300 = vlaneseq
        %v1301 = vshrl.u32 %v1300, 7
        %v1302 = vsub.s32 0, %v1301
        %v1303 = vrot.slane %v1298, %v1302
        %v1305 = vadd.f32 %v1296, %v1303
        %v1306 = vadd.f32 %v1297, %v1303
        %v1307 = vmax.f32 %v1305, 0.0
        %v1308 = vmax.f32 %v1306, 0.0
        %v1309 = vadd.f32 %v1307, %v757
        %v1310 = vadd.f32 %v1308, %v758
        %v1311 = vmax.f32 %v1309, 0.0
        %v1312 = vmax.f32 %v1310, 0.0
        %v1313 = vpack.c.bf16 %v1312, %v1311
        %v1314 = vld [vmem:[#allocation8] sm:$0xff]
        %v1315 = vld [vmem:[#allocation8 + $0x8] sm:$0xf]
        %v1316 = vld [vmem:[#allocation8 + $0xc] sm:$0xff]
        %v1317 = vld [vmem:[#allocation8 + $0x14] sm:$0xf]
        %v1318 = vld [vmem:[#allocation8 + $0x18] sm:$0xff]
        %v1319 = vld [vmem:[#allocation8 + $0x20] sm:$0xf]
        %v1320 = vld [vmem:[#allocation8 + $0x24] sm:$0xff]
        %v1321 = vld [vmem:[#allocation8 + $0x2c] sm:$0xf]
        %v1322 = vld [vmem:[#allocation8 + $0x30] sm:$0xff]
        %v1323 = vld [vmem:[#allocation8 + $0x38] sm:$0xf]
        %v1324 = vld [vmem:[#allocation8 + $0x3c] sm:$0xff]
        %v1325 = vld [vmem:[#allocation8 + $0x44] sm:$0xf]
        %v1326 = vld [vmem:[#allocation8 + $0x48] sm:$0xff]
        %v1327 = vld [vmem:[#allocation8 + $0x50] sm:$0xf]
        %v1328 = vld [vmem:[#allocation8 + $0x54] sm:$0xff]
        %v1329 = vld [vmem:[#allocation8 + $0x5c] sm:$0xf]
        %v1330 = vld [vmem:[#allocation8 + $0x60] sm:$0xff]
        %v1331 = vld [vmem:[#allocation8 + $0x68] sm:$0xf]
        %v1332 = vld [vmem:[#allocation8 + $0x6c] sm:$0xff]
        %v1333 = vld [vmem:[#allocation8 + $0x74] sm:$0xf]
        %v1334 = vld [vmem:[#allocation8 + $0x78] sm:$0xff]
        %v1335 = vld [vmem:[#allocation8 + $0x80] sm:$0xf]
        %v1336 = vld [vmem:[#allocation8 + $0x84] sm:$0xff]
        %v1337 = vld [vmem:[#allocation8 + $0x8c] sm:$0xf]
        %v1338 = vld [vmem:[#allocation8 + $0x90] sm:$0xff]
        %v1339 = vld [vmem:[#allocation8 + $0x98] sm:$0xf]
        %v1340 = vld [vmem:[#allocation8 + $0x9c] sm:$0xff]
        %v1341 = vld [vmem:[#allocation8 + $0xa4] sm:$0xf]
        %v1342 = vld [vmem:[#allocation8 + $0xa8] sm:$0xff]
        %v1343 = vld [vmem:[#allocation8 + $0xb0] sm:$0xf]
        %v1344 = vld [vmem:[#allocation8 + $0xb4] sm:$0xff]
        %v1345 = vld [vmem:[#allocation8 + $0xbc] sm:$0xf]
        %v1378 = vunpack.c.l.b16 %v1314
        %v1379 = vunpack.c.h.b16 %v1314
        %v1380 = vunpack.c.l.b16 %v1315
        %v1381 = vunpack.c.l.b16 %v1316
        %v1382 = vunpack.c.h.b16 %v1316
        %v1383 = vunpack.c.l.b16 %v1317
        %v1384 = vunpack.c.l.b16 %v1318
        %v1385 = vunpack.c.h.b16 %v1318
        %v1386 = vunpack.c.l.b16 %v1319
        %v1387 = vunpack.c.l.b16 %v1320
        %v1388 = vunpack.c.h.b16 %v1320
        %v1389 = vunpack.c.l.b16 %v1321
        %v1390 = vunpack.c.l.b16 %v1322
        %v1391 = vunpack.c.h.b16 %v1322
        %v1392 = vunpack.c.l.b16 %v1323
        %v1393 = vunpack.c.l.b16 %v1324
        %v1394 = vunpack.c.h.b16 %v1324
        %v1395 = vunpack.c.l.b16 %v1325
        %v1396 = vunpack.c.l.b16 %v1326
        %v1397 = vunpack.c.h.b16 %v1326
        %v1398 = vunpack.c.l.b16 %v1327
        %v1399 = vunpack.c.l.b16 %v1328
        %v1400 = vunpack.c.h.b16 %v1328
        %v1401 = vunpack.c.l.b16 %v1329
        %v1402 = vunpack.c.l.b16 %v1330
        %v1403 = vunpack.c.h.b16 %v1330
        %v1404 = vunpack.c.l.b16 %v1331
        %v1405 = vunpack.c.l.b16 %v1332
        %v1406 = vunpack.c.h.b16 %v1332
        %v1407 = vunpack.c.l.b16 %v1333
        %v1408 = vunpack.c.l.b16 %v1334
        %v1409 = vunpack.c.h.b16 %v1334
        %v1410 = vunpack.c.l.b16 %v1335
        %v1411 = vunpack.c.l.b16 %v1336
        %v1412 = vunpack.c.h.b16 %v1336
        %v1413 = vunpack.c.l.b16 %v1337
        %v1414 = vunpack.c.l.b16 %v1338
        %v1415 = vunpack.c.h.b16 %v1338
        %v1416 = vunpack.c.l.b16 %v1339
        %v1417 = vunpack.c.l.b16 %v1340
        %v1418 = vunpack.c.h.b16 %v1340
        %v1419 = vunpack.c.l.b16 %v1341
        %v1420 = vunpack.c.l.b16 %v1342
        %v1421 = vunpack.c.h.b16 %v1342
        %v1422 = vunpack.c.l.b16 %v1343
        %v1423 = vunpack.c.l.b16 %v1344
        %v1424 = vunpack.c.h.b16 %v1344
        %v1425 = vunpack.c.l.b16 %v1345
        %v1426 = vpack.c.b16 %v1381, %v1378
        %v1427 = vpack.c.b16 %v1382, %v1379
        %v1428 = vpack.c.b16 %v1383, %v1380
        %v1429 = vpack.c.b16 %v1387, %v1384
        %v1430 = vpack.c.b16 %v1388, %v1385
        %v1431 = vpack.c.b16 %v1389, %v1386
        %v1432 = vpack.c.b16 %v1393, %v1390
        %v1433 = vpack.c.b16 %v1394, %v1391
        %v1434 = vpack.c.b16 %v1395, %v1392
        %v1435 = vpack.c.b16 %v1399, %v1396
        %v1436 = vpack.c.b16 %v1400, %v1397
        %v1437 = vpack.c.b16 %v1401, %v1398
        %v1438 = vpack.c.b16 %v1405, %v1402
        %v1439 = vpack.c.b16 %v1406, %v1403
        %v1440 = vpack.c.b16 %v1407, %v1404
        %v1441 = vpack.c.b16 %v1411, %v1408
        %v1442 = vpack.c.b16 %v1412, %v1409
        %v1443 = vpack.c.b16 %v1413, %v1410
        %v1444 = vpack.c.b16 %v1417, %v1414
        %v1445 = vpack.c.b16 %v1418, %v1415
        %v1446 = vpack.c.b16 %v1419, %v1416
        %v1447 = vpack.c.b16 %v1423, %v1420
        %v1448 = vpack.c.b16 %v1424, %v1421
        %v1449 = vpack.c.b16 %v1425, %v1422
        %1474 = vmatprep.subr.bf16.mxu0 %v1448
        %1475 = vmatpush1.bf16.msra.mxu0 %v1447
        %1476 = vmatprep.subr.bf16.mxu0 %v1445
        %1477 = vmatpush1.bf16.msra.mxu0 %v1444
        %1478 = vmatprep.subr.bf16.mxu0 %v1442
        %1479 = vmatpush1.bf16.msra.mxu0 %v1441
        %1480 = vmatprep.subr.bf16.mxu0 %v1439
        %1481 = vmatpush1.bf16.msra.mxu0 %v1438
        %1482 = vmatprep.subr.bf16.mxu0 %v1436
        %1483 = vmatpush1.bf16.msra.mxu0 %v1435
        %1484 = vmatprep.subr.bf16.mxu0 %v1433
        %1485 = vmatpush1.bf16.msra.mxu0 %v1432
        %1486 = vmatprep.subr.bf16.mxu0 %v1430
        %1487 = vmatpush1.bf16.msra.mxu0 %v1429
        %1488 = vmatprep.subr.bf16.mxu0 %v1427
        %1489 = vmatpush1.bf16.msra.mxu0 %v1426
        %1490 = vmatprep.subr.bf16.mxu0 0
        %1491 = vmatpush2.bf16.msra.mxu0 0
        %1492 = vmatprep.subr.bf16.mxu0 0
        %1493 = vmatpush2.bf16.msra.mxu0 0
        %1494 = vmatprep.subr.bf16.mxu0 0
        %1495 = vmatpush2.bf16.msra.mxu0 0
        %1496 = vmatprep.subr.bf16.mxu0 0
        %1497 = vmatpush2.bf16.msra.mxu0 0
        %1498 = vmatprep.subr.bf16.mxu0 0
        %1499 = vmatpush2.bf16.msra.mxu0 0
        %1500 = vmatprep.subr.bf16.mxu0 0
        %1501 = vmatpush2.bf16.msra.mxu0 0
        %1502 = vmatprep.subr.bf16.mxu0 0
        %1503 = vmatpush2.bf16.msra.mxu0 0
        %1504 = vmatprep.subr.bf16.mxu0 0
        %1505 = vmatpush2.bf16.msra.mxu0 0
        %1506 = vmatprep.mubr.bf16.mxu0 0
        %1507 = vmatmul.mubr.bf16.gmra.mxu0 %v1313
        %v1508 = vpop.f32.mrf.mxu0
        %v1509 = vadd.f32 0.0, %v1508
        %v1510 = vpop.f32.mrf.mxu0
        %v1511 = vadd.f32 0.0, %v1510
        %v1512 = vpop.f32.mrf.mxu0
        %v1513 = vadd.f32 0.0, %v1512
        %v1514 = vpop.f32.mrf.mxu0
        %v1515 = vadd.f32 0.0, %v1514
        %1516 = vdwg.mxu0
        %1517 = vmatprep.subr.bf16.mxu0 0
        %1518 = vmatpush1.bf16.msra.mxu0 %v1449
        %1519 = vmatprep.subr.bf16.mxu0 0
        %1520 = vmatpush1.bf16.msra.mxu0 %v1446
        %1521 = vmatprep.subr.bf16.mxu0 0
        %1522 = vmatpush1.bf16.msra.mxu0 %v1443
        %1523 = vmatprep.subr.bf16.mxu0 0
        %1524 = vmatpush1.bf16.msra.mxu0 %v1440
        %1525 = vmatprep.subr.bf16.mxu0 0
        %1526 = vmatpush1.bf16.msra.mxu0 %v1437
        %1527 = vmatprep.subr.bf16.mxu0 0
        %1528 = vmatpush1.bf16.msra.mxu0 %v1434
        %1529 = vmatprep.subr.bf16.mxu0 0
        %1530 = vmatpush1.bf16.msra.mxu0 %v1431
        %1531 = vmatprep.subr.bf16.mxu0 0
        %1532 = vmatpush1.bf16.msra.mxu0 %v1428
        %1533 = vmatprep.subr.bf16.mxu0 0
        %1534 = vmatpush2.bf16.msra.mxu0 0
        %1535 = vmatprep.subr.bf16.mxu0 0
        %1536 = vmatpush2.bf16.msra.mxu0 0
        %1537 = vmatprep.subr.bf16.mxu0 0
        %1538 = vmatpush2.bf16.msra.mxu0 0
        %1539 = vmatprep.subr.bf16.mxu0 0
        %1540 = vmatpush2.bf16.msra.mxu0 0
        %1541 = vmatprep.subr.bf16.mxu0 0
        %1542 = vmatpush2.bf16.msra.mxu0 0
        %1543 = vmatprep.subr.bf16.mxu0 0
        %1544 = vmatpush2.bf16.msra.mxu0 0
        %1545 = vmatprep.subr.bf16.mxu0 0
        %1546 = vmatpush2.bf16.msra.mxu0 0
        %1547 = vmatprep.subr.bf16.mxu0 0
        %1548 = vmatpush2.bf16.msra.mxu0 0
        %1549 = vmatprep.mubr.bf16.mxu0 0
        %1550 = vmatmul.mubr.bf16.gmra.mxu0 %v1313
        %v1551 = vpop.f32.mrf.mxu0
        %v1552 = vadd.f32 0.0, %v1551
        %v1553 = vpop.f32.mrf.mxu0
        %v1554 = vpop.f32.mrf.mxu0
        %v1555 = vadd.f32 0.0, %v1554
        %v1556 = vpop.f32.mrf.mxu0
        %1557 = vdwg.mxu0
        %v1558 = vrot.slane %v1509, 4
        %v1559 = vrot.slane %v1513, 4
        %vm1560 = vcmp.lt.s32.totalorder %v753, 4
        %v1561 = vsel %vm1560, %v1558, %v1559
        %v1562 = vsel %vm1560, %v1559, %v1558
        %vm1563 = vcmp.ge.s32.totalorder %v753, 4
        %vm1564 = vcmp.ge.s32.totalorder %v754, 4
        %v1565 = vsel %vm1563, %v1562, 0.0
        %v1566 = vsel %vm1564, %v1561, 0.0
        %v1567 = vrot.slane %v1511, 6
        %v1568 = vrot.slane %v1515, 6
        %v1569 = vsel %vm1006, %v1567, %v1568
        %v1570 = vsel %vm1006, %v1568, %v1567
        %v1571 = vsel %vm1009, %v1570, 0.0
        %v1572 = vsel %vm1010, %v1569, 0.0
        %v1573 = vadd.f32 %v1565, %v1571
        %v1574 = vadd.f32 %v1566, %v1572
        %v1575 = vadd.f32 %v1573, %v1552
        %v1576 = vadd.f32 %v1574, %v1555
        %v1577 = vld [vmem:[%s6] sm:$0x1]
        %v1579 = vlaneseq
        %v1580 = vshrl.u32 %v1579, 7
        %v1581 = vsub.s32 0, %v1580
        %v1582 = vrot.slane %v1577, %v1581
        %v1584 = vadd.f32 %v1575, %v1582
        %v1585 = vadd.f32 %v1576, %v1582
        %v1586 = vmax.f32 %v1584, 0.0
        %v1587 = vmax.f32 %v1585, 0.0
        %v1588 = vpack.c.bf16 %v1587, %v1586
        %v1589 = vld [vmem:[#allocation10] sm:$0xff]
        %v1590 = vld [vmem:[#allocation10 + $0x8] sm:$0xf]
        %v1591 = vld [vmem:[#allocation10 + $0xc] sm:$0xff]
        %v1592 = vld [vmem:[#allocation10 + $0x14] sm:$0xf]
        %v1593 = vld [vmem:[#allocation10 + $0x18] sm:$0xff]
        %v1594 = vld [vmem:[#allocation10 + $0x20] sm:$0xf]
        %v1595 = vld [vmem:[#allocation10 + $0x24] sm:$0xff]
        %v1596 = vld [vmem:[#allocation10 + $0x2c] sm:$0xf]
        %v1597 = vld [vmem:[#allocation10 + $0x30] sm:$0xff]
        %v1598 = vld [vmem:[#allocation10 + $0x38] sm:$0xf]
        %v1599 = vld [vmem:[#allocation10 + $0x3c] sm:$0xff]
        %v1600 = vld [vmem:[#allocation10 + $0x44] sm:$0xf]
        %v1601 = vld [vmem:[#allocation10 + $0x48] sm:$0xff]
        %v1602 = vld [vmem:[#allocation10 + $0x50] sm:$0xf]
        %v1603 = vld [vmem:[#allocation10 + $0x54] sm:$0xff]
        %v1604 = vld [vmem:[#allocation10 + $0x5c] sm:$0xf]
        %v1605 = vld [vmem:[#allocation10 + $0x60] sm:$0xff]
        %v1606 = vld [vmem:[#allocation10 + $0x68] sm:$0xf]
        %v1607 = vld [vmem:[#allocation10 + $0x6c] sm:$0xff]
        %v1608 = vld [vmem:[#allocation10 + $0x74] sm:$0xf]
        %v1609 = vld [vmem:[#allocation10 + $0x78] sm:$0xff]
        %v1610 = vld [vmem:[#allocation10 + $0x80] sm:$0xf]
        %v1611 = vld [vmem:[#allocation10 + $0x84] sm:$0xff]
        %v1612 = vld [vmem:[#allocation10 + $0x8c] sm:$0xf]
        %v1613 = vld [vmem:[#allocation10 + $0x90] sm:$0xff]
        %v1614 = vld [vmem:[#allocation10 + $0x98] sm:$0xf]
        %v1615 = vld [vmem:[#allocation10 + $0x9c] sm:$0xff]
        %v1616 = vld [vmem:[#allocation10 + $0xa4] sm:$0xf]
        %v1617 = vld [vmem:[#allocation10 + $0xa8] sm:$0xff]
        %v1618 = vld [vmem:[#allocation10 + $0xb0] sm:$0xf]
        %v1619 = vld [vmem:[#allocation10 + $0xb4] sm:$0xff]
        %v1620 = vld [vmem:[#allocation10 + $0xbc] sm:$0xf]
        %v1653 = vunpack.c.l.b16 %v1589
        %v1654 = vunpack.c.h.b16 %v1589
        %v1655 = vunpack.c.l.b16 %v1590
        %v1656 = vunpack.c.l.b16 %v1591
        %v1657 = vunpack.c.h.b16 %v1591
        %v1658 = vunpack.c.l.b16 %v1592
        %v1659 = vunpack.c.l.b16 %v1593
        %v1660 = vunpack.c.h.b16 %v1593
        %v1661 = vunpack.c.l.b16 %v1594
        %v1662 = vunpack.c.l.b16 %v1595
        %v1663 = vunpack.c.h.b16 %v1595
        %v1664 = vunpack.c.l.b16 %v1596
        %v1665 = vunpack.c.l.b16 %v1597
        %v1666 = vunpack.c.h.b16 %v1597
        %v1667 = vunpack.c.l.b16 %v1598
        %v1668 = vunpack.c.l.b16 %v1599
        %v1669 = vunpack.c.h.b16 %v1599
        %v1670 = vunpack.c.l.b16 %v1600
        %v1671 = vunpack.c.l.b16 %v1601
        %v1672 = vunpack.c.h.b16 %v1601
        %v1673 = vunpack.c.l.b16 %v1602
        %v1674 = vunpack.c.l.b16 %v1603
        %v1675 = vunpack.c.h.b16 %v1603
        %v1676 = vunpack.c.l.b16 %v1604
        %v1677 = vunpack.c.l.b16 %v1605
        %v1678 = vunpack.c.h.b16 %v1605
        %v1679 = vunpack.c.l.b16 %v1606
        %v1680 = vunpack.c.l.b16 %v1607
        %v1681 = vunpack.c.h.b16 %v1607
        %v1682 = vunpack.c.l.b16 %v1608
        %v1683 = vunpack.c.l.b16 %v1609
        %v1684 = vunpack.c.h.b16 %v1609
        %v1685 = vunpack.c.l.b16 %v1610
        %v1686 = vunpack.c.l.b16 %v1611
        %v1687 = vunpack.c.h.b16 %v1611
        %v1688 = vunpack.c.l.b16 %v1612
        %v1689 = vunpack.c.l.b16 %v1613
        %v1690 = vunpack.c.h.b16 %v1613
        %v1691 = vunpack.c.l.b16 %v1614
        %v1692 = vunpack.c.l.b16 %v1615
        %v1693 = vunpack.c.h.b16 %v1615
        %v1694 = vunpack.c.l.b16 %v1616
        %v1695 = vunpack.c.l.b16 %v1617
        %v1696 = vunpack.c.h.b16 %v1617
        %v1697 = vunpack.c.l.b16 %v1618
        %v1698 = vunpack.c.l.b16 %v1619
        %v1699 = vunpack.c.h.b16 %v1619
        %v1700 = vunpack.c.l.b16 %v1620
        %v1701 = vpack.c.b16 %v1656, %v1653
        %v1702 = vpack.c.b16 %v1657, %v1654
        %v1703 = vpack.c.b16 %v1658, %v1655
        %v1704 = vpack.c.b16 %v1662, %v1659
        %v1705 = vpack.c.b16 %v1663, %v1660
        %v1706 = vpack.c.b16 %v1664, %v1661
        %v1707 = vpack.c.b16 %v1668, %v1665
        %v1708 = vpack.c.b16 %v1669, %v1666
        %v1709 = vpack.c.b16 %v1670, %v1667
        %v1710 = vpack.c.b16 %v1674, %v1671
        %v1711 = vpack.c.b16 %v1675, %v1672
        %v1712 = vpack.c.b16 %v1676, %v1673
        %v1713 = vpack.c.b16 %v1680, %v1677
        %v1714 = vpack.c.b16 %v1681, %v1678
        %v1715 = vpack.c.b16 %v1682, %v1679
        %v1716 = vpack.c.b16 %v1686, %v1683
        %v1717 = vpack.c.b16 %v1687, %v1684
        %v1718 = vpack.c.b16 %v1688, %v1685
        %v1719 = vpack.c.b16 %v1692, %v1689
        %v1720 = vpack.c.b16 %v1693, %v1690
        %v1721 = vpack.c.b16 %v1694, %v1691
        %v1722 = vpack.c.b16 %v1698, %v1695
        %v1723 = vpack.c.b16 %v1699, %v1696
        %v1724 = vpack.c.b16 %v1700, %v1697
        %1749 = vmatprep.subr.bf16.mxu0 %v1723
        %1750 = vmatpush1.bf16.msra.mxu0 %v1722
        %1751 = vmatprep.subr.bf16.mxu0 %v1720
        %1752 = vmatpush1.bf16.msra.mxu0 %v1719
        %1753 = vmatprep.subr.bf16.mxu0 %v1717
        %1754 = vmatpush1.bf16.msra.mxu0 %v1716
        %1755 = vmatprep.subr.bf16.mxu0 %v1714
        %1756 = vmatpush1.bf16.msra.mxu0 %v1713
        %1757 = vmatprep.subr.bf16.mxu0 %v1711
        %1758 = vmatpush1.bf16.msra.mxu0 %v1710
        %1759 = vmatprep.subr.bf16.mxu0 %v1708
        %1760 = vmatpush1.bf16.msra.mxu0 %v1707
        %1761 = vmatprep.subr.bf16.mxu0 %v1705
        %1762 = vmatpush1.bf16.msra.mxu0 %v1704
        %1763 = vmatprep.subr.bf16.mxu0 %v1702
        %1764 = vmatpush1.bf16.msra.mxu0 %v1701
        %1765 = vmatprep.subr.bf16.mxu0 0
        %1766 = vmatpush2.bf16.msra.mxu0 0
        %1767 = vmatprep.subr.bf16.mxu0 0
        %1768 = vmatpush2.bf16.msra.mxu0 0
        %1769 = vmatprep.subr.bf16.mxu0 0
        %1770 = vmatpush2.bf16.msra.mxu0 0
        %1771 = vmatprep.subr.bf16.mxu0 0
        %1772 = vmatpush2.bf16.msra.mxu0 0
        %1773 = vmatprep.subr.bf16.mxu0 0
        %1774 = vmatpush2.bf16.msra.mxu0 0
        %1775 = vmatprep.subr.bf16.mxu0 0
        %1776 = vmatpush2.bf16.msra.mxu0 0
        %1777 = vmatprep.subr.bf16.mxu0 0
        %1778 = vmatpush2.bf16.msra.mxu0 0
        %1779 = vmatprep.subr.bf16.mxu0 0
        %1780 = vmatpush2.bf16.msra.mxu0 0
        %1781 = vmatprep.mubr.bf16.mxu0 0
        %1782 = vmatmul.mubr.bf16.gmra.mxu0 %v1588
        %v1783 = vpop.f32.mrf.mxu0
        %v1784 = vadd.f32 0.0, %v1783
        %v1785 = vpop.f32.mrf.mxu0
        %v1786 = vadd.f32 0.0, %v1785
        %v1787 = vpop.f32.mrf.mxu0
        %v1788 = vadd.f32 0.0, %v1787
        %v1789 = vpop.f32.mrf.mxu0
        %v1790 = vadd.f32 0.0, %v1789
        %1791 = vdwg.mxu0
        %1792 = vmatprep.subr.bf16.mxu0 0
        %1793 = vmatpush1.bf16.msra.mxu0 %v1724
        %1794 = vmatprep.subr.bf16.mxu0 0
        %1795 = vmatpush1.bf16.msra.mxu0 %v1721
        %1796 = vmatprep.subr.bf16.mxu0 0
        %1797 = vmatpush1.bf16.msra.mxu0 %v1718
        %1798 = vmatprep.subr.bf16.mxu0 0
        %1799 = vmatpush1.bf16.msra.mxu0 %v1715
        %1800 = vmatprep.subr.bf16.mxu0 0
        %1801 = vmatpush1.bf16.msra.mxu0 %v1712
        %1802 = vmatprep.subr.bf16.mxu0 0
        %1803 = vmatpush1.bf16.msra.mxu0 %v1709
        %1804 = vmatprep.subr.bf16.mxu0 0
        %1805 = vmatpush1.bf16.msra.mxu0 %v1706
        %1806 = vmatprep.subr.bf16.mxu0 0
        %1807 = vmatpush1.bf16.msra.mxu0 %v1703
        %1808 = vmatprep.subr.bf16.mxu0 0
        %1809 = vmatpush2.bf16.msra.mxu0 0
        %1810 = vmatprep.subr.bf16.mxu0 0
        %1811 = vmatpush2.bf16.msra.mxu0 0
        %1812 = vmatprep.subr.bf16.mxu0 0
        %1813 = vmatpush2.bf16.msra.mxu0 0
        %1814 = vmatprep.subr.bf16.mxu0 0
        %1815 = vmatpush2.bf16.msra.mxu0 0
        %1816 = vmatprep.subr.bf16.mxu0 0
        %1817 = vmatpush2.bf16.msra.mxu0 0
        %1818 = vmatprep.subr.bf16.mxu0 0
        %1819 = vmatpush2.bf16.msra.mxu0 0
        %1820 = vmatprep.subr.bf16.mxu0 0
        %1821 = vmatpush2.bf16.msra.mxu0 0
        %1822 = vmatprep.subr.bf16.mxu0 0
        %1823 = vmatpush2.bf16.msra.mxu0 0
        %1824 = vmatprep.mubr.bf16.mxu0 0
        %1825 = vmatmul.mubr.bf16.gmra.mxu0 %v1588
        %v1826 = vpop.f32.mrf.mxu0
        %v1827 = vadd.f32 0.0, %v1826
        %v1828 = vpop.f32.mrf.mxu0
        %v1829 = vpop.f32.mrf.mxu0
        %v1830 = vadd.f32 0.0, %v1829
        %v1831 = vpop.f32.mrf.mxu0
        %1832 = vdwg.mxu0
        %v1833 = vrot.slane %v1784, 4
        %v1834 = vrot.slane %v1788, 4
        %v1835 = vsel %vm1560, %v1833, %v1834
        %v1836 = vsel %vm1560, %v1834, %v1833
        %v1837 = vsel %vm1563, %v1836, 0.0
        %v1838 = vsel %vm1564, %v1835, 0.0
        %v1839 = vrot.slane %v1786, 6
        %v1840 = vrot.slane %v1790, 6
        %v1841 = vsel %vm1006, %v1839, %v1840
        %v1842 = vsel %vm1006, %v1840, %v1839
        %v1843 = vsel %vm1009, %v1842, 0.0
        %v1844 = vsel %vm1010, %v1841, 0.0
        %v1845 = vadd.f32 %v1837, %v1843
        %v1846 = vadd.f32 %v1838, %v1844
        %v1847 = vadd.f32 %v1845, %v1827
        %v1848 = vadd.f32 %v1846, %v1830
        %v1849 = vld [vmem:[%s8] sm:$0x1]
        %v1851 = vlaneseq
        %v1852 = vshrl.u32 %v1851, 7
        %v1853 = vsub.s32 0, %v1852
        %v1854 = vrot.slane %v1849, %v1853
        %v1856 = vadd.f32 %v1847, %v1854
        %v1857 = vadd.f32 %v1848, %v1854
        %v1858 = vmax.f32 %v1856, 0.0
        %v1859 = vmax.f32 %v1857, 0.0
        %v1860 = vld [vmem:[#allocation11] sm:$0xf]
        %v1861 = vld [vmem:[#allocation11 + $0x4] sm:$0xf]
        %v1862 = vld [vmem:[#allocation11 + $0x8] sm:$0xf]
        %v1863 = vld [vmem:[#allocation11 + $0xc] sm:$0xf]
        %v1864 = vld [vmem:[#allocation11 + $0x10] sm:$0xf]
        %v1865 = vld [vmem:[#allocation11 + $0x14] sm:$0xf]
        %v1866 = vld [vmem:[#allocation11 + $0x18] sm:$0xf]
        %v1867 = vld [vmem:[#allocation11 + $0x1c] sm:$0xf]
        %v1868 = vld [vmem:[#allocation11 + $0x20] sm:$0xf]
        %v1869 = vld [vmem:[#allocation11 + $0x24] sm:$0xf]
        %v1870 = vld [vmem:[#allocation11 + $0x28] sm:$0xf]
        %v1871 = vld [vmem:[#allocation11 + $0x2c] sm:$0xf]
        %v1872 = vld [vmem:[#allocation11 + $0x30] sm:$0xf]
        %v1873 = vld [vmem:[#allocation11 + $0x34] sm:$0xf]
        %v1874 = vld [vmem:[#allocation11 + $0x38] sm:$0xf]
        %v1875 = vld [vmem:[#allocation11 + $0x3c] sm:$0xf]
        %v1876 = vld [vmem:[%s10] sm:$0x1]
        %v1878 = vlaneseq
        %v1879 = vshrl.u32 %v1878, 7
        %v1880 = vsub.s32 0, %v1879
        %v1881 = vrot.slane %v1876, %v1880
        %v1899 = vunpack.c.l.b16 %v1860
        %v1900 = vunpack.c.l.b16 %v1861
        %v1901 = vunpack.c.l.b16 %v1862
        %v1902 = vunpack.c.l.b16 %v1863
        %v1903 = vunpack.c.l.b16 %v1864
        %v1904 = vunpack.c.l.b16 %v1865
        %v1905 = vunpack.c.l.b16 %v1866
        %v1906 = vunpack.c.l.b16 %v1867
        %v1907 = vunpack.c.l.b16 %v1868
        %v1908 = vunpack.c.l.b16 %v1869
        %v1909 = vunpack.c.l.b16 %v1870
        %v1910 = vunpack.c.l.b16 %v1871
        %v1911 = vunpack.c.l.b16 %v1872
        %v1912 = vunpack.c.l.b16 %v1873
        %v1913 = vunpack.c.l.b16 %v1874
        %v1914 = vunpack.c.l.b16 %v1875
        %v1915 = vpack.c.b16 %v1900, %v1899
        %v1916 = vpack.c.b16 %v1902, %v1901
        %v1917 = vpack.c.b16 %v1904, %v1903
        %v1918 = vpack.c.b16 %v1906, %v1905
        %v1919 = vpack.c.b16 %v1908, %v1907
        %v1920 = vpack.c.b16 %v1910, %v1909
        %v1921 = vpack.c.b16 %v1912, %v1911
        %v1922 = vpack.c.b16 %v1914, %v1913
        %1931 = vmatprep.subr.bf16.mxu0 0
        %1932 = vmatpush1.bf16.msra.mxu0 %v1922
        %1933 = vmatprep.subr.bf16.mxu0 0
        %1934 = vmatpush1.bf16.msra.mxu0 %v1921
        %1935 = vmatprep.subr.bf16.mxu0 0
        %1936 = vmatpush1.bf16.msra.mxu0 %v1920
        %1937 = vmatprep.subr.bf16.mxu0 0
        %1938 = vmatpush1.bf16.msra.mxu0 %v1919
        %1939 = vmatprep.subr.bf16.mxu0 0
        %1940 = vmatpush1.bf16.msra.mxu0 %v1918
        %1941 = vmatprep.subr.bf16.mxu0 0
        %1942 = vmatpush1.bf16.msra.mxu0 %v1917
        %1943 = vmatprep.subr.bf16.mxu0 0
        %1944 = vmatpush1.bf16.msra.mxu0 %v1916
        %1945 = vmatprep.subr.bf16.mxu0 0
        %1946 = vmatpush1.bf16.msra.mxu0 %v1915
        %1947 = vmatprep.subr.bf16.mxu0 0
        %1948 = vmatpush2.bf16.msra.mxu0 0
        %1949 = vmatprep.subr.bf16.mxu0 0
        %1950 = vmatpush2.bf16.msra.mxu0 0
        %1951 = vmatprep.subr.bf16.mxu0 0
        %1952 = vmatpush2.bf16.msra.mxu0 0
        %1953 = vmatprep.subr.bf16.mxu0 0
        %1954 = vmatpush2.bf16.msra.mxu0 0
        %1955 = vmatprep.subr.bf16.mxu0 0
        %1956 = vmatpush2.bf16.msra.mxu0 0
        %1957 = vmatprep.subr.bf16.mxu0 0
        %1958 = vmatpush2.bf16.msra.mxu0 0
        %1959 = vmatprep.subr.bf16.mxu0 0
        %1960 = vmatpush2.bf16.msra.mxu0 0
        %1961 = vmatprep.subr.bf16.mxu0 0
        %1962 = vmatpush2.bf16.msra.mxu0 0
        %1963 = vmatprep.mubr.bf16.mxu0 0
        %1964 = vmatmul.mubr.bf16.gmra.mxu0 %v1313
        %v1965 = vpop.f32.mrf.mxu0
        %v1966 = vadd.f32 %v1881, %v1965
        %v1967 = vpop.f32.mrf.mxu0
        %v1968 = vpop.f32.mrf.mxu0
        %v1969 = vadd.f32 %v1881, %v1968
        %v1970 = vpop.f32.mrf.mxu0
        %1971 = vdwg.mxu0
        %v1972 = vadd.f32 %v1858, %v1966
        %v1973 = vadd.f32 %v1859, %v1969
        %v1974 = vmax.f32 %v1972, 0.0
        %v1975 = vmax.f32 %v1973, 0.0
        %v1976 = vpack.c.bf16 %v1975, %v1974
        %v1977 = vld [vmem:[#allocation13] sm:$0xff]
        %v1978 = vld [vmem:[#allocation13 + $0x8] sm:$0xf]
        %v1979 = vld [vmem:[#allocation13 + $0xc] sm:$0xff]
        %v1980 = vld [vmem:[#allocation13 + $0x14] sm:$0xf]
        %v1981 = vld [vmem:[#allocation13 + $0x18] sm:$0xff]
        %v1982 = vld [vmem:[#allocation13 + $0x20] sm:$0xf]
        %v1983 = vld [vmem:[#allocation13 + $0x24] sm:$0xff]
        %v1984 = vld [vmem:[#allocation13 + $0x2c] sm:$0xf]
        %v1985 = vld [vmem:[#allocation13 + $0x30] sm:$0xff]
        %v1986 = vld [vmem:[#allocation13 + $0x38] sm:$0xf]
        %v1987 = vld [vmem:[#allocation13 + $0x3c] sm:$0xff]
        %v1988 = vld [vmem:[#allocation13 + $0x44] sm:$0xf]
        %v1989 = vld [vmem:[#allocation13 + $0x48] sm:$0xff]
        %v1990 = vld [vmem:[#allocation13 + $0x50] sm:$0xf]
        %v1991 = vld [vmem:[#allocation13 + $0x54] sm:$0xff]
        %v1992 = vld [vmem:[#allocation13 + $0x5c] sm:$0xf]
        %v1993 = vld [vmem:[#allocation13 + $0x60] sm:$0xff]
        %v1994 = vld [vmem:[#allocation13 + $0x68] sm:$0xf]
        %v1995 = vld [vmem:[#allocation13 + $0x6c] sm:$0xff]
        %v1996 = vld [vmem:[#allocation13 + $0x74] sm:$0xf]
        %v1997 = vld [vmem:[#allocation13 + $0x78] sm:$0xff]
        %v1998 = vld [vmem:[#allocation13 + $0x80] sm:$0xf]
        %v1999 = vld [vmem:[#allocation13 + $0x84] sm:$0xff]
        %v2000 = vld [vmem:[#allocation13 + $0x8c] sm:$0xf]
        %v2001 = vld [vmem:[#allocation13 + $0x90] sm:$0xff]
        %v2002 = vld [vmem:[#allocation13 + $0x98] sm:$0xf]
        %v2003 = vld [vmem:[#allocation13 + $0x9c] sm:$0xff]
        %v2004 = vld [vmem:[#allocation13 + $0xa4] sm:$0xf]
        %v2005 = vld [vmem:[#allocation13 + $0xa8] sm:$0xff]
        %v2006 = vld [vmem:[#allocation13 + $0xb0] sm:$0xf]
        %v2007 = vld [vmem:[#allocation13 + $0xb4] sm:$0xff]
        %v2008 = vld [vmem:[#allocation13 + $0xbc] sm:$0xf]
        %v2041 = vunpack.c.l.b16 %v1977
        %v2042 = vunpack.c.h.b16 %v1977
        %v2043 = vunpack.c.l.b16 %v1978
        %v2044 = vunpack.c.l.b16 %v1979
        %v2045 = vunpack.c.h.b16 %v1979
        %v2046 = vunpack.c.l.b16 %v1980
        %v2047 = vunpack.c.l.b16 %v1981
        %v2048 = vunpack.c.h.b16 %v1981
        %v2049 = vunpack.c.l.b16 %v1982
        %v2050 = vunpack.c.l.b16 %v1983
        %v2051 = vunpack.c.h.b16 %v1983
        %v2052 = vunpack.c.l.b16 %v1984
        %v2053 = vunpack.c.l.b16 %v1985
        %v2054 = vunpack.c.h.b16 %v1985
        %v2055 = vunpack.c.l.b16 %v1986
        %v2056 = vunpack.c.l.b16 %v1987
        %v2057 = vunpack.c.h.b16 %v1987
        %v2058 = vunpack.c.l.b16 %v1988
        %v2059 = vunpack.c.l.b16 %v1989
        %v2060 = vunpack.c.h.b16 %v1989
        %v2061 = vunpack.c.l.b16 %v1990
        %v2062 = vunpack.c.l.b16 %v1991
        %v2063 = vunpack.c.h.b16 %v1991
        %v2064 = vunpack.c.l.b16 %v1992
        %v2065 = vunpack.c.l.b16 %v1993
        %v2066 = vunpack.c.h.b16 %v1993
        %v2067 = vunpack.c.l.b16 %v1994
        %v2068 = vunpack.c.l.b16 %v1995
        %v2069 = vunpack.c.h.b16 %v1995
        %v2070 = vunpack.c.l.b16 %v1996
        %v2071 = vunpack.c.l.b16 %v1997
        %v2072 = vunpack.c.h.b16 %v1997
        %v2073 = vunpack.c.l.b16 %v1998
        %v2074 = vunpack.c.l.b16 %v1999
        %v2075 = vunpack.c.h.b16 %v1999
        %v2076 = vunpack.c.l.b16 %v2000
        %v2077 = vunpack.c.l.b16 %v2001
        %v2078 = vunpack.c.h.b16 %v2001
        %v2079 = vunpack.c.l.b16 %v2002
        %v2080 = vunpack.c.l.b16 %v2003
        %v2081 = vunpack.c.h.b16 %v2003
        %v2082 = vunpack.c.l.b16 %v2004
        %v2083 = vunpack.c.l.b16 %v2005
        %v2084 = vunpack.c.h.b16 %v2005
        %v2085 = vunpack.c.l.b16 %v2006
        %v2086 = vunpack.c.l.b16 %v2007
        %v2087 = vunpack.c.h.b16 %v2007
        %v2088 = vunpack.c.l.b16 %v2008
        %v2089 = vpack.c.b16 %v2044, %v2041
        %v2090 = vpack.c.b16 %v2045, %v2042
        %v2091 = vpack.c.b16 %v2046, %v2043
        %v2092 = vpack.c.b16 %v2050, %v2047
        %v2093 = vpack.c.b16 %v2051, %v2048
        %v2094 = vpack.c.b16 %v2052, %v2049
        %v2095 = vpack.c.b16 %v2056, %v2053
        %v2096 = vpack.c.b16 %v2057, %v2054
        %v2097 = vpack.c.b16 %v2058, %v2055
        %v2098 = vpack.c.b16 %v2062, %v2059
        %v2099 = vpack.c.b16 %v2063, %v2060
        %v2100 = vpack.c.b16 %v2064, %v2061
        %v2101 = vpack.c.b16 %v2068, %v2065
        %v2102 = vpack.c.b16 %v2069, %v2066
        %v2103 = vpack.c.b16 %v2070, %v2067
        %v2104 = vpack.c.b16 %v2074, %v2071
        %v2105 = vpack.c.b16 %v2075, %v2072
        %v2106 = vpack.c.b16 %v2076, %v2073
        %v2107 = vpack.c.b16 %v2080, %v2077
        %v2108 = vpack.c.b16 %v2081, %v2078
        %v2109 = vpack.c.b16 %v2082, %v2079
        %v2110 = vpack.c.b16 %v2086, %v2083
        %v2111 = vpack.c.b16 %v2087, %v2084
        %v2112 = vpack.c.b16 %v2088, %v2085
        %2137 = vmatprep.subr.bf16.mxu0 %v2111
        %2138 = vmatpush1.bf16.msra.mxu0 %v2110
        %2139 = vmatprep.subr.bf16.mxu0 %v2108
        %2140 = vmatpush1.bf16.msra.mxu0 %v2107
        %2141 = vmatprep.subr.bf16.mxu0 %v2105
        %2142 = vmatpush1.bf16.msra.mxu0 %v2104
        %2143 = vmatprep.subr.bf16.mxu0 %v2102
        %2144 = vmatpush1.bf16.msra.mxu0 %v2101
        %2145 = vmatprep.subr.bf16.mxu0 %v2099
        %2146 = vmatpush1.bf16.msra.mxu0 %v2098
        %2147 = vmatprep.subr.bf16.mxu0 %v2096
        %2148 = vmatpush1.bf16.msra.mxu0 %v2095
        %2149 = vmatprep.subr.bf16.mxu0 %v2093
        %2150 = vmatpush1.bf16.msra.mxu0 %v2092
        %2151 = vmatprep.subr.bf16.mxu0 %v2090
        %2152 = vmatpush1.bf16.msra.mxu0 %v2089
        %2153 = vmatprep.subr.bf16.mxu0 0
        %2154 = vmatpush2.bf16.msra.mxu0 0
        %2155 = vmatprep.subr.bf16.mxu0 0
        %2156 = vmatpush2.bf16.msra.mxu0 0
        %2157 = vmatprep.subr.bf16.mxu0 0
        %2158 = vmatpush2.bf16.msra.mxu0 0
        %2159 = vmatprep.subr.bf16.mxu0 0
        %2160 = vmatpush2.bf16.msra.mxu0 0
        %2161 = vmatprep.subr.bf16.mxu0 0
        %2162 = vmatpush2.bf16.msra.mxu0 0
        %2163 = vmatprep.subr.bf16.mxu0 0
        %2164 = vmatpush2.bf16.msra.mxu0 0
        %2165 = vmatprep.subr.bf16.mxu0 0
        %2166 = vmatpush2.bf16.msra.mxu0 0
        %2167 = vmatprep.subr.bf16.mxu0 0
        %2168 = vmatpush2.bf16.msra.mxu0 0
        %2169 = vmatprep.mubr.bf16.mxu0 0
        %2170 = vmatmul.mubr.bf16.gmra.mxu0 %v1976
        %v2171 = vpop.f32.mrf.mxu0
        %v2172 = vadd.f32 0.0, %v2171
        %v2173 = vpop.f32.mrf.mxu0
        %v2174 = vadd.f32 0.0, %v2173
        %v2175 = vpop.f32.mrf.mxu0
        %v2176 = vadd.f32 0.0, %v2175
        %v2177 = vpop.f32.mrf.mxu0
        %v2178 = vadd.f32 0.0, %v2177
        %2179 = vdwg.mxu0
        %2180 = vmatprep.subr.bf16.mxu0 0
        %2181 = vmatpush1.bf16.msra.mxu0 %v2112
        %2182 = vmatprep.subr.bf16.mxu0 0
        %2183 = vmatpush1.bf16.msra.mxu0 %v2109
        %2184 = vmatprep.subr.bf16.mxu0 0
        %2185 = vmatpush1.bf16.msra.mxu0 %v2106
        %2186 = vmatprep.subr.bf16.mxu0 0
        %2187 = vmatpush1.bf16.msra.mxu0 %v2103
        %2188 = vmatprep.subr.bf16.mxu0 0
        %2189 = vmatpush1.bf16.msra.mxu0 %v2100
        %2190 = vmatprep.subr.bf16.mxu0 0
        %2191 = vmatpush1.bf16.msra.mxu0 %v2097
        %2192 = vmatprep.subr.bf16.mxu0 0
        %2193 = vmatpush1.bf16.msra.mxu0 %v2094
        %2194 = vmatprep.subr.bf16.mxu0 0
        %2195 = vmatpush1.bf16.msra.mxu0 %v2091
        %2196 = vmatprep.subr.bf16.mxu0 0
        %2197 = vmatpush2.bf16.msra.mxu0 0
        %2198 = vmatprep.subr.bf16.mxu0 0
        %2199 = vmatpush2.bf16.msra.mxu0 0
        %2200 = vmatprep.subr.bf16.mxu0 0
        %2201 = vmatpush2.bf16.msra.mxu0 0
        %2202 = vmatprep.subr.bf16.mxu0 0
        %2203 = vmatpush2.bf16.msra.mxu0 0
        %2204 = vmatprep.subr.bf16.mxu0 0
        %2205 = vmatpush2.bf16.msra.mxu0 0
        %2206 = vmatprep.subr.bf16.mxu0 0
        %2207 = vmatpush2.bf16.msra.mxu0 0
        %2208 = vmatprep.subr.bf16.mxu0 0
        %2209 = vmatpush2.bf16.msra.mxu0 0
        %2210 = vmatprep.subr.bf16.mxu0 0
        %2211 = vmatpush2.bf16.msra.mxu0 0
        %2212 = vmatprep.mubr.bf16.mxu0 0
        %2213 = vmatmul.mubr.bf16.gmra.mxu0 %v1976
        %v2214 = vpop.f32.mrf.mxu0
        %v2215 = vadd.f32 0.0, %v2214
        %v2216 = vpop.f32.mrf.mxu0
        %v2217 = vpop.f32.mrf.mxu0
        %v2218 = vadd.f32 0.0, %v2217
        %v2219 = vpop.f32.mrf.mxu0
        %2220 = vdwg.mxu0
        %vm2221 = vcmp.ge.s32.totalorder %v753, 8
        %vm2222 = vcmp.ge.s32.totalorder %v754, 8
        %v2223 = vsel %vm2221, %v2176, 0.0
        %v2224 = vsel %vm2222, %v2172, 0.0
        %v2225 = vrot.slane %v2174, 4
        %v2226 = vrot.slane %v2178, 4
        %v2227 = vsel %vm1560, %v2225, %v2226
        %v2228 = vsel %vm1560, %v2226, %v2225
        %v2229 = vsel %vm1563, %v2228, 0.0
        %v2230 = vsel %vm1564, %v2227, 0.0
        %v2231 = vadd.f32 %v2223, %v2229
        %v2232 = vadd.f32 %v2224, %v2230
        %v2233 = vadd.f32 %v2231, %v2215
        %v2234 = vadd.f32 %v2232, %v2218
        %v2235 = vld [vmem:[%s12] sm:$0x1]
        %v2237 = vlaneseq
        %v2238 = vshrl.u32 %v2237, 7
        %v2239 = vsub.s32 0, %v2238
        %v2240 = vrot.slane %v2235, %v2239
        %v2242 = vadd.f32 %v2233, %v2240
        %v2243 = vadd.f32 %v2234, %v2240
        %v2244 = vmax.f32 %v2242, 0.0
        %v2245 = vmax.f32 %v2243, 0.0
        %v2246 = vld [vmem:[%s14] sm:$0x1]
        %v2247 = vadd.f32 %v2246, 0.0
        %v2248 = vpack.c.bf16 %v2244, %v2244
        %v2249 = vld [vmem:[#allocation14] sm:$0xf]
        %v2250 = vld [vmem:[#allocation14 + $0xc] sm:$0xf]
        %v2251 = vld [vmem:[#allocation14 + $0x18] sm:$0xf]
        %v2252 = vld [vmem:[#allocation14 + $0x24] sm:$0xf]
        %v2253 = vld [vmem:[#allocation14 + $0x30] sm:$0xf]
        %v2254 = vld [vmem:[#allocation14 + $0x3c] sm:$0xf]
        %v2255 = vld [vmem:[#allocation14 + $0x48] sm:$0xf]
        %v2256 = vld [vmem:[#allocation14 + $0x54] sm:$0xf]
        %v2257 = vld [vmem:[#allocation14 + $0x60] sm:$0xf]
        %v2258 = vld [vmem:[#allocation14 + $0x6c] sm:$0xf]
        %v2259 = vld [vmem:[#allocation14 + $0x78] sm:$0xf]
        %v2260 = vld [vmem:[#allocation14 + $0x84] sm:$0xf]
        %v2261 = vld [vmem:[#allocation14 + $0x90] sm:$0xf]
        %v2262 = vld [vmem:[#allocation14 + $0x9c] sm:$0xf]
        %v2263 = vld [vmem:[#allocation14 + $0xa8] sm:$0xf]
        %v2264 = vld [vmem:[#allocation14 + $0xb4] sm:$0xf]
        %v2266 = vshrl.u32 %v2248, 16
        %v2268 = vrot.slane %v2266, 3
        %v2286 = vunpack.c.l.b16 %v2249
        %v2287 = vunpack.c.l.b16 %v2250
        %v2288 = vunpack.c.l.b16 %v2251
        %v2289 = vunpack.c.l.b16 %v2252
        %v2290 = vunpack.c.l.b16 %v2253
        %v2291 = vunpack.c.l.b16 %v2254
        %v2292 = vunpack.c.l.b16 %v2255
        %v2293 = vunpack.c.l.b16 %v2256
        %v2294 = vunpack.c.l.b16 %v2257
        %v2295 = vunpack.c.l.b16 %v2258
        %v2296 = vunpack.c.l.b16 %v2259
        %v2297 = vunpack.c.l.b16 %v2260
        %v2298 = vunpack.c.l.b16 %v2261
        %v2299 = vunpack.c.l.b16 %v2262
        %v2300 = vunpack.c.l.b16 %v2263
        %v2301 = vunpack.c.l.b16 %v2264
        %v2302 = vpack.c.b16 %v2287, %v2286
        %v2303 = vpack.c.b16 %v2289, %v2288
        %v2304 = vpack.c.b16 %v2291, %v2290
        %v2305 = vpack.c.b16 %v2293, %v2292
        %v2306 = vpack.c.b16 %v2295, %v2294
        %v2307 = vpack.c.b16 %v2297, %v2296
        %v2308 = vpack.c.b16 %v2299, %v2298
        %v2309 = vpack.c.b16 %v2301, %v2300
        %2318 = vmatprep.subr.bf16.mxu0 0
        %2319 = vmatpush1.bf16.msra.mxu0 %v2309
        %2320 = vmatprep.subr.bf16.mxu0 0
        %2321 = vmatpush1.bf16.msra.mxu0 %v2308
        %2322 = vmatprep.subr.bf16.mxu0 0
        %2323 = vmatpush1.bf16.msra.mxu0 %v2307
        %2324 = vmatprep.subr.bf16.mxu0 0
        %2325 = vmatpush1.bf16.msra.mxu0 %v2306
        %2326 = vmatprep.subr.bf16.mxu0 0
        %2327 = vmatpush1.bf16.msra.mxu0 %v2305
        %2328 = vmatprep.subr.bf16.mxu0 0
        %2329 = vmatpush1.bf16.msra.mxu0 %v2304
        %2330 = vmatprep.subr.bf16.mxu0 0
        %2331 = vmatpush1.bf16.msra.mxu0 %v2303
        %2332 = vmatprep.subr.bf16.mxu0 0
        %2333 = vmatpush1.bf16.msra.mxu0 %v2302
        %2334 = vmatprep.subr.bf16.mxu0 0
        %2335 = vmatpush2.bf16.msra.mxu0 0
        %2336 = vmatprep.subr.bf16.mxu0 0
        %2337 = vmatpush2.bf16.msra.mxu0 0
        %2338 = vmatprep.subr.bf16.mxu0 0
        %2339 = vmatpush2.bf16.msra.mxu0 0
        %2340 = vmatprep.subr.bf16.mxu0 0
        %2341 = vmatpush2.bf16.msra.mxu0 0
        %2342 = vmatprep.subr.bf16.mxu0 0
        %2343 = vmatpush2.bf16.msra.mxu0 0
        %2344 = vmatprep.subr.bf16.mxu0 0
        %2345 = vmatpush2.bf16.msra.mxu0 0
        %2346 = vmatprep.subr.bf16.mxu0 0
        %2347 = vmatpush2.bf16.msra.mxu0 0
        %2348 = vmatprep.subr.bf16.mxu0 0
        %2349 = vmatpush2.bf16.msra.mxu0 0
        %2350 = vmatprep.mubr.bf16.mxu0 0
        %2351 = vmatmul.mubr.bf16.gmra.mxu0 %v2268
        %v2352 = vpop.f32.mrf.mxu0
        %v2353 = vadd.f32 0.0, %v2352
        %v2354 = vpop.f32.mrf.mxu0
        %v2355 = vpop.f32.mrf.mxu0
        %v2356 = vpop.f32.mrf.mxu0
        %2357 = vdwg.mxu0
        %v2358 = vadd.f32 %v2247, %v2353
        %v2359 = vpack.c.bf16 %v2245, %v2245
        %v2360 = vld [vmem:[#allocation14 + $0x4] sm:$0xf]
        %v2361 = vld [vmem:[#allocation14 + $0x10] sm:$0xf]
        %v2362 = vld [vmem:[#allocation14 + $0x1c] sm:$0xf]
        %v2363 = vld [vmem:[#allocation14 + $0x28] sm:$0xf]
        %v2364 = vld [vmem:[#allocation14 + $0x34] sm:$0xf]
        %v2365 = vld [vmem:[#allocation14 + $0x40] sm:$0xf]
        %v2366 = vld [vmem:[#allocation14 + $0x4c] sm:$0xf]
        %v2367 = vld [vmem:[#allocation14 + $0x58] sm:$0xf]
        %v2368 = vld [vmem:[#allocation14 + $0x64] sm:$0xf]
        %v2369 = vld [vmem:[#allocation14 + $0x70] sm:$0xf]
        %v2370 = vld [vmem:[#allocation14 + $0x7c] sm:$0xf]
        %v2371 = vld [vmem:[#allocation14 + $0x88] sm:$0xf]
        %v2372 = vld [vmem:[#allocation14 + $0x94] sm:$0xf]
        %v2373 = vld [vmem:[#allocation14 + $0xa0] sm:$0xf]
        %v2374 = vld [vmem:[#allocation14 + $0xac] sm:$0xf]
        %v2375 = vld [vmem:[#allocation14 + $0xb8] sm:$0xf]
        %v2377 = vshrl.u32 %v2359, 16
        %v2379 = vrot.slane %v2377, 1
        %v2397 = vunpack.c.l.b16 %v2360
        %v2398 = vunpack.c.l.b16 %v2361
        %v2399 = vunpack.c.l.b16 %v2362
        %v2400 = vunpack.c.l.b16 %v2363
        %v2401 = vunpack.c.l.b16 %v2364
        %v2402 = vunpack.c.l.b16 %v2365
        %v2403 = vunpack.c.l.b16 %v2366
        %v2404 = vunpack.c.l.b16 %v2367
        %v2405 = vunpack.c.l.b16 %v2368
        %v2406 = vunpack.c.l.b16 %v2369
        %v2407 = vunpack.c.l.b16 %v2370
        %v2408 = vunpack.c.l.b16 %v2371
        %v2409 = vunpack.c.l.b16 %v2372
        %v2410 = vunpack.c.l.b16 %v2373
        %v2411 = vunpack.c.l.b16 %v2374
        %v2412 = vunpack.c.l.b16 %v2375
        %v2413 = vpack.c.b16 %v2398, %v2397
        %v2414 = vpack.c.b16 %v2400, %v2399
        %v2415 = vpack.c.b16 %v2402, %v2401
        %v2416 = vpack.c.b16 %v2404, %v2403
        %v2417 = vpack.c.b16 %v2406, %v2405
        %v2418 = vpack.c.b16 %v2408, %v2407
        %v2419 = vpack.c.b16 %v2410, %v2409
        %v2420 = vpack.c.b16 %v2412, %v2411
        %2429 = vmatprep.subr.bf16.mxu0 0
        %2430 = vmatpush1.bf16.msra.mxu0 %v2420
        %2431 = vmatprep.subr.bf16.mxu0 0
        %2432 = vmatpush1.bf16.msra.mxu0 %v2419
        %2433 = vmatprep.subr.bf16.mxu0 0
        %2434 = vmatpush1.bf16.msra.mxu0 %v2418
        %2435 = vmatprep.subr.bf16.mxu0 0
        %2436 = vmatpush1.bf16.msra.mxu0 %v2417
        %2437 = vmatprep.subr.bf16.mxu0 0
        %2438 = vmatpush1.bf16.msra.mxu0 %v2416
        %2439 = vmatprep.subr.bf16.mxu0 0
        %2440 = vmatpush1.bf16.msra.mxu0 %v2415
        %2441 = vmatprep.subr.bf16.mxu0 0
        %2442 = vmatpush1.bf16.msra.mxu0 %v2414
        %2443 = vmatprep.subr.bf16.mxu0 0
        %2444 = vmatpush1.bf16.msra.mxu0 %v2413
        %2445 = vmatprep.subr.bf16.mxu0 0
        %2446 = vmatpush2.bf16.msra.mxu0 0
        %2447 = vmatprep.subr.bf16.mxu0 0
        %2448 = vmatpush2.bf16.msra.mxu0 0
        %2449 = vmatprep.subr.bf16.mxu0 0
        %2450 = vmatpush2.bf16.msra.mxu0 0
        %2451 = vmatprep.subr.bf16.mxu0 0
        %2452 = vmatpush2.bf16.msra.mxu0 0
        %2453 = vmatprep.subr.bf16.mxu0 0
        %2454 = vmatpush2.bf16.msra.mxu0 0
        %2455 = vmatprep.subr.bf16.mxu0 0
        %2456 = vmatpush2.bf16.msra.mxu0 0
        %2457 = vmatprep.subr.bf16.mxu0 0
        %2458 = vmatpush2.bf16.msra.mxu0 0
        %2459 = vmatprep.subr.bf16.mxu0 0
        %2460 = vmatpush2.bf16.msra.mxu0 0
        %2461 = vmatprep.mubr.bf16.mxu0 0
        %2462 = vmatmul.mubr.bf16.gmra.mxu0 %v2379
        %v2463 = vpop.f32.mrf.mxu0
        %v2464 = vadd.f32 0.0, %v2463
        %v2465 = vpop.f32.mrf.mxu0
        %v2466 = vpop.f32.mrf.mxu0
        %v2467 = vpop.f32.mrf.mxu0
        %2468 = vdwg.mxu0
        %v2469 = vadd.f32 %v2358, %v2464
        %v2470 = vld [vmem:[#allocation14 + $0x8] sm:$0xf]
        %v2471 = vld [vmem:[#allocation14 + $0x14] sm:$0xf]
        %v2472 = vld [vmem:[#allocation14 + $0x20] sm:$0xf]
        %v2473 = vld [vmem:[#allocation14 + $0x2c] sm:$0xf]
        %v2474 = vld [vmem:[#allocation14 + $0x38] sm:$0xf]
        %v2475 = vld [vmem:[#allocation14 + $0x44] sm:$0xf]
        %v2476 = vld [vmem:[#allocation14 + $0x50] sm:$0xf]
        %v2477 = vld [vmem:[#allocation14 + $0x5c] sm:$0xf]
        %v2478 = vld [vmem:[#allocation14 + $0x68] sm:$0xf]
        %v2479 = vld [vmem:[#allocation14 + $0x74] sm:$0xf]
        %v2480 = vld [vmem:[#allocation14 + $0x80] sm:$0xf]
        %v2481 = vld [vmem:[#allocation14 + $0x8c] sm:$0xf]
        %v2482 = vld [vmem:[#allocation14 + $0x98] sm:$0xf]
        %v2483 = vld [vmem:[#allocation14 + $0xa4] sm:$0xf]
        %v2484 = vld [vmem:[#allocation14 + $0xb0] sm:$0xf]
        %v2485 = vld [vmem:[#allocation14 + $0xbc] sm:$0xf]
        %v2486 = vrot.slane %v2377, 3
        %v2504 = vunpack.c.l.b16 %v2470
        %v2505 = vunpack.c.l.b16 %v2471
        %v2506 = vunpack.c.l.b16 %v2472
        %v2507 = vunpack.c.l.b16 %v2473
        %v2508 = vunpack.c.l.b16 %v2474
        %v2509 = vunpack.c.l.b16 %v2475
        %v2510 = vunpack.c.l.b16 %v2476
        %v2511 = vunpack.c.l.b16 %v2477
        %v2512 = vunpack.c.l.b16 %v2478
        %v2513 = vunpack.c.l.b16 %v2479
        %v2514 = vunpack.c.l.b16 %v2480
        %v2515 = vunpack.c.l.b16 %v2481
        %v2516 = vunpack.c.l.b16 %v2482
        %v2517 = vunpack.c.l.b16 %v2483
        %v2518 = vunpack.c.l.b16 %v2484
        %v2519 = vunpack.c.l.b16 %v2485
        %v2520 = vpack.c.b16 %v2505, %v2504
        %v2521 = vpack.c.b16 %v2507, %v2506
        %v2522 = vpack.c.b16 %v2509, %v2508
        %v2523 = vpack.c.b16 %v2511, %v2510
        %v2524 = vpack.c.b16 %v2513, %v2512
        %v2525 = vpack.c.b16 %v2515, %v2514
        %v2526 = vpack.c.b16 %v2517, %v2516
        %v2527 = vpack.c.b16 %v2519, %v2518
        %2536 = vmatprep.subr.bf16.mxu0 0
        %2537 = vmatpush1.bf16.msra.mxu0 %v2527
        %2538 = vmatprep.subr.bf16.mxu0 0
        %2539 = vmatpush1.bf16.msra.mxu0 %v2526
        %2540 = vmatprep.subr.bf16.mxu0 0
        %2541 = vmatpush1.bf16.msra.mxu0 %v2525
        %2542 = vmatprep.subr.bf16.mxu0 0
        %2543 = vmatpush1.bf16.msra.mxu0 %v2524
        %2544 = vmatprep.subr.bf16.mxu0 0
        %2545 = vmatpush1.bf16.msra.mxu0 %v2523
        %2546 = vmatprep.subr.bf16.mxu0 0
        %2547 = vmatpush1.bf16.msra.mxu0 %v2522
        %2548 = vmatprep.subr.bf16.mxu0 0
        %2549 = vmatpush1.bf16.msra.mxu0 %v2521
        %2550 = vmatprep.subr.bf16.mxu0 0
        %2551 = vmatpush1.bf16.msra.mxu0 %v2520
        %2552 = vmatprep.subr.bf16.mxu0 0
        %2553 = vmatpush2.bf16.msra.mxu0 0
        %2554 = vmatprep.subr.bf16.mxu0 0
        %2555 = vmatpush2.bf16.msra.mxu0 0
        %2556 = vmatprep.subr.bf16.mxu0 0
        %2557 = vmatpush2.bf16.msra.mxu0 0
        %2558 = vmatprep.subr.bf16.mxu0 0
        %2559 = vmatpush2.bf16.msra.mxu0 0
        %2560 = vmatprep.subr.bf16.mxu0 0
        %2561 = vmatpush2.bf16.msra.mxu0 0
        %2562 = vmatprep.subr.bf16.mxu0 0
        %2563 = vmatpush2.bf16.msra.mxu0 0
        %2564 = vmatprep.subr.bf16.mxu0 0
        %2565 = vmatpush2.bf16.msra.mxu0 0
        %2566 = vmatprep.subr.bf16.mxu0 0
        %2567 = vmatpush2.bf16.msra.mxu0 0
        %2568 = vmatprep.mubr.bf16.mxu0 0
        %2569 = vmatmul.mubr.bf16.gmra.mxu0 %v2486
        %v2570 = vpop.f32.mrf.mxu0
        %v2571 = vadd.f32 0.0, %v2570
        %v2572 = vpop.f32.mrf.mxu0
        %v2573 = vpop.f32.mrf.mxu0
        %v2574 = vpop.f32.mrf.mxu0
        %2575 = vdwg.mxu0
        %v2576 = vadd.f32 %v2469, %v2571
        %v2577 = vmax.f32 %v2576, 0.0
        %v2578 = vpack.c.bf16 %v1975, %v1975
        %v2579 = vld [vmem:[#allocation16] sm:$0xf]
        %v2580 = vld [vmem:[#allocation16 + $0x4] sm:$0xf]
        %v2581 = vld [vmem:[#allocation16 + $0x8] sm:$0xf]
        %v2582 = vld [vmem:[#allocation16 + $0xc] sm:$0xf]
        %v2583 = vld [vmem:[#allocation16 + $0x10] sm:$0xf]
        %v2584 = vld [vmem:[#allocation16 + $0x14] sm:$0xf]
        %v2585 = vld [vmem:[#allocation16 + $0x18] sm:$0xf]
        %v2586 = vld [vmem:[#allocation16 + $0x1c] sm:$0xf]
        %v2587 = vld [vmem:[#allocation16 + $0x20] sm:$0xf]
        %v2588 = vld [vmem:[#allocation16 + $0x24] sm:$0xf]
        %v2589 = vld [vmem:[#allocation16 + $0x28] sm:$0xf]
        %v2590 = vld [vmem:[#allocation16 + $0x2c] sm:$0xf]
        %v2591 = vld [vmem:[#allocation16 + $0x30] sm:$0xf]
        %v2592 = vld [vmem:[#allocation16 + $0x34] sm:$0xf]
        %v2593 = vld [vmem:[#allocation16 + $0x38] sm:$0xf]
        %v2594 = vld [vmem:[#allocation16 + $0x3c] sm:$0xf]
        %v2595 = vld [vmem:[%s16] sm:$0x1]
        %v2597 = vshrl.u32 %v2578, 16
        %v2599 = vrot.slane %v2597, 3
        %v2617 = vunpack.c.l.b16 %v2579
        %v2618 = vunpack.c.l.b16 %v2580
        %v2619 = vunpack.c.l.b16 %v2581
        %v2620 = vunpack.c.l.b16 %v2582
        %v2621 = vunpack.c.l.b16 %v2583
        %v2622 = vunpack.c.l.b16 %v2584
        %v2623 = vunpack.c.l.b16 %v2585
        %v2624 = vunpack.c.l.b16 %v2586
        %v2625 = vunpack.c.l.b16 %v2587
        %v2626 = vunpack.c.l.b16 %v2588
        %v2627 = vunpack.c.l.b16 %v2589
        %v2628 = vunpack.c.l.b16 %v2590
        %v2629 = vunpack.c.l.b16 %v2591
        %v2630 = vunpack.c.l.b16 %v2592
        %v2631 = vunpack.c.l.b16 %v2593
        %v2632 = vunpack.c.l.b16 %v2594
        %v2633 = vpack.c.b16 %v2618, %v2617
        %v2634 = vpack.c.b16 %v2620, %v2619
        %v2635 = vpack.c.b16 %v2622, %v2621
        %v2636 = vpack.c.b16 %v2624, %v2623
        %v2637 = vpack.c.b16 %v2626, %v2625
        %v2638 = vpack.c.b16 %v2628, %v2627
        %v2639 = vpack.c.b16 %v2630, %v2629
        %v2640 = vpack.c.b16 %v2632, %v2631
        %2649 = vmatprep.subr.bf16.mxu0 0
        %2650 = vmatpush1.bf16.msra.mxu0 %v2640
        %2651 = vmatprep.subr.bf16.mxu0 0
        %2652 = vmatpush1.bf16.msra.mxu0 %v2639
        %2653 = vmatprep.subr.bf16.mxu0 0
        %2654 = vmatpush1.bf16.msra.mxu0 %v2638
        %2655 = vmatprep.subr.bf16.mxu0 0
        %2656 = vmatpush1.bf16.msra.mxu0 %v2637
        %2657 = vmatprep.subr.bf16.mxu0 0
        %2658 = vmatpush1.bf16.msra.mxu0 %v2636
        %2659 = vmatprep.subr.bf16.mxu0 0
        %2660 = vmatpush1.bf16.msra.mxu0 %v2635
        %2661 = vmatprep.subr.bf16.mxu0 0
        %2662 = vmatpush1.bf16.msra.mxu0 %v2634
        %2663 = vmatprep.subr.bf16.mxu0 0
        %2664 = vmatpush1.bf16.msra.mxu0 %v2633
        %2665 = vmatprep.subr.bf16.mxu0 0
        %2666 = vmatpush2.bf16.msra.mxu0 0
        %2667 = vmatprep.subr.bf16.mxu0 0
        %2668 = vmatpush2.bf16.msra.mxu0 0
        %2669 = vmatprep.subr.bf16.mxu0 0
        %2670 = vmatpush2.bf16.msra.mxu0 0
        %2671 = vmatprep.subr.bf16.mxu0 0
        %2672 = vmatpush2.bf16.msra.mxu0 0
        %2673 = vmatprep.subr.bf16.mxu0 0
        %2674 = vmatpush2.bf16.msra.mxu0 0
        %2675 = vmatprep.subr.bf16.mxu0 0
        %2676 = vmatpush2.bf16.msra.mxu0 0
        %2677 = vmatprep.subr.bf16.mxu0 0
        %2678 = vmatpush2.bf16.msra.mxu0 0
        %2679 = vmatprep.subr.bf16.mxu0 0
        %2680 = vmatpush2.bf16.msra.mxu0 0
        %2681 = vmatprep.mubr.bf16.mxu0 0
        %2682 = vmatmul.mubr.bf16.gmra.mxu0 %v2599
        %v2683 = vpop.f32.mrf.mxu0
        %v2684 = vadd.f32 %v2595, %v2683
        %v2685 = vpop.f32.mrf.mxu0
        %v2686 = vpop.f32.mrf.mxu0
        %v2687 = vpop.f32.mrf.mxu0
        %2688 = vdwg.mxu0
        %v2689 = vadd.f32 %v2577, %v2684
        %v2690 = vmax.f32 %v2689, 0.0
        %v2691 = vpack.c.bf16 %v2690, %v2690
        %v2692 = vld [vmem:[#allocation17] sm:$0xf]
        %v2693 = vld [vmem:[#allocation17 + $0x4] sm:$0xf]
        %v2694 = vld [vmem:[#allocation17 + $0x8] sm:$0xf]
        %v2695 = vld [vmem:[#allocation17 + $0xc] sm:$0xf]
        %v2696 = vld [vmem:[#allocation17 + $0x10] sm:$0xf]
        %v2697 = vld [vmem:[#allocation17 + $0x14] sm:$0xf]
        %v2698 = vld [vmem:[#allocation17 + $0x18] sm:$0xf]
        %v2699 = vld [vmem:[#allocation17 + $0x1c] sm:$0xf]
        %v2700 = vld [vmem:[#allocation17 + $0x20] sm:$0xf]
        %v2701 = vld [vmem:[#allocation17 + $0x24] sm:$0xf]
        %v2702 = vld [vmem:[#allocation17 + $0x28] sm:$0xf]
        %v2703 = vld [vmem:[#allocation17 + $0x2c] sm:$0xf]
        %v2704 = vld [vmem:[#allocation17 + $0x30] sm:$0xf]
        %v2705 = vld [vmem:[#allocation17 + $0x34] sm:$0xf]
        %v2706 = vld [vmem:[#allocation17 + $0x38] sm:$0xf]
        %v2707 = vld [vmem:[#allocation17 + $0x3c] sm:$0xf]
        %v2708 = vld [vmem:[%s18] sm:$0x1]
        %v2725 = vunpack.c.l.b16 %v2692
        %v2726 = vunpack.c.l.b16 %v2693
        %v2727 = vunpack.c.l.b16 %v2694
        %v2728 = vunpack.c.l.b16 %v2695
        %v2729 = vunpack.c.l.b16 %v2696
        %v2730 = vunpack.c.l.b16 %v2697
        %v2731 = vunpack.c.l.b16 %v2698
        %v2732 = vunpack.c.l.b16 %v2699
        %v2733 = vunpack.c.l.b16 %v2700
        %v2734 = vunpack.c.l.b16 %v2701
        %v2735 = vunpack.c.l.b16 %v2702
        %v2736 = vunpack.c.l.b16 %v2703
        %v2737 = vunpack.c.l.b16 %v2704
        %v2738 = vunpack.c.l.b16 %v2705
        %v2739 = vunpack.c.l.b16 %v2706
        %v2740 = vunpack.c.l.b16 %v2707
        %v2741 = vpack.c.b16 %v2726, %v2725
        %v2742 = vpack.c.b16 %v2728, %v2727
        %v2743 = vpack.c.b16 %v2730, %v2729
        %v2744 = vpack.c.b16 %v2732, %v2731
        %v2745 = vpack.c.b16 %v2734, %v2733
        %v2746 = vpack.c.b16 %v2736, %v2735
        %v2747 = vpack.c.b16 %v2738, %v2737
        %v2748 = vpack.c.b16 %v2740, %v2739
        %2757 = vmatprep.subr.bf16.mxu0 0
        %2758 = vmatpush1.bf16.msra.mxu0 %v2748
        %2759 = vmatprep.subr.bf16.mxu0 0
        %2760 = vmatpush1.bf16.msra.mxu0 %v2747
        %2761 = vmatprep.subr.bf16.mxu0 0
        %2762 = vmatpush1.bf16.msra.mxu0 %v2746
        %2763 = vmatprep.subr.bf16.mxu0 0
        %2764 = vmatpush1.bf16.msra.mxu0 %v2745
        %2765 = vmatprep.subr.bf16.mxu0 0
        %2766 = vmatpush1.bf16.msra.mxu0 %v2744
        %2767 = vmatprep.subr.bf16.mxu0 0
        %2768 = vmatpush1.bf16.msra.mxu0 %v2743
        %2769 = vmatprep.subr.bf16.mxu0 0
        %2770 = vmatpush1.bf16.msra.mxu0 %v2742
        %2771 = vmatprep.subr.bf16.mxu0 0
        %2772 = vmatpush1.bf16.msra.mxu0 %v2741
        %2773 = vmatprep.subr.bf16.mxu0 0
        %2774 = vmatpush2.bf16.msra.mxu0 0
        %2775 = vmatprep.subr.bf16.mxu0 0
        %2776 = vmatpush2.bf16.msra.mxu0 0
        %2777 = vmatprep.subr.bf16.mxu0 0
        %2778 = vmatpush2.bf16.msra.mxu0 0
        %2779 = vmatprep.subr.bf16.mxu0 0
        %2780 = vmatpush2.bf16.msra.mxu0 0
        %2781 = vmatprep.subr.bf16.mxu0 0
        %2782 = vmatpush2.bf16.msra.mxu0 0
        %2783 = vmatprep.subr.bf16.mxu0 0
        %2784 = vmatpush2.bf16.msra.mxu0 0
        %2785 = vmatprep.subr.bf16.mxu0 0
        %2786 = vmatpush2.bf16.msra.mxu0 0
        %2787 = vmatprep.subr.bf16.mxu0 0
        %2788 = vmatpush2.bf16.msra.mxu0 0
        %2789 = vmatprep.mubr.bf16.mxu0 0
        %2790 = vmatmul.mubr.bf16.gmra.mxu0 %v2691
        %v2791 = vpop.f32.mrf.mxu0
        %v2792 = vadd.f32 %v2708, %v2791
        %v2793 = vpop.f32.mrf.mxu0
        %v2794 = vpop.f32.mrf.mxu0
        %v2795 = vpop.f32.mrf.mxu0
        %2796 = vdwg.mxu0
        %2797 = vst [vmem:[%s750] sm:$0x1] %v2792
        %s2798 = sand.u32 %s453, 1
        %s2799 = scalar_lea.sflag [#allocation4], %s2798
        %s2800 = sand.u32 %s453, 1
        %s2801 = scalar_lea.vmem [#allocation19], %s2800
        // Predicated region
        $region137: #{tpu_custom_call.1} parent=95 // pred_check
          %p2802 = pneg %p463
        $region138: #{tpu_custom_call.1} parent=95 // pred_check_branch
          %2804 = sbr.rel (%p2802) target = $region140
        $region139: #{tpu_custom_call.1} parent=95 // pred_region
          %s2806 = ssub.s32 16, 16
          %2807 = vsyncadd %s2799, %s2806
          %s2808 = smul.addr %s41, 16
          %s2809 = scalar_lea.hbm %s19, %s2808
          %s2811 = sshll.u32 %s2801, 4
          %s2812 = int_to_ptr.vmem [resolvable:$true] %s2811
          %2814 = dma.vmem_to_hbm [thread:$0]  %s2812, 16, %s2809, %s2799
        $region140: #{tpu_custom_call.1} parent=95 // pred_fallthru
          _
      $region96: #{tpu_custom_call.1} parent=5 // pred_fallthru
        _
      %p2815 = scmp.le.s32.totalorder 2, %s36
      // Predicated region
      $region141: #{tpu_custom_call.1} parent=5 // pred_check
        %p2816 = pneg %p2815
      $region142: #{tpu_custom_call.1} parent=5 // pred_check_branch
        %2818 = sbr.rel (%p2816) target = $region144
      $region143: #{tpu_custom_call.1} parent=5 // pred_region
        %s2819 = ssub.s32 %s36, 2
        // Predicated region
        $region145: #{tpu_custom_call.1} parent=143 // pred_check
          %p2820 = pneg %p469
        $region146: #{tpu_custom_call.1} parent=143 // pred_check_branch
          %2822 = sbr.rel (%p2820) target = $region148
        $region147: #{tpu_custom_call.1} parent=143 // pred_region
          %s2823 = sand.u32 %s454, 1
          %s2824 = scalar_lea.sflag [#allocation4], %s2823
          %s2825 = sand.u32 %s454, 1
          %s2826 = scalar_lea.vmem [#allocation19], %s2825
          %2827 = dma.done %s2824, 16
        $region148: #{tpu_custom_call.1} parent=143 // pred_fallthru
          _
      $region144: #{tpu_custom_call.1} parent=5 // pred_fallthru
        _
    $region6: #{tpu_custom_call.1} parent=1 // loop_footer
      %s40 = sadd.s32 1, %s36
    $region7: #{tpu_custom_call.1} parent=1 // loop_footer_branch
      %35 = sbr.rel target = $region3
    $region8: #{tpu_custom_call.1} parent=1 // loop_exit
      _
    %2828 = vsyncpa [#allocation3], 1
    %s2829 = scalar_lea.sflag [#allocation3], 1
    %2830 = vsyncpa %s2829, 1
    %2831 = vsyncpa [#allocation6], 1
    %2832 = vsyncpa [#allocation9], 1
    %2833 = vsyncpa [#allocation12], 1
    %2834 = vsyncpa [#allocation15], 1
    %2835 = vsyncpa [#allocation18], 1
    %2836 = vsyncpa [#allocation4], 1
    %s2837 = scalar_lea.sflag [#allocation4], 1
    %2838 = vsyncpa %s2837, 1

</llo_original>
